<compile_context>
chip_gen: v6e
topology: v6e:2x2x1
jax: 0.10.0
libtpu: 0.0.40
codegen_flags: <defaults>
</compile_context>

<pallas_src>
import jax
import jax.numpy as jnp
from jax import lax
from jax.experimental import pallas as pl
from jax.experimental.pallas import tpu as pltpu

_LANE = 128                 # vreg lane width   (last-dim alignment)
_SUBLANE = 8                # vreg sublane width (second-to-last-dim alignment)
_MXU_DTYPE = jnp.bfloat16   # matmul operand dtype; accumulation & gate math stay f32


def _round_up(x, m):
    return (x + m - 1) // m * m


# ---------------------------------------------------------------------------
# Fused kernel: all GRU layers + final FC + sigmoid in one pallas_call
# ---------------------------------------------------------------------------
def _make_fused_gru_kernel(num_layers, seq_len, b_pad, h_pad):
    """Ref layout (in order):
      x_ref                (T*Bp, Dp)      bf16  flattened, padded input
      per layer l:
        wih_ref            (Din_l_p, 3*Hp) bf16  gate-blocked, 128-lane aligned
        whh_ref            (Hp, 3*Hp)      bf16
        bi_ref             (1, 3*Hp)       f32   input bias, r/z hidden biases folded in
        bhn_ref            (1, Hp)         f32   hidden bias of gate n
      wfc_ref              (Hp, Op)        bf16
      bfc_ref              (1, Op)         f32
      out_ref              (Bp, Op)        f32
      gi_ref   (scratch)   (T*Bp, 3*Hp)    f32   hoisted input-path gates
      hseq_ref (scratch)   (T*Bp, Hp)      f32   inter-layer hidden sequence
      h_ref    (scratch)   (Bp, Hp)        f32   recurrent carry
    """
    T, Bp, Hp = seq_len, b_pad, h_pad

    def kernel(*refs):
        x_ref = refs[0]
        layer_refs = refs[1:1 + 4 * num_layers]
        wfc_ref = refs[1 + 4 * num_layers]
        bfc_ref = refs[2 + 4 * num_layers]
        out_ref = refs[3 + 4 * num_layers]
        gi_ref, hseq_ref, h_ref = refs[4 + 4 * num_layers:]

        for l in range(num_layers):
            wih_ref = layer_refs[4 * l + 0]
            whh_ref = layer_refs[4 * l + 1]
            bi_ref = layer_refs[4 * l + 2]
            bhn_ref = layer_refs[4 * l + 3]

            # --- hoisted input-path matmul: all T timesteps in one MXU op ----
            if l == 0:
                inp = x_ref[...]                               # already bf16
            else:
                inp = hseq_ref[...].astype(_MXU_DTYPE)         # prev layer's h-sequence
            gi_ref[...] = (
                jnp.dot(inp, wih_ref[...], preferred_element_type=jnp.float32)
                + bi_ref[...])

            # --- sequential recurrence: only the hidden matmul stays in loop --
            h_ref[...] = jnp.zeros_like(h_ref)
            last_layer = (l == num_layers - 1)

            def step(t, carry, whh_ref=whh_ref, bhn_ref=bhn_ref,
                     last_layer=last_layer):
                row = pl.multiple_of(t * Bp, Bp)
                h_prev = h_ref[...]                                   # (Bp, Hp)  f32
                gi = gi_ref[pl.ds(row, Bp), :]                        # (Bp, 3Hp) f32
                gh = jnp.dot(h_prev.astype(_MXU_DTYPE), whh_ref[...],
                             preferred_element_type=jnp.float32)      # (Bp, 3Hp) f32
                # Each gate occupies its own 128-lane-aligned block -> whole-vreg slices.
                r = jax.nn.sigmoid(gi[:, 0:Hp] + gh[:, 0:Hp])
                z = jax.nn.sigmoid(gi[:, Hp:2 * Hp] + gh[:, Hp:2 * Hp])
                n = jnp.tanh(gi[:, 2 * Hp:3 * Hp]
                             + r * (gh[:, 2 * Hp:3 * Hp] + bhn_ref[...]))
                h_t = (1.0 - z) * n + z * h_prev
                # Padded hidden lanes stay exactly 0: zero weight cols / biases give
                # gi = gh = 0 there -> r = z = 0.5, n = 0, h' = 0.5 * h_prev = 0.
                h_ref[...] = h_t
                if not last_layer:          # next layer needs the full sequence
                    hseq_ref[pl.ds(row, Bp), :] = h_t
                return carry

            lax.fori_loop(0, T, step, 0, unroll=True)

        # --- fused FC + sigmoid on the last layer's final hidden state -------
        logits = (jnp.dot(h_ref[...].astype(_MXU_DTYPE), wfc_ref[...],
                          preferred_element_type=jnp.float32) + bfc_ref[...])
        out_ref[...] = jax.nn.sigmoid(logits).astype(out_ref.dtype)

    return kernel


# ---------------------------------------------------------------------------
# Host-side packing (runs under jit): pad + gate-block-align + bf16-cast
# ---------------------------------------------------------------------------
def _pack_gate_weight_t(w, rows_pad, h_pad, dtype):
    """PyTorch gate-stacked (3H, Din) weight -> zero-padded transposed
    (rows_pad, 3*h_pad), each gate's columns starting at a 128-lane-aligned offset."""
    three_h, d_in = w.shape
    h = three_h // 3
    out = jnp.zeros((rows_pad, 3 * h_pad), jnp.float32)
    for g in range(3):
        out = out.at[:d_in, g * h_pad:g * h_pad + h].set(w[g * h:(g + 1) * h, :].T)
    return out.astype(dtype)


def _pack_gate_bias(b, h_pad):
    """(3H,) gate-stacked bias -> (1, 3*h_pad), lane-aligned per gate, pads zero."""
    h = b.shape[0] // 3
    out = jnp.zeros((1, 3 * h_pad), jnp.float32)
    for g in range(3):
        out = out.at[0, g * h_pad:g * h_pad + h].set(b[g * h:(g + 1) * h])
    return out


# ---------------------------------------------------------------------------
# Wrapper
# ---------------------------------------------------------------------------
@jax.jit
def gru_model_forward(x_btd, params):
    """Full module forward. x_btd: (B, T, input_size), batch_first like PyTorch."""
    num_layers = len(params["gru"])
    B, T, d_in = x_btd.shape
    H = params["gru"][0]["w_hh"].shape[1]
    O = params["fc"]["w"].shape[0]

    Bp = _round_up(max(B, _SUBLANE), _SUBLANE)
    Dp = _round_up(d_in, _LANE)
    Hp = _round_up(H, _LANE)
    Op = _round_up(O, _LANE)

    # (B,T,D) -> (T,B,D) -> zero-pad to (T,Bp,Dp) -> flatten time into sublanes.
    x_tbd = jnp.transpose(x_btd, (1, 0, 2)).astype(jnp.float32)
    x_pad = jnp.zeros((T, Bp, Dp), jnp.float32).at[:, :B, :d_in].set(x_tbd)
    x_flat = x_pad.reshape(T * Bp, Dp).astype(_MXU_DTYPE)

    args = [x_flat]
    for l in range(num_layers):
        p = params["gru"][l]
        rows_pad = Dp if l == 0 else Hp
        w_ih_p = _pack_gate_weight_t(p["w_ih"], rows_pad, Hp, _MXU_DTYPE)
        w_hh_p = _pack_gate_weight_t(p["w_hh"], Hp, Hp, _MXU_DTYPE)
        # Fold r/z biases (b_i + b_h); gate n keeps b_in here and b_hn separate
        # (b_hn is multiplied by r inside the cell, so it cannot be folded).
        b_fold = jnp.concatenate(
            [p["b_ih"][:2 * H] + p["b_hh"][:2 * H], p["b_ih"][2 * H:]])
        b_i_p = _pack_gate_bias(b_fold, Hp)
        b_hn_p = jnp.zeros((1, Hp), jnp.float32).at[0, :H].set(p["b_hh"][2 * H:])
        args += [w_ih_p, w_hh_p, b_i_p, b_hn_p]

    w_fc_p = (jnp.zeros((Hp, Op), jnp.float32)
              .at[:H, :O].set(params["fc"]["w"].T).astype(_MXU_DTYPE))
    b_fc_p = jnp.zeros((1, Op), jnp.float32).at[0, :O].set(params["fc"]["b"])
    args += [w_fc_p, b_fc_p]

    # Advisory cost estimate for the XLA scheduler.
    flops = 2 * Bp * Hp * Op
    transcendentals = Bp * Op
    for l in range(num_layers):
        rows_pad = Dp if l == 0 else Hp
        flops += 2 * T * Bp * rows_pad * 3 * Hp      # hoisted input matmul
        flops += 2 * T * Bp * Hp * 3 * Hp            # recurrent matmuls
        flops += 10 * T * Bp * 3 * Hp                # gate elementwise
        transcendentals += T * Bp * 3 * Hp
    bytes_accessed = (sum(int(a.size) * a.dtype.itemsize for a in args)
                      + Bp * Op * 4)

    out_padded = pl.pallas_call(
        _make_fused_gru_kernel(num_layers, T, Bp, Hp),
        out_shape=jax.ShapeDtypeStruct((Bp, Op), jnp.float32),
        scratch_shapes=[
            pltpu.VMEM((T * Bp, 3 * Hp), jnp.float32),   # Gi, all timesteps
            pltpu.VMEM((T * Bp, Hp), jnp.float32),       # inter-layer hidden sequence
            pltpu.VMEM((Bp, Hp), jnp.float32),           # recurrent carry h_t
        ],
        compiler_params=pltpu.CompilerParams(
            vmem_limit_bytes=32 * 1024 * 1024),          # safe budget incl. v7x (64 MiB)
        cost_estimate=pl.CostEstimate(
            flops=flops, transcendentals=transcendentals,
            bytes_accessed=bytes_accessed),
    )(*args)

    return out_padded[:B, :O]


# ---------------------------------------------------------------------------
# Deterministic parameter construction (shapes mirror nn.GRU / nn.Linear)
# ---------------------------------------------------------------------------
def init_params(key, input_size, hidden_size, num_layers, output_size):
    k = 1.0 / jnp.sqrt(hidden_size)
    params = {"gru": []}
    for layer in range(num_layers):
        d_in = input_size if layer == 0 else hidden_size
        key, k1, k2, k3, k4 = jax.random.split(key, 5)
        params["gru"].append({
            "w_ih": jax.random.uniform(k1, (3 * hidden_size, d_in), jnp.float32, -k, k),
            "w_hh": jax.random.uniform(k2, (3 * hidden_size, hidden_size), jnp.float32, -k, k),
            "b_ih": jax.random.uniform(k3, (3 * hidden_size,), jnp.float32, -k, k),
            "b_hh": jax.random.uniform(k4, (3 * hidden_size,), jnp.float32, -k, k),
        })
    key, k5, k6 = jax.random.split(key, 3)
    params["fc"] = {
        "w": jax.random.uniform(k5, (output_size, hidden_size), jnp.float32, -k, k),
        "b": jax.random.uniform(k6, (output_size,), jnp.float32, -k, k),
    }
    return params


def _reference_forward(x_btd, params):
    """Pure-JAX f32 reference with PyTorch nn.GRU inference semantics."""
    num_layers = len(params["gru"])
    B = x_btd.shape[0]
    h_seq = jnp.transpose(x_btd, (1, 0, 2)).astype(jnp.float32)   # (T, B, D)
    for l in range(num_layers):
        p = params["gru"][l]
        H = p["w_hh"].shape[1]
        h = jnp.zeros((B, H), jnp.float32)
        outs = []
        for t in range(h_seq.shape[0]):
            gi = h_seq[t] @ p["w_ih"].T + p["b_ih"]
            gh = h @ p["w_hh"].T + p["b_hh"]
            r = jax.nn.sigmoid(gi[:, :H] + gh[:, :H])
            z = jax.nn.sigmoid(gi[:, H:2 * H] + gh[:, H:2 * H])
            n = jnp.tanh(gi[:, 2 * H:] + r * gh[:, 2 * H:])
            h = (1.0 - z) * n + z * h
            outs.append(h)
        h_seq = jnp.stack(outs)
    logits = h_seq[-1] @ params["fc"]["w"].T + params["fc"]["b"]
    return jax.nn.sigmoid(logits)


# ---------------------------------------------------------------------------
if __name__ == "__main__":
    INPUT_SIZE = 16
    HIDDEN_SIZE = 32
    NUM_LAYERS = 2
    OUTPUT_SIZE = 4
    BATCH = 2
    SEQ = 8

    key = jax.random.PRNGKey(0)
    key, xk = jax.random.split(key)
    x = jax.random.normal(xk, (BATCH, SEQ, INPUT_SIZE), dtype=jnp.float32)
    params = init_params(key, INPUT_SIZE, HIDDEN_SIZE, NUM_LAYERS, OUTPUT_SIZE)

    out = gru_model_forward(x, params)
    out = jax.block_until_ready(out)

    assert out.shape == (BATCH, OUTPUT_SIZE)
    assert bool(jnp.all(jnp.isfinite(out)))
    assert bool(jnp.all((out >= 0.0) & (out <= 1.0)))   # sigmoid range

    # Correctness vs pure-JAX f32 reference (kernel uses bf16 MXU operands, f32 accum).
    ref = _reference_forward(x, params)
    max_err = float(jnp.max(jnp.abs(out - ref)))
    assert max_err < 5e-2, f"kernel vs reference max abs err {max_err}"

    print("KERNEL_OK")
</pallas_src>

<mosaic_0001>
module attributes {stable_mosaic.version = 11 : i64} {
  func.func @kernel(%arg0: memref<64x128xbf16, #tpu.memory_space<vmem>>, %arg1: memref<128x384xbf16, #tpu.memory_space<vmem>>, %arg2: memref<128x384xbf16, #tpu.memory_space<vmem>>, %arg3: memref<1x384xf32, #tpu.memory_space<vmem>>, %arg4: memref<1x128xf32, #tpu.memory_space<vmem>>, %arg5: memref<128x384xbf16, #tpu.memory_space<vmem>>, %arg6: memref<128x384xbf16, #tpu.memory_space<vmem>>, %arg7: memref<1x384xf32, #tpu.memory_space<vmem>>, %arg8: memref<1x128xf32, #tpu.memory_space<vmem>>, %arg9: memref<128x128xbf16, #tpu.memory_space<vmem>>, %arg10: memref<1x128xf32, #tpu.memory_space<vmem>>, %arg11: memref<8x128xf32, #tpu.memory_space<vmem>>, %arg12: memref<64x384xf32, #tpu.memory_space<vmem>>, %arg13: memref<64x128xf32, #tpu.memory_space<vmem>>, %arg14: memref<8x128xf32, #tpu.memory_space<vmem>>) attributes {dimension_semantics = [], scalar_prefetch = 0 : i64, scratch_operands = 3 : i64, tpu.core_type = #tpu.core_type<tc>} {
    %c0 = arith.constant 0 : index
    %c0_0 = arith.constant 0 : index
    %0 = vector.load %arg0[%c0, %c0_0] : memref<64x128xbf16, #tpu.memory_space<vmem>>, vector<64x128xbf16>
    %c0_1 = arith.constant 0 : index
    %c0_2 = arith.constant 0 : index
    %1 = vector.load %arg1[%c0_1, %c0_2] : memref<128x384xbf16, #tpu.memory_space<vmem>>, vector<128x384xbf16>
    %cst = arith.constant dense<0.000000e+00> : vector<64x384xf32>
    %2 = tpu.matmul %0, %1, %cst {dimension_numbers = #tpu.dot_dimension_numbers<[1], [0], [0], [1], [0, 0, 1, 1], [], []>} : vector<64x128xbf16>, vector<128x384xbf16>, vector<64x384xf32> -> vector<64x384xf32>
    %c0_3 = arith.constant 0 : index
    %c0_4 = arith.constant 0 : index
    %3 = vector.load %arg3[%c0_3, %c0_4] : memref<1x384xf32, #tpu.memory_space<vmem>>, vector<1x384xf32>
    %4 = vector.broadcast %3 : vector<1x384xf32> to vector<64x384xf32>
    %5 = arith.addf %2, %4 : vector<64x384xf32>
    %c0_5 = arith.constant 0 : index
    %c0_6 = arith.constant 0 : index
    %6 = vector.load %arg12[%c0_5, %c0_6] : memref<64x384xf32, #tpu.memory_space<vmem>>, vector<64x384xf32>
    tpu.vector_store %arg12[%c0_5, %c0_6], %5 {strides = array<i32>} : memref<64x384xf32, #tpu.memory_space<vmem>>, vector<64x384xf32>,
    %cst_7 = arith.constant 0.000000e+00 : f32
    %7 = vector.broadcast %cst_7 : f32 to vector<8x128xf32>
    %c0_8 = arith.constant 0 : index
    %c0_9 = arith.constant 0 : index
    %8 = vector.load %arg14[%c0_8, %c0_9] : memref<8x128xf32, #tpu.memory_space<vmem>>, vector<8x128xf32>
    tpu.vector_store %arg14[%c0_8, %c0_9], %7 {strides = array<i32>} : memref<8x128xf32, #tpu.memory_space<vmem>>, vector<8x128xf32>,
    %c0_i32 = arith.constant 0 : i32
    %c8_i32 = arith.constant 8 : i32
    %9 = arith.muli %c0_i32, %c8_i32 : i32
    %10 = tpu.assume_multiple %9, 8 : i32
    %c0_10 = arith.constant 0 : index
    %c0_11 = arith.constant 0 : index
    %11 = vector.load %arg14[%c0_10, %c0_11] : memref<8x128xf32, #tpu.memory_space<vmem>>, vector<8x128xf32>
    %12 = arith.index_cast %10 : i32 to index
    %c0_12 = arith.constant 0 : index
    %13 = vector.load %arg12[%12, %c0_12] : memref<64x384xf32, #tpu.memory_space<vmem>>, vector<8x384xf32>
    %14 = arith.truncf %11 : vector<8x128xf32> to vector<8x128xbf16>
    %c0_13 = arith.constant 0 : index
    %c0_14 = arith.constant 0 : index
    %15 = vector.load %arg2[%c0_13, %c0_14] : memref<128x384xbf16, #tpu.memory_space<vmem>>, vector<128x384xbf16>
    %cst_15 = arith.constant dense<0.000000e+00> : vector<8x384xf32>
    %16 = tpu.matmul %14, %15, %cst_15 {dimension_numbers = #tpu.dot_dimension_numbers<[1], [0], [0], [1], [0, 0, 1, 1], [], []>} : vector<8x128xbf16>, vector<128x384xbf16>, vector<8x384xf32> -> vector<8x384xf32>
    %17 = vector.extract_strided_slice %13 {offsets = [0, 0], sizes = [8, 128], strides = [1, 1]} : vector<8x384xf32> to vector<8x128xf32>
    %18 = vector.extract_strided_slice %16 {offsets = [0, 0], sizes = [8, 128], strides = [1, 1]} : vector<8x384xf32> to vector<8x128xf32>
    %19 = arith.addf %17, %18 : vector<8x128xf32>
    %20 = arith.negf %19 : vector<8x128xf32>
    %21 = math.exp %20 : vector<8x128xf32>
    %cst_16 = arith.constant 1.000000e+00 : f32
    %22 = vector.broadcast %cst_16 : f32 to vector<8x128xf32>
    %23 = arith.addf %22, %21 : vector<8x128xf32>
    %24 = arith.divf %22, %23 : vector<8x128xf32>
    %25 = vector.extract_strided_slice %13 {offsets = [0, 128], sizes = [8, 128], strides = [1, 1]} : vector<8x384xf32> to vector<8x128xf32>
    %26 = vector.extract_strided_slice %16 {offsets = [0, 128], sizes = [8, 128], strides = [1, 1]} : vector<8x384xf32> to vector<8x128xf32>
    %27 = arith.addf %25, %26 : vector<8x128xf32>
    %28 = arith.negf %27 : vector<8x128xf32>
    %29 = math.exp %28 : vector<8x128xf32>
    %cst_17 = arith.constant 1.000000e+00 : f32
    %30 = vector.broadcast %cst_17 : f32 to vector<8x128xf32>
    %31 = arith.addf %30, %29 : vector<8x128xf32>
    %32 = arith.divf %30, %31 : vector<8x128xf32>
    %33 = vector.extract_strided_slice %13 {offsets = [0, 256], sizes = [8, 128], strides = [1, 1]} : vector<8x384xf32> to vector<8x128xf32>
    %34 = vector.extract_strided_slice %16 {offsets = [0, 256], sizes = [8, 128], strides = [1, 1]} : vector<8x384xf32> to vector<8x128xf32>
    %c0_18 = arith.constant 0 : index
    %c0_19 = arith.constant 0 : index
    %35 = vector.load %arg4[%c0_18, %c0_19] : memref<1x128xf32, #tpu.memory_space<vmem>>, vector<1x128xf32>
    %36 = vector.broadcast %35 : vector<1x128xf32> to vector<8x128xf32>
    %37 = arith.addf %34, %36 : vector<8x128xf32>
    %38 = arith.mulf %24, %37 : vector<8x128xf32>
    %39 = arith.addf %33, %38 : vector<8x128xf32>
    %40 = math.tanh %39 : vector<8x128xf32>
    %cst_20 = arith.constant 1.000000e+00 : f32
    %41 = vector.broadcast %cst_20 : f32 to vector<8x128xf32>
    %42 = arith.subf %41, %32 : vector<8x128xf32>
    %43 = arith.mulf %42, %40 : vector<8x128xf32>
    %44 = arith.mulf %32, %11 : vector<8x128xf32>
    %45 = arith.addf %43, %44 : vector<8x128xf32>
    %c0_21 = arith.constant 0 : index
    %c0_22 = arith.constant 0 : index
    %46 = vector.load %arg14[%c0_21, %c0_22] : memref<8x128xf32, #tpu.memory_space<vmem>>, vector<8x128xf32>
    tpu.vector_store %arg14[%c0_21, %c0_22], %45 {strides = array<i32>} : memref<8x128xf32, #tpu.memory_space<vmem>>, vector<8x128xf32>,
    %47 = arith.index_cast %10 : i32 to index
    %c0_23 = arith.constant 0 : index
    %48 = vector.load %arg13[%47, %c0_23] : memref<64x128xf32, #tpu.memory_space<vmem>>, vector<8x128xf32>
    tpu.vector_store %arg13[%47, %c0_23], %45 {strides = array<i32>} : memref<64x128xf32, #tpu.memory_space<vmem>>, vector<8x128xf32>,
    %c1_i32 = arith.constant 1 : i32
    %c8_i32_24 = arith.constant 8 : i32
    %49 = arith.muli %c1_i32, %c8_i32_24 : i32
    %50 = tpu.assume_multiple %49, 8 : i32
    %c0_25 = arith.constant 0 : index
    %c0_26 = arith.constant 0 : index
    %51 = vector.load %arg14[%c0_25, %c0_26] : memref<8x128xf32, #tpu.memory_space<vmem>>, vector<8x128xf32>
    %52 = arith.index_cast %50 : i32 to index
    %c0_27 = arith.constant 0 : index
    %53 = vector.load %arg12[%52, %c0_27] : memref<64x384xf32, #tpu.memory_space<vmem>>, vector<8x384xf32>
    %54 = arith.truncf %51 : vector<8x128xf32> to vector<8x128xbf16>
    %c0_28 = arith.constant 0 : index
    %c0_29 = arith.constant 0 : index
    %55 = vector.load %arg2[%c0_28, %c0_29] : memref<128x384xbf16, #tpu.memory_space<vmem>>, vector<128x384xbf16>
    %cst_30 = arith.constant dense<0.000000e+00> : vector<8x384xf32>
    %56 = tpu.matmul %54, %55, %cst_30 {dimension_numbers = #tpu.dot_dimension_numbers<[1], [0], [0], [1], [0, 0, 1, 1], [], []>} : vector<8x128xbf16>, vector<128x384xbf16>, vector<8x384xf32> -> vector<8x384xf32>
    %57 = vector.extract_strided_slice %53 {offsets = [0, 0], sizes = [8, 128], strides = [1, 1]} : vector<8x384xf32> to vector<8x128xf32>
    %58 = vector.extract_strided_slice %56 {offsets = [0, 0], sizes = [8, 128], strides = [1, 1]} : vector<8x384xf32> to vector<8x128xf32>
    %59 = arith.addf %57, %58 : vector<8x128xf32>
    %60 = arith.negf %59 : vector<8x128xf32>
    %61 = math.exp %60 : vector<8x128xf32>
    %cst_31 = arith.constant 1.000000e+00 : f32
    %62 = vector.broadcast %cst_31 : f32 to vector<8x128xf32>
    %63 = arith.addf %62, %61 : vector<8x128xf32>
    %64 = arith.divf %62, %63 : vector<8x128xf32>
    %65 = vector.extract_strided_slice %53 {offsets = [0, 128], sizes = [8, 128], strides = [1, 1]} : vector<8x384xf32> to vector<8x128xf32>
    %66 = vector.extract_strided_slice %56 {offsets = [0, 128], sizes = [8, 128], strides = [1, 1]} : vector<8x384xf32> to vector<8x128xf32>
    %67 = arith.addf %65, %66 : vector<8x128xf32>
    %68 = arith.negf %67 : vector<8x128xf32>
    %69 = math.exp %68 : vector<8x128xf32>
    %cst_32 = arith.constant 1.000000e+00 : f32
    %70 = vector.broadcast %cst_32 : f32 to vector<8x128xf32>
    %71 = arith.addf %70, %69 : vector<8x128xf32>
    %72 = arith.divf %70, %71 : vector<8x128xf32>
    %73 = vector.extract_strided_slice %53 {offsets = [0, 256], sizes = [8, 128], strides = [1, 1]} : vector<8x384xf32> to vector<8x128xf32>
    %74 = vector.extract_strided_slice %56 {offsets = [0, 256], sizes = [8, 128], strides = [1, 1]} : vector<8x384xf32> to vector<8x128xf32>
    %c0_33 = arith.constant 0 : index
    %c0_34 = arith.constant 0 : index
    %75 = vector.load %arg4[%c0_33, %c0_34] : memref<1x128xf32, #tpu.memory_space<vmem>>, vector<1x128xf32>
    %76 = vector.broadcast %75 : vector<1x128xf32> to vector<8x128xf32>
    %77 = arith.addf %74, %76 : vector<8x128xf32>
    %78 = arith.mulf %64, %77 : vector<8x128xf32>
    %79 = arith.addf %73, %78 : vector<8x128xf32>
    %80 = math.tanh %79 : vector<8x128xf32>
    %cst_35 = arith.constant 1.000000e+00 : f32
    %81 = vector.broadcast %cst_35 : f32 to vector<8x128xf32>
    %82 = arith.subf %81, %72 : vector<8x128xf32>
    %83 = arith.mulf %82, %80 : vector<8x128xf32>
    %84 = arith.mulf %72, %51 : vector<8x128xf32>
    %85 = arith.addf %83, %84 : vector<8x128xf32>
    %c0_36 = arith.constant 0 : index
    %c0_37 = arith.constant 0 : index
    %86 = vector.load %arg14[%c0_36, %c0_37] : memref<8x128xf32, #tpu.memory_space<vmem>>, vector<8x128xf32>
    tpu.vector_store %arg14[%c0_36, %c0_37], %85 {strides = array<i32>} : memref<8x128xf32, #tpu.memory_space<vmem>>, vector<8x128xf32>,
    %87 = arith.index_cast %50 : i32 to index
    %c0_38 = arith.constant 0 : index
    %88 = vector.load %arg13[%87, %c0_38] : memref<64x128xf32, #tpu.memory_space<vmem>>, vector<8x128xf32>
    tpu.vector_store %arg13[%87, %c0_38], %85 {strides = array<i32>} : memref<64x128xf32, #tpu.memory_space<vmem>>, vector<8x128xf32>,
    %c2_i32 = arith.constant 2 : i32
    %c8_i32_39 = arith.constant 8 : i32
    %89 = arith.muli %c2_i32, %c8_i32_39 : i32
    %90 = tpu.assume_multiple %89, 8 : i32
    %c0_40 = arith.constant 0 : index
    %c0_41 = arith.constant 0 : index
    %91 = vector.load %arg14[%c0_40, %c0_41] : memref<8x128xf32, #tpu.memory_space<vmem>>, vector<8x128xf32>
    %92 = arith.index_cast %90 : i32 to index
    %c0_42 = arith.constant 0 : index
    %93 = vector.load %arg12[%92, %c0_42] : memref<64x384xf32, #tpu.memory_space<vmem>>, vector<8x384xf32>
    %94 = arith.truncf %91 : vector<8x128xf32> to vector<8x128xbf16>
    %c0_43 = arith.constant 0 : index
    %c0_44 = arith.constant 0 : index
    %95 = vector.load %arg2[%c0_43, %c0_44] : memref<128x384xbf16, #tpu.memory_space<vmem>>, vector<128x384xbf16>
    %cst_45 = arith.constant dense<0.000000e+00> : vector<8x384xf32>
    %96 = tpu.matmul %94, %95, %cst_45 {dimension_numbers = #tpu.dot_dimension_numbers<[1], [0], [0], [1], [0, 0, 1, 1], [], []>} : vector<8x128xbf16>, vector<128x384xbf16>, vector<8x384xf32> -> vector<8x384xf32>
    %97 = vector.extract_strided_slice %93 {offsets = [0, 0], sizes = [8, 128], strides = [1, 1]} : vector<8x384xf32> to vector<8x128xf32>
    %98 = vector.extract_strided_slice %96 {offsets = [0, 0], sizes = [8, 128], strides = [1, 1]} : vector<8x384xf32> to vector<8x128xf32>
    %99 = arith.addf %97, %98 : vector<8x128xf32>
    %100 = arith.negf %99 : vector<8x128xf32>
    %101 = math.exp %100 : vector<8x128xf32>
    %cst_46 = arith.constant 1.000000e+00 : f32
    %102 = vector.broadcast %cst_46 : f32 to vector<8x128xf32>
    %103 = arith.addf %102, %101 : vector<8x128xf32>
    %104 = arith.divf %102, %103 : vector<8x128xf32>
    %105 = vector.extract_strided_slice %93 {offsets = [0, 128], sizes = [8, 128], strides = [1, 1]} : vector<8x384xf32> to vector<8x128xf32>
    %106 = vector.extract_strided_slice %96 {offsets = [0, 128], sizes = [8, 128], strides = [1, 1]} : vector<8x384xf32> to vector<8x128xf32>
    %107 = arith.addf %105, %106 : vector<8x128xf32>
    %108 = arith.negf %107 : vector<8x128xf32>
    %109 = math.exp %108 : vector<8x128xf32>
    %cst_47 = arith.constant 1.000000e+00 : f32
    %110 = vector.broadcast %cst_47 : f32 to vector<8x128xf32>
    %111 = arith.addf %110, %109 : vector<8x128xf32>
    %112 = arith.divf %110, %111 : vector<8x128xf32>
    %113 = vector.extract_strided_slice %93 {offsets = [0, 256], sizes = [8, 128], strides = [1, 1]} : vector<8x384xf32> to vector<8x128xf32>
    %114 = vector.extract_strided_slice %96 {offsets = [0, 256], sizes = [8, 128], strides = [1, 1]} : vector<8x384xf32> to vector<8x128xf32>
    %c0_48 = arith.constant 0 : index
    %c0_49 = arith.constant 0 : index
    %115 = vector.load %arg4[%c0_48, %c0_49] : memref<1x128xf32, #tpu.memory_space<vmem>>, vector<1x128xf32>
    %116 = vector.broadcast %115 : vector<1x128xf32> to vector<8x128xf32>
    %117 = arith.addf %114, %116 : vector<8x128xf32>
    %118 = arith.mulf %104, %117 : vector<8x128xf32>
    %119 = arith.addf %113, %118 : vector<8x128xf32>
    %120 = math.tanh %119 : vector<8x128xf32>
    %cst_50 = arith.constant 1.000000e+00 : f32
    %121 = vector.broadcast %cst_50 : f32 to vector<8x128xf32>
    %122 = arith.subf %121, %112 : vector<8x128xf32>
    %123 = arith.mulf %122, %120 : vector<8x128xf32>
    %124 = arith.mulf %112, %91 : vector<8x128xf32>
    %125 = arith.addf %123, %124 : vector<8x128xf32>
    %c0_51 = arith.constant 0 : index
    %c0_52 = arith.constant 0 : index
    %126 = vector.load %arg14[%c0_51, %c0_52] : memref<8x128xf32, #tpu.memory_space<vmem>>, vector<8x128xf32>
    tpu.vector_store %arg14[%c0_51, %c0_52], %125 {strides = array<i32>} : memref<8x128xf32, #tpu.memory_space<vmem>>, vector<8x128xf32>,
    %127 = arith.index_cast %90 : i32 to index
    %c0_53 = arith.constant 0 : index
    %128 = vector.load %arg13[%127, %c0_53] : memref<64x128xf32, #tpu.memory_space<vmem>>, vector<8x128xf32>
    tpu.vector_store %arg13[%127, %c0_53], %125 {strides = array<i32>} : memref<64x128xf32, #tpu.memory_space<vmem>>, vector<8x128xf32>,
    %c3_i32 = arith.constant 3 : i32
    %c8_i32_54 = arith.constant 8 : i32
    %129 = arith.muli %c3_i32, %c8_i32_54 : i32
    %130 = tpu.assume_multiple %129, 8 : i32
    %c0_55 = arith.constant 0 : index
    %c0_56 = arith.constant 0 : index
    %131 = vector.load %arg14[%c0_55, %c0_56] : memref<8x128xf32, #tpu.memory_space<vmem>>, vector<8x128xf32>
    %132 = arith.index_cast %130 : i32 to index
    %c0_57 = arith.constant 0 : index
    %133 = vector.load %arg12[%132, %c0_57] : memref<64x384xf32, #tpu.memory_space<vmem>>, vector<8x384xf32>
    %134 = arith.truncf %131 : vector<8x128xf32> to vector<8x128xbf16>
    %c0_58 = arith.constant 0 : index
    %c0_59 = arith.constant 0 : index
    %135 = vector.load %arg2[%c0_58, %c0_59] : memref<128x384xbf16, #tpu.memory_space<vmem>>, vector<128x384xbf16>
    %cst_60 = arith.constant dense<0.000000e+00> : vector<8x384xf32>
    %136 = tpu.matmul %134, %135, %cst_60 {dimension_numbers = #tpu.dot_dimension_numbers<[1], [0], [0], [1], [0, 0, 1, 1], [], []>} : vector<8x128xbf16>, vector<128x384xbf16>, vector<8x384xf32> -> vector<8x384xf32>
    %137 = vector.extract_strided_slice %133 {offsets = [0, 0], sizes = [8, 128], strides = [1, 1]} : vector<8x384xf32> to vector<8x128xf32>
    %138 = vector.extract_strided_slice %136 {offsets = [0, 0], sizes = [8, 128], strides = [1, 1]} : vector<8x384xf32> to vector<8x128xf32>
    %139 = arith.addf %137, %138 : vector<8x128xf32>
    %140 = arith.negf %139 : vector<8x128xf32>
    %141 = math.exp %140 : vector<8x128xf32>
    %cst_61 = arith.constant 1.000000e+00 : f32
    %142 = vector.broadcast %cst_61 : f32 to vector<8x128xf32>
    %143 = arith.addf %142, %141 : vector<8x128xf32>
    %144 = arith.divf %142, %143 : vector<8x128xf32>
    %145 = vector.extract_strided_slice %133 {offsets = [0, 128], sizes = [8, 128], strides = [1, 1]} : vector<8x384xf32> to vector<8x128xf32>
    %146 = vector.extract_strided_slice %136 {offsets = [0, 128], sizes = [8, 128], strides = [1, 1]} : vector<8x384xf32> to vector<8x128xf32>
    %147 = arith.addf %145, %146 : vector<8x128xf32>
    %148 = arith.negf %147 : vector<8x128xf32>
    %149 = math.exp %148 : vector<8x128xf32>
    %cst_62 = arith.constant 1.000000e+00 : f32
    %150 = vector.broadcast %cst_62 : f32 to vector<8x128xf32>
    %151 = arith.addf %150, %149 : vector<8x128xf32>
    %152 = arith.divf %150, %151 : vector<8x128xf32>
    %153 = vector.extract_strided_slice %133 {offsets = [0, 256], sizes = [8, 128], strides = [1, 1]} : vector<8x384xf32> to vector<8x128xf32>
    %154 = vector.extract_strided_slice %136 {offsets = [0, 256], sizes = [8, 128], strides = [1, 1]} : vector<8x384xf32> to vector<8x128xf32>
    %c0_63 = arith.constant 0 : index
    %c0_64 = arith.constant 0 : index
    %155 = vector.load %arg4[%c0_63, %c0_64] : memref<1x128xf32, #tpu.memory_space<vmem>>, vector<1x128xf32>
    %156 = vector.broadcast %155 : vector<1x128xf32> to vector<8x128xf32>
    %157 = arith.addf %154, %156 : vector<8x128xf32>
    %158 = arith.mulf %144, %157 : vector<8x128xf32>
    %159 = arith.addf %153, %158 : vector<8x128xf32>
    %160 = math.tanh %159 : vector<8x128xf32>
    %cst_65 = arith.constant 1.000000e+00 : f32
    %161 = vector.broadcast %cst_65 : f32 to vector<8x128xf32>
    %162 = arith.subf %161, %152 : vector<8x128xf32>
    %163 = arith.mulf %162, %160 : vector<8x128xf32>
    %164 = arith.mulf %152, %131 : vector<8x128xf32>
    %165 = arith.addf %163, %164 : vector<8x128xf32>
    %c0_66 = arith.constant 0 : index
    %c0_67 = arith.constant 0 : index
    %166 = vector.load %arg14[%c0_66, %c0_67] : memref<8x128xf32, #tpu.memory_space<vmem>>, vector<8x128xf32>
    tpu.vector_store %arg14[%c0_66, %c0_67], %165 {strides = array<i32>} : memref<8x128xf32, #tpu.memory_space<vmem>>, vector<8x128xf32>,
    %167 = arith.index_cast %130 : i32 to index
    %c0_68 = arith.constant 0 : index
    %168 = vector.load %arg13[%167, %c0_68] : memref<64x128xf32, #tpu.memory_space<vmem>>, vector<8x128xf32>
    tpu.vector_store %arg13[%167, %c0_68], %165 {strides = array<i32>} : memref<64x128xf32, #tpu.memory_space<vmem>>, vector<8x128xf32>,
    %c4_i32 = arith.constant 4 : i32
    %c8_i32_69 = arith.constant 8 : i32
    %169 = arith.muli %c4_i32, %c8_i32_69 : i32
    %170 = tpu.assume_multiple %169, 8 : i32
    %c0_70 = arith.constant 0 : index
    %c0_71 = arith.constant 0 : index
    %171 = vector.load %arg14[%c0_70, %c0_71] : memref<8x128xf32, #tpu.memory_space<vmem>>, vector<8x128xf32>
    %172 = arith.index_cast %170 : i32 to index
    %c0_72 = arith.constant 0 : index
    %173 = vector.load %arg12[%172, %c0_72] : memref<64x384xf32, #tpu.memory_space<vmem>>, vector<8x384xf32>
    %174 = arith.truncf %171 : vector<8x128xf32> to vector<8x128xbf16>
    %c0_73 = arith.constant 0 : index
    %c0_74 = arith.constant 0 : index
    %175 = vector.load %arg2[%c0_73, %c0_74] : memref<128x384xbf16, #tpu.memory_space<vmem>>, vector<128x384xbf16>
    %cst_75 = arith.constant dense<0.000000e+00> : vector<8x384xf32>
    %176 = tpu.matmul %174, %175, %cst_75 {dimension_numbers = #tpu.dot_dimension_numbers<[1], [0], [0], [1], [0, 0, 1, 1], [], []>} : vector<8x128xbf16>, vector<128x384xbf16>, vector<8x384xf32> -> vector<8x384xf32>
    %177 = vector.extract_strided_slice %173 {offsets = [0, 0], sizes = [8, 128], strides = [1, 1]} : vector<8x384xf32> to vector<8x128xf32>
    %178 = vector.extract_strided_slice %176 {offsets = [0, 0], sizes = [8, 128], strides = [1, 1]} : vector<8x384xf32> to vector<8x128xf32>
    %179 = arith.addf %177, %178 : vector<8x128xf32>
    %180 = arith.negf %179 : vector<8x128xf32>
    %181 = math.exp %180 : vector<8x128xf32>
    %cst_76 = arith.constant 1.000000e+00 : f32
    %182 = vector.broadcast %cst_76 : f32 to vector<8x128xf32>
    %183 = arith.addf %182, %181 : vector<8x128xf32>
    %184 = arith.divf %182, %183 : vector<8x128xf32>
    %185 = vector.extract_strided_slice %173 {offsets = [0, 128], sizes = [8, 128], strides = [1, 1]} : vector<8x384xf32> to vector<8x128xf32>
    %186 = vector.extract_strided_slice %176 {offsets = [0, 128], sizes = [8, 128], strides = [1, 1]} : vector<8x384xf32> to vector<8x128xf32>
    %187 = arith.addf %185, %186 : vector<8x128xf32>
    %188 = arith.negf %187 : vector<8x128xf32>
    %189 = math.exp %188 : vector<8x128xf32>
    %cst_77 = arith.constant 1.000000e+00 : f32
    %190 = vector.broadcast %cst_77 : f32 to vector<8x128xf32>
    %191 = arith.addf %190, %189 : vector<8x128xf32>
    %192 = arith.divf %190, %191 : vector<8x128xf32>
    %193 = vector.extract_strided_slice %173 {offsets = [0, 256], sizes = [8, 128], strides = [1, 1]} : vector<8x384xf32> to vector<8x128xf32>
    %194 = vector.extract_strided_slice %176 {offsets = [0, 256], sizes = [8, 128], strides = [1, 1]} : vector<8x384xf32> to vector<8x128xf32>
    %c0_78 = arith.constant 0 : index
    %c0_79 = arith.constant 0 : index
    %195 = vector.load %arg4[%c0_78, %c0_79] : memref<1x128xf32, #tpu.memory_space<vmem>>, vector<1x128xf32>
    %196 = vector.broadcast %195 : vector<1x128xf32> to vector<8x128xf32>
    %197 = arith.addf %194, %196 : vector<8x128xf32>
    %198 = arith.mulf %184, %197 : vector<8x128xf32>
    %199 = arith.addf %193, %198 : vector<8x128xf32>
    %200 = math.tanh %199 : vector<8x128xf32>
    %cst_80 = arith.constant 1.000000e+00 : f32
    %201 = vector.broadcast %cst_80 : f32 to vector<8x128xf32>
    %202 = arith.subf %201, %192 : vector<8x128xf32>
    %203 = arith.mulf %202, %200 : vector<8x128xf32>
    %204 = arith.mulf %192, %171 : vector<8x128xf32>
    %205 = arith.addf %203, %204 : vector<8x128xf32>
    %c0_81 = arith.constant 0 : index
    %c0_82 = arith.constant 0 : index
    %206 = vector.load %arg14[%c0_81, %c0_82] : memref<8x128xf32, #tpu.memory_space<vmem>>, vector<8x128xf32>
    tpu.vector_store %arg14[%c0_81, %c0_82], %205 {strides = array<i32>} : memref<8x128xf32, #tpu.memory_space<vmem>>, vector<8x128xf32>,
    %207 = arith.index_cast %170 : i32 to index
    %c0_83 = arith.constant 0 : index
    %208 = vector.load %arg13[%207, %c0_83] : memref<64x128xf32, #tpu.memory_space<vmem>>, vector<8x128xf32>
    tpu.vector_store %arg13[%207, %c0_83], %205 {strides = array<i32>} : memref<64x128xf32, #tpu.memory_space<vmem>>, vector<8x128xf32>,
    %c5_i32 = arith.constant 5 : i32
    %c8_i32_84 = arith.constant 8 : i32
    %209 = arith.muli %c5_i32, %c8_i32_84 : i32
    %210 = tpu.assume_multiple %209, 8 : i32
    %c0_85 = arith.constant 0 : index
    %c0_86 = arith.constant 0 : index
    %211 = vector.load %arg14[%c0_85, %c0_86] : memref<8x128xf32, #tpu.memory_space<vmem>>, vector<8x128xf32>
    %212 = arith.index_cast %210 : i32 to index
    %c0_87 = arith.constant 0 : index
    %213 = vector.load %arg12[%212, %c0_87] : memref<64x384xf32, #tpu.memory_space<vmem>>, vector<8x384xf32>
    %214 = arith.truncf %211 : vector<8x128xf32> to vector<8x128xbf16>
    %c0_88 = arith.constant 0 : index
    %c0_89 = arith.constant 0 : index
    %215 = vector.load %arg2[%c0_88, %c0_89] : memref<128x384xbf16, #tpu.memory_space<vmem>>, vector<128x384xbf16>
    %cst_90 = arith.constant dense<0.000000e+00> : vector<8x384xf32>
    %216 = tpu.matmul %214, %215, %cst_90 {dimension_numbers = #tpu.dot_dimension_numbers<[1], [0], [0], [1], [0, 0, 1, 1], [], []>} : vector<8x128xbf16>, vector<128x384xbf16>, vector<8x384xf32> -> vector<8x384xf32>
    %217 = vector.extract_strided_slice %213 {offsets = [0, 0], sizes = [8, 128], strides = [1, 1]} : vector<8x384xf32> to vector<8x128xf32>
    %218 = vector.extract_strided_slice %216 {offsets = [0, 0], sizes = [8, 128], strides = [1, 1]} : vector<8x384xf32> to vector<8x128xf32>
    %219 = arith.addf %217, %218 : vector<8x128xf32>
    %220 = arith.negf %219 : vector<8x128xf32>
    %221 = math.exp %220 : vector<8x128xf32>
    %cst_91 = arith.constant 1.000000e+00 : f32
    %222 = vector.broadcast %cst_91 : f32 to vector<8x128xf32>
    %223 = arith.addf %222, %221 : vector<8x128xf32>
    %224 = arith.divf %222, %223 : vector<8x128xf32>
    %225 = vector.extract_strided_slice %213 {offsets = [0, 128], sizes = [8, 128], strides = [1, 1]} : vector<8x384xf32> to vector<8x128xf32>
    %226 = vector.extract_strided_slice %216 {offsets = [0, 128], sizes = [8, 128], strides = [1, 1]} : vector<8x384xf32> to vector<8x128xf32>
    %227 = arith.addf %225, %226 : vector<8x128xf32>
    %228 = arith.negf %227 : vector<8x128xf32>
    %229 = math.exp %228 : vector<8x128xf32>
    %cst_92 = arith.constant 1.000000e+00 : f32
    %230 = vector.broadcast %cst_92 : f32 to vector<8x128xf32>
    %231 = arith.addf %230, %229 : vector<8x128xf32>
    %232 = arith.divf %230, %231 : vector<8x128xf32>
    %233 = vector.extract_strided_slice %213 {offsets = [0, 256], sizes = [8, 128], strides = [1, 1]} : vector<8x384xf32> to vector<8x128xf32>
    %234 = vector.extract_strided_slice %216 {offsets = [0, 256], sizes = [8, 128], strides = [1, 1]} : vector<8x384xf32> to vector<8x128xf32>
    %c0_93 = arith.constant 0 : index
    %c0_94 = arith.constant 0 : index
    %235 = vector.load %arg4[%c0_93, %c0_94] : memref<1x128xf32, #tpu.memory_space<vmem>>, vector<1x128xf32>
    %236 = vector.broadcast %235 : vector<1x128xf32> to vector<8x128xf32>
    %237 = arith.addf %234, %236 : vector<8x128xf32>
    %238 = arith.mulf %224, %237 : vector<8x128xf32>
    %239 = arith.addf %233, %238 : vector<8x128xf32>
    %240 = math.tanh %239 : vector<8x128xf32>
    %cst_95 = arith.constant 1.000000e+00 : f32
    %241 = vector.broadcast %cst_95 : f32 to vector<8x128xf32>
    %242 = arith.subf %241, %232 : vector<8x128xf32>
    %243 = arith.mulf %242, %240 : vector<8x128xf32>
    %244 = arith.mulf %232, %211 : vector<8x128xf32>
    %245 = arith.addf %243, %244 : vector<8x128xf32>
    %c0_96 = arith.constant 0 : index
    %c0_97 = arith.constant 0 : index
    %246 = vector.load %arg14[%c0_96, %c0_97] : memref<8x128xf32, #tpu.memory_space<vmem>>, vector<8x128xf32>
    tpu.vector_store %arg14[%c0_96, %c0_97], %245 {strides = array<i32>} : memref<8x128xf32, #tpu.memory_space<vmem>>, vector<8x128xf32>,
    %247 = arith.index_cast %210 : i32 to index
    %c0_98 = arith.constant 0 : index
    %248 = vector.load %arg13[%247, %c0_98] : memref<64x128xf32, #tpu.memory_space<vmem>>, vector<8x128xf32>
    tpu.vector_store %arg13[%247, %c0_98], %245 {strides = array<i32>} : memref<64x128xf32, #tpu.memory_space<vmem>>, vector<8x128xf32>,
    %c6_i32 = arith.constant 6 : i32
    %c8_i32_99 = arith.constant 8 : i32
    %249 = arith.muli %c6_i32, %c8_i32_99 : i32
    %250 = tpu.assume_multiple %249, 8 : i32
    %c0_100 = arith.constant 0 : index
    %c0_101 = arith.constant 0 : index
    %251 = vector.load %arg14[%c0_100, %c0_101] : memref<8x128xf32, #tpu.memory_space<vmem>>, vector<8x128xf32>
    %252 = arith.index_cast %250 : i32 to index
    %c0_102 = arith.constant 0 : index
    %253 = vector.load %arg12[%252, %c0_102] : memref<64x384xf32, #tpu.memory_space<vmem>>, vector<8x384xf32>
    %254 = arith.truncf %251 : vector<8x128xf32> to vector<8x128xbf16>
    %c0_103 = arith.constant 0 : index
    %c0_104 = arith.constant 0 : index
    %255 = vector.load %arg2[%c0_103, %c0_104] : memref<128x384xbf16, #tpu.memory_space<vmem>>, vector<128x384xbf16>
    %cst_105 = arith.constant dense<0.000000e+00> : vector<8x384xf32>
    %256 = tpu.matmul %254, %255, %cst_105 {dimension_numbers = #tpu.dot_dimension_numbers<[1], [0], [0], [1], [0, 0, 1, 1], [], []>} : vector<8x128xbf16>, vector<128x384xbf16>, vector<8x384xf32> -> vector<8x384xf32>
    %257 = vector.extract_strided_slice %253 {offsets = [0, 0], sizes = [8, 128], strides = [1, 1]} : vector<8x384xf32> to vector<8x128xf32>
    %258 = vector.extract_strided_slice %256 {offsets = [0, 0], sizes = [8, 128], strides = [1, 1]} : vector<8x384xf32> to vector<8x128xf32>
    %259 = arith.addf %257, %258 : vector<8x128xf32>
    %260 = arith.negf %259 : vector<8x128xf32>
    %261 = math.exp %260 : vector<8x128xf32>
    %cst_106 = arith.constant 1.000000e+00 : f32
    %262 = vector.broadcast %cst_106 : f32 to vector<8x128xf32>
    %263 = arith.addf %262, %261 : vector<8x128xf32>
    %264 = arith.divf %262, %263 : vector<8x128xf32>
    %265 = vector.extract_strided_slice %253 {offsets = [0, 128], sizes = [8, 128], strides = [1, 1]} : vector<8x384xf32> to vector<8x128xf32>
    %266 = vector.extract_strided_slice %256 {offsets = [0, 128], sizes = [8, 128], strides = [1, 1]} : vector<8x384xf32> to vector<8x128xf32>
    %267 = arith.addf %265, %266 : vector<8x128xf32>
    %268 = arith.negf %267 : vector<8x128xf32>
    %269 = math.exp %268 : vector<8x128xf32>
    %cst_107 = arith.constant 1.000000e+00 : f32
    %270 = vector.broadcast %cst_107 : f32 to vector<8x128xf32>
    %271 = arith.addf %270, %269 : vector<8x128xf32>
    %272 = arith.divf %270, %271 : vector<8x128xf32>
    %273 = vector.extract_strided_slice %253 {offsets = [0, 256], sizes = [8, 128], strides = [1, 1]} : vector<8x384xf32> to vector<8x128xf32>
    %274 = vector.extract_strided_slice %256 {offsets = [0, 256], sizes = [8, 128], strides = [1, 1]} : vector<8x384xf32> to vector<8x128xf32>
    %c0_108 = arith.constant 0 : index
    %c0_109 = arith.constant 0 : index
    %275 = vector.load %arg4[%c0_108, %c0_109] : memref<1x128xf32, #tpu.memory_space<vmem>>, vector<1x128xf32>
    %276 = vector.broadcast %275 : vector<1x128xf32> to vector<8x128xf32>
    %277 = arith.addf %274, %276 : vector<8x128xf32>
    %278 = arith.mulf %264, %277 : vector<8x128xf32>
    %279 = arith.addf %273, %278 : vector<8x128xf32>
    %280 = math.tanh %279 : vector<8x128xf32>
    %cst_110 = arith.constant 1.000000e+00 : f32
    %281 = vector.broadcast %cst_110 : f32 to vector<8x128xf32>
    %282 = arith.subf %281, %272 : vector<8x128xf32>
    %283 = arith.mulf %282, %280 : vector<8x128xf32>
    %284 = arith.mulf %272, %251 : vector<8x128xf32>
    %285 = arith.addf %283, %284 : vector<8x128xf32>
    %c0_111 = arith.constant 0 : index
    %c0_112 = arith.constant 0 : index
    %286 = vector.load %arg14[%c0_111, %c0_112] : memref<8x128xf32, #tpu.memory_space<vmem>>, vector<8x128xf32>
    tpu.vector_store %arg14[%c0_111, %c0_112], %285 {strides = array<i32>} : memref<8x128xf32, #tpu.memory_space<vmem>>, vector<8x128xf32>,
    %287 = arith.index_cast %250 : i32 to index
    %c0_113 = arith.constant 0 : index
    %288 = vector.load %arg13[%287, %c0_113] : memref<64x128xf32, #tpu.memory_space<vmem>>, vector<8x128xf32>
    tpu.vector_store %arg13[%287, %c0_113], %285 {strides = array<i32>} : memref<64x128xf32, #tpu.memory_space<vmem>>, vector<8x128xf32>,
    %c7_i32 = arith.constant 7 : i32
    %c8_i32_114 = arith.constant 8 : i32
    %289 = arith.muli %c7_i32, %c8_i32_114 : i32
    %290 = tpu.assume_multiple %289, 8 : i32
    %c0_115 = arith.constant 0 : index
    %c0_116 = arith.constant 0 : index
    %291 = vector.load %arg14[%c0_115, %c0_116] : memref<8x128xf32, #tpu.memory_space<vmem>>, vector<8x128xf32>
    %292 = arith.index_cast %290 : i32 to index
    %c0_117 = arith.constant 0 : index
    %293 = vector.load %arg12[%292, %c0_117] : memref<64x384xf32, #tpu.memory_space<vmem>>, vector<8x384xf32>
    %294 = arith.truncf %291 : vector<8x128xf32> to vector<8x128xbf16>
    %c0_118 = arith.constant 0 : index
    %c0_119 = arith.constant 0 : index
    %295 = vector.load %arg2[%c0_118, %c0_119] : memref<128x384xbf16, #tpu.memory_space<vmem>>, vector<128x384xbf16>
    %cst_120 = arith.constant dense<0.000000e+00> : vector<8x384xf32>
    %296 = tpu.matmul %294, %295, %cst_120 {dimension_numbers = #tpu.dot_dimension_numbers<[1], [0], [0], [1], [0, 0, 1, 1], [], []>} : vector<8x128xbf16>, vector<128x384xbf16>, vector<8x384xf32> -> vector<8x384xf32>
    %297 = vector.extract_strided_slice %293 {offsets = [0, 0], sizes = [8, 128], strides = [1, 1]} : vector<8x384xf32> to vector<8x128xf32>
    %298 = vector.extract_strided_slice %296 {offsets = [0, 0], sizes = [8, 128], strides = [1, 1]} : vector<8x384xf32> to vector<8x128xf32>
    %299 = arith.addf %297, %298 : vector<8x128xf32>
    %300 = arith.negf %299 : vector<8x128xf32>
    %301 = math.exp %300 : vector<8x128xf32>
    %cst_121 = arith.constant 1.000000e+00 : f32
    %302 = vector.broadcast %cst_121 : f32 to vector<8x128xf32>
    %303 = arith.addf %302, %301 : vector<8x128xf32>
    %304 = arith.divf %302, %303 : vector<8x128xf32>
    %305 = vector.extract_strided_slice %293 {offsets = [0, 128], sizes = [8, 128], strides = [1, 1]} : vector<8x384xf32> to vector<8x128xf32>
    %306 = vector.extract_strided_slice %296 {offsets = [0, 128], sizes = [8, 128], strides = [1, 1]} : vector<8x384xf32> to vector<8x128xf32>
    %307 = arith.addf %305, %306 : vector<8x128xf32>
    %308 = arith.negf %307 : vector<8x128xf32>
    %309 = math.exp %308 : vector<8x128xf32>
    %cst_122 = arith.constant 1.000000e+00 : f32
    %310 = vector.broadcast %cst_122 : f32 to vector<8x128xf32>
    %311 = arith.addf %310, %309 : vector<8x128xf32>
    %312 = arith.divf %310, %311 : vector<8x128xf32>
    %313 = vector.extract_strided_slice %293 {offsets = [0, 256], sizes = [8, 128], strides = [1, 1]} : vector<8x384xf32> to vector<8x128xf32>
    %314 = vector.extract_strided_slice %296 {offsets = [0, 256], sizes = [8, 128], strides = [1, 1]} : vector<8x384xf32> to vector<8x128xf32>
    %c0_123 = arith.constant 0 : index
    %c0_124 = arith.constant 0 : index
    %315 = vector.load %arg4[%c0_123, %c0_124] : memref<1x128xf32, #tpu.memory_space<vmem>>, vector<1x128xf32>
    %316 = vector.broadcast %315 : vector<1x128xf32> to vector<8x128xf32>
    %317 = arith.addf %314, %316 : vector<8x128xf32>
    %318 = arith.mulf %304, %317 : vector<8x128xf32>
    %319 = arith.addf %313, %318 : vector<8x128xf32>
    %320 = math.tanh %319 : vector<8x128xf32>
    %cst_125 = arith.constant 1.000000e+00 : f32
    %321 = vector.broadcast %cst_125 : f32 to vector<8x128xf32>
    %322 = arith.subf %321, %312 : vector<8x128xf32>
    %323 = arith.mulf %322, %320 : vector<8x128xf32>
    %324 = arith.mulf %312, %291 : vector<8x128xf32>
    %325 = arith.addf %323, %324 : vector<8x128xf32>
    %c0_126 = arith.constant 0 : index
    %c0_127 = arith.constant 0 : index
    %326 = vector.load %arg14[%c0_126, %c0_127] : memref<8x128xf32, #tpu.memory_space<vmem>>, vector<8x128xf32>
    tpu.vector_store %arg14[%c0_126, %c0_127], %325 {strides = array<i32>} : memref<8x128xf32, #tpu.memory_space<vmem>>, vector<8x128xf32>,
    %327 = arith.index_cast %290 : i32 to index
    %c0_128 = arith.constant 0 : index
    %328 = vector.load %arg13[%327, %c0_128] : memref<64x128xf32, #tpu.memory_space<vmem>>, vector<8x128xf32>
    tpu.vector_store %arg13[%327, %c0_128], %325 {strides = array<i32>} : memref<64x128xf32, #tpu.memory_space<vmem>>, vector<8x128xf32>,
    %c8_i32_129 = arith.constant 8 : i32
    %c0_130 = arith.constant 0 : index
    %c0_131 = arith.constant 0 : index
    %329 = vector.load %arg13[%c0_130, %c0_131] : memref<64x128xf32, #tpu.memory_space<vmem>>, vector<64x128xf32>
    %330 = arith.truncf %329 : vector<64x128xf32> to vector<64x128xbf16>
    %c0_132 = arith.constant 0 : index
    %c0_133 = arith.constant 0 : index
    %331 = vector.load %arg5[%c0_132, %c0_133] : memref<128x384xbf16, #tpu.memory_space<vmem>>, vector<128x384xbf16>
    %cst_134 = arith.constant dense<0.000000e+00> : vector<64x384xf32>
    %332 = tpu.matmul %330, %331, %cst_134 {dimension_numbers = #tpu.dot_dimension_numbers<[1], [0], [0], [1], [0, 0, 1, 1], [], []>} : vector<64x128xbf16>, vector<128x384xbf16>, vector<64x384xf32> -> vector<64x384xf32>
    %c0_135 = arith.constant 0 : index
    %c0_136 = arith.constant 0 : index
    %333 = vector.load %arg7[%c0_135, %c0_136] : memref<1x384xf32, #tpu.memory_space<vmem>>, vector<1x384xf32>
    %334 = vector.broadcast %333 : vector<1x384xf32> to vector<64x384xf32>
    %335 = arith.addf %332, %334 : vector<64x384xf32>
    %c0_137 = arith.constant 0 : index
    %c0_138 = arith.constant 0 : index
    %336 = vector.load %arg12[%c0_137, %c0_138] : memref<64x384xf32, #tpu.memory_space<vmem>>, vector<64x384xf32>
    tpu.vector_store %arg12[%c0_137, %c0_138], %335 {strides = array<i32>} : memref<64x384xf32, #tpu.memory_space<vmem>>, vector<64x384xf32>,
    %cst_139 = arith.constant 0.000000e+00 : f32
    %337 = vector.broadcast %cst_139 : f32 to vector<8x128xf32>
    %c0_140 = arith.constant 0 : index
    %c0_141 = arith.constant 0 : index
    %338 = vector.load %arg14[%c0_140, %c0_141] : memref<8x128xf32, #tpu.memory_space<vmem>>, vector<8x128xf32>
    tpu.vector_store %arg14[%c0_140, %c0_141], %337 {strides = array<i32>} : memref<8x128xf32, #tpu.memory_space<vmem>>, vector<8x128xf32>,
    %c0_i32_142 = arith.constant 0 : i32
    %c8_i32_143 = arith.constant 8 : i32
    %339 = arith.muli %c0_i32_142, %c8_i32_143 : i32
    %340 = tpu.assume_multiple %339, 8 : i32
    %c0_144 = arith.constant 0 : index
    %c0_145 = arith.constant 0 : index
    %341 = vector.load %arg14[%c0_144, %c0_145] : memref<8x128xf32, #tpu.memory_space<vmem>>, vector<8x128xf32>
    %342 = arith.index_cast %340 : i32 to index
    %c0_146 = arith.constant 0 : index
    %343 = vector.load %arg12[%342, %c0_146] : memref<64x384xf32, #tpu.memory_space<vmem>>, vector<8x384xf32>
    %344 = arith.truncf %341 : vector<8x128xf32> to vector<8x128xbf16>
    %c0_147 = arith.constant 0 : index
    %c0_148 = arith.constant 0 : index
    %345 = vector.load %arg6[%c0_147, %c0_148] : memref<128x384xbf16, #tpu.memory_space<vmem>>, vector<128x384xbf16>
    %cst_149 = arith.constant dense<0.000000e+00> : vector<8x384xf32>
    %346 = tpu.matmul %344, %345, %cst_149 {dimension_numbers = #tpu.dot_dimension_numbers<[1], [0], [0], [1], [0, 0, 1, 1], [], []>} : vector<8x128xbf16>, vector<128x384xbf16>, vector<8x384xf32> -> vector<8x384xf32>
    %347 = vector.extract_strided_slice %343 {offsets = [0, 0], sizes = [8, 128], strides = [1, 1]} : vector<8x384xf32> to vector<8x128xf32>
    %348 = vector.extract_strided_slice %346 {offsets = [0, 0], sizes = [8, 128], strides = [1, 1]} : vector<8x384xf32> to vector<8x128xf32>
    %349 = arith.addf %347, %348 : vector<8x128xf32>
    %350 = arith.negf %349 : vector<8x128xf32>
    %351 = math.exp %350 : vector<8x128xf32>
    %cst_150 = arith.constant 1.000000e+00 : f32
    %352 = vector.broadcast %cst_150 : f32 to vector<8x128xf32>
    %353 = arith.addf %352, %351 : vector<8x128xf32>
    %354 = arith.divf %352, %353 : vector<8x128xf32>
    %355 = vector.extract_strided_slice %343 {offsets = [0, 128], sizes = [8, 128], strides = [1, 1]} : vector<8x384xf32> to vector<8x128xf32>
    %356 = vector.extract_strided_slice %346 {offsets = [0, 128], sizes = [8, 128], strides = [1, 1]} : vector<8x384xf32> to vector<8x128xf32>
    %357 = arith.addf %355, %356 : vector<8x128xf32>
    %358 = arith.negf %357 : vector<8x128xf32>
    %359 = math.exp %358 : vector<8x128xf32>
    %cst_151 = arith.constant 1.000000e+00 : f32
    %360 = vector.broadcast %cst_151 : f32 to vector<8x128xf32>
    %361 = arith.addf %360, %359 : vector<8x128xf32>
    %362 = arith.divf %360, %361 : vector<8x128xf32>
    %363 = vector.extract_strided_slice %343 {offsets = [0, 256], sizes = [8, 128], strides = [1, 1]} : vector<8x384xf32> to vector<8x128xf32>
    %364 = vector.extract_strided_slice %346 {offsets = [0, 256], sizes = [8, 128], strides = [1, 1]} : vector<8x384xf32> to vector<8x128xf32>
    %c0_152 = arith.constant 0 : index
    %c0_153 = arith.constant 0 : index
    %365 = vector.load %arg8[%c0_152, %c0_153] : memref<1x128xf32, #tpu.memory_space<vmem>>, vector<1x128xf32>
    %366 = vector.broadcast %365 : vector<1x128xf32> to vector<8x128xf32>
    %367 = arith.addf %364, %366 : vector<8x128xf32>
    %368 = arith.mulf %354, %367 : vector<8x128xf32>
    %369 = arith.addf %363, %368 : vector<8x128xf32>
    %370 = math.tanh %369 : vector<8x128xf32>
    %cst_154 = arith.constant 1.000000e+00 : f32
    %371 = vector.broadcast %cst_154 : f32 to vector<8x128xf32>
    %372 = arith.subf %371, %362 : vector<8x128xf32>
    %373 = arith.mulf %372, %370 : vector<8x128xf32>
    %374 = arith.mulf %362, %341 : vector<8x128xf32>
    %375 = arith.addf %373, %374 : vector<8x128xf32>
    %c0_155 = arith.constant 0 : index
    %c0_156 = arith.constant 0 : index
    %376 = vector.load %arg14[%c0_155, %c0_156] : memref<8x128xf32, #tpu.memory_space<vmem>>, vector<8x128xf32>
    tpu.vector_store %arg14[%c0_155, %c0_156], %375 {strides = array<i32>} : memref<8x128xf32, #tpu.memory_space<vmem>>, vector<8x128xf32>,
    %c1_i32_157 = arith.constant 1 : i32
    %c8_i32_158 = arith.constant 8 : i32
    %377 = arith.muli %c1_i32_157, %c8_i32_158 : i32
    %378 = tpu.assume_multiple %377, 8 : i32
    %c0_159 = arith.constant 0 : index
    %c0_160 = arith.constant 0 : index
    %379 = vector.load %arg14[%c0_159, %c0_160] : memref<8x128xf32, #tpu.memory_space<vmem>>, vector<8x128xf32>
    %380 = arith.index_cast %378 : i32 to index
    %c0_161 = arith.constant 0 : index
    %381 = vector.load %arg12[%380, %c0_161] : memref<64x384xf32, #tpu.memory_space<vmem>>, vector<8x384xf32>
    %382 = arith.truncf %379 : vector<8x128xf32> to vector<8x128xbf16>
    %c0_162 = arith.constant 0 : index
    %c0_163 = arith.constant 0 : index
    %383 = vector.load %arg6[%c0_162, %c0_163] : memref<128x384xbf16, #tpu.memory_space<vmem>>, vector<128x384xbf16>
    %cst_164 = arith.constant dense<0.000000e+00> : vector<8x384xf32>
    %384 = tpu.matmul %382, %383, %cst_164 {dimension_numbers = #tpu.dot_dimension_numbers<[1], [0], [0], [1], [0, 0, 1, 1], [], []>} : vector<8x128xbf16>, vector<128x384xbf16>, vector<8x384xf32> -> vector<8x384xf32>
    %385 = vector.extract_strided_slice %381 {offsets = [0, 0], sizes = [8, 128], strides = [1, 1]} : vector<8x384xf32> to vector<8x128xf32>
    %386 = vector.extract_strided_slice %384 {offsets = [0, 0], sizes = [8, 128], strides = [1, 1]} : vector<8x384xf32> to vector<8x128xf32>
    %387 = arith.addf %385, %386 : vector<8x128xf32>
    %388 = arith.negf %387 : vector<8x128xf32>
    %389 = math.exp %388 : vector<8x128xf32>
    %cst_165 = arith.constant 1.000000e+00 : f32
    %390 = vector.broadcast %cst_165 : f32 to vector<8x128xf32>
    %391 = arith.addf %390, %389 : vector<8x128xf32>
    %392 = arith.divf %390, %391 : vector<8x128xf32>
    %393 = vector.extract_strided_slice %381 {offsets = [0, 128], sizes = [8, 128], strides = [1, 1]} : vector<8x384xf32> to vector<8x128xf32>
    %394 = vector.extract_strided_slice %384 {offsets = [0, 128], sizes = [8, 128], strides = [1, 1]} : vector<8x384xf32> to vector<8x128xf32>
    %395 = arith.addf %393, %394 : vector<8x128xf32>
    %396 = arith.negf %395 : vector<8x128xf32>
    %397 = math.exp %396 : vector<8x128xf32>
    %cst_166 = arith.constant 1.000000e+00 : f32
    %398 = vector.broadcast %cst_166 : f32 to vector<8x128xf32>
    %399 = arith.addf %398, %397 : vector<8x128xf32>
    %400 = arith.divf %398, %399 : vector<8x128xf32>
    %401 = vector.extract_strided_slice %381 {offsets = [0, 256], sizes = [8, 128], strides = [1, 1]} : vector<8x384xf32> to vector<8x128xf32>
    %402 = vector.extract_strided_slice %384 {offsets = [0, 256], sizes = [8, 128], strides = [1, 1]} : vector<8x384xf32> to vector<8x128xf32>
    %c0_167 = arith.constant 0 : index
    %c0_168 = arith.constant 0 : index
    %403 = vector.load %arg8[%c0_167, %c0_168] : memref<1x128xf32, #tpu.memory_space<vmem>>, vector<1x128xf32>
    %404 = vector.broadcast %403 : vector<1x128xf32> to vector<8x128xf32>
    %405 = arith.addf %402, %404 : vector<8x128xf32>
    %406 = arith.mulf %392, %405 : vector<8x128xf32>
    %407 = arith.addf %401, %406 : vector<8x128xf32>
    %408 = math.tanh %407 : vector<8x128xf32>
    %cst_169 = arith.constant 1.000000e+00 : f32
    %409 = vector.broadcast %cst_169 : f32 to vector<8x128xf32>
    %410 = arith.subf %409, %400 : vector<8x128xf32>
    %411 = arith.mulf %410, %408 : vector<8x128xf32>
    %412 = arith.mulf %400, %379 : vector<8x128xf32>
    %413 = arith.addf %411, %412 : vector<8x128xf32>
    %c0_170 = arith.constant 0 : index
    %c0_171 = arith.constant 0 : index
    %414 = vector.load %arg14[%c0_170, %c0_171] : memref<8x128xf32, #tpu.memory_space<vmem>>, vector<8x128xf32>
    tpu.vector_store %arg14[%c0_170, %c0_171], %413 {strides = array<i32>} : memref<8x128xf32, #tpu.memory_space<vmem>>, vector<8x128xf32>,
    %c2_i32_172 = arith.constant 2 : i32
    %c8_i32_173 = arith.constant 8 : i32
    %415 = arith.muli %c2_i32_172, %c8_i32_173 : i32
    %416 = tpu.assume_multiple %415, 8 : i32
    %c0_174 = arith.constant 0 : index
    %c0_175 = arith.constant 0 : index
    %417 = vector.load %arg14[%c0_174, %c0_175] : memref<8x128xf32, #tpu.memory_space<vmem>>, vector<8x128xf32>
    %418 = arith.index_cast %416 : i32 to index
    %c0_176 = arith.constant 0 : index
    %419 = vector.load %arg12[%418, %c0_176] : memref<64x384xf32, #tpu.memory_space<vmem>>, vector<8x384xf32>
    %420 = arith.truncf %417 : vector<8x128xf32> to vector<8x128xbf16>
    %c0_177 = arith.constant 0 : index
    %c0_178 = arith.constant 0 : index
    %421 = vector.load %arg6[%c0_177, %c0_178] : memref<128x384xbf16, #tpu.memory_space<vmem>>, vector<128x384xbf16>
    %cst_179 = arith.constant dense<0.000000e+00> : vector<8x384xf32>
    %422 = tpu.matmul %420, %421, %cst_179 {dimension_numbers = #tpu.dot_dimension_numbers<[1], [0], [0], [1], [0, 0, 1, 1], [], []>} : vector<8x128xbf16>, vector<128x384xbf16>, vector<8x384xf32> -> vector<8x384xf32>
    %423 = vector.extract_strided_slice %419 {offsets = [0, 0], sizes = [8, 128], strides = [1, 1]} : vector<8x384xf32> to vector<8x128xf32>
    %424 = vector.extract_strided_slice %422 {offsets = [0, 0], sizes = [8, 128], strides = [1, 1]} : vector<8x384xf32> to vector<8x128xf32>
    %425 = arith.addf %423, %424 : vector<8x128xf32>
    %426 = arith.negf %425 : vector<8x128xf32>
    %427 = math.exp %426 : vector<8x128xf32>
    %cst_180 = arith.constant 1.000000e+00 : f32
    %428 = vector.broadcast %cst_180 : f32 to vector<8x128xf32>
    %429 = arith.addf %428, %427 : vector<8x128xf32>
    %430 = arith.divf %428, %429 : vector<8x128xf32>
    %431 = vector.extract_strided_slice %419 {offsets = [0, 128], sizes = [8, 128], strides = [1, 1]} : vector<8x384xf32> to vector<8x128xf32>
    %432 = vector.extract_strided_slice %422 {offsets = [0, 128], sizes = [8, 128], strides = [1, 1]} : vector<8x384xf32> to vector<8x128xf32>
    %433 = arith.addf %431, %432 : vector<8x128xf32>
    %434 = arith.negf %433 : vector<8x128xf32>
    %435 = math.exp %434 : vector<8x128xf32>
    %cst_181 = arith.constant 1.000000e+00 : f32
    %436 = vector.broadcast %cst_181 : f32 to vector<8x128xf32>
    %437 = arith.addf %436, %435 : vector<8x128xf32>
    %438 = arith.divf %436, %437 : vector<8x128xf32>
    %439 = vector.extract_strided_slice %419 {offsets = [0, 256], sizes = [8, 128], strides = [1, 1]} : vector<8x384xf32> to vector<8x128xf32>
    %440 = vector.extract_strided_slice %422 {offsets = [0, 256], sizes = [8, 128], strides = [1, 1]} : vector<8x384xf32> to vector<8x128xf32>
    %c0_182 = arith.constant 0 : index
    %c0_183 = arith.constant 0 : index
    %441 = vector.load %arg8[%c0_182, %c0_183] : memref<1x128xf32, #tpu.memory_space<vmem>>, vector<1x128xf32>
    %442 = vector.broadcast %441 : vector<1x128xf32> to vector<8x128xf32>
    %443 = arith.addf %440, %442 : vector<8x128xf32>
    %444 = arith.mulf %430, %443 : vector<8x128xf32>
    %445 = arith.addf %439, %444 : vector<8x128xf32>
    %446 = math.tanh %445 : vector<8x128xf32>
    %cst_184 = arith.constant 1.000000e+00 : f32
    %447 = vector.broadcast %cst_184 : f32 to vector<8x128xf32>
    %448 = arith.subf %447, %438 : vector<8x128xf32>
    %449 = arith.mulf %448, %446 : vector<8x128xf32>
    %450 = arith.mulf %438, %417 : vector<8x128xf32>
    %451 = arith.addf %449, %450 : vector<8x128xf32>
    %c0_185 = arith.constant 0 : index
    %c0_186 = arith.constant 0 : index
    %452 = vector.load %arg14[%c0_185, %c0_186] : memref<8x128xf32, #tpu.memory_space<vmem>>, vector<8x128xf32>
    tpu.vector_store %arg14[%c0_185, %c0_186], %451 {strides = array<i32>} : memref<8x128xf32, #tpu.memory_space<vmem>>, vector<8x128xf32>,
    %c3_i32_187 = arith.constant 3 : i32
    %c8_i32_188 = arith.constant 8 : i32
    %453 = arith.muli %c3_i32_187, %c8_i32_188 : i32
    %454 = tpu.assume_multiple %453, 8 : i32
    %c0_189 = arith.constant 0 : index
    %c0_190 = arith.constant 0 : index
    %455 = vector.load %arg14[%c0_189, %c0_190] : memref<8x128xf32, #tpu.memory_space<vmem>>, vector<8x128xf32>
    %456 = arith.index_cast %454 : i32 to index
    %c0_191 = arith.constant 0 : index
    %457 = vector.load %arg12[%456, %c0_191] : memref<64x384xf32, #tpu.memory_space<vmem>>, vector<8x384xf32>
    %458 = arith.truncf %455 : vector<8x128xf32> to vector<8x128xbf16>
    %c0_192 = arith.constant 0 : index
    %c0_193 = arith.constant 0 : index
    %459 = vector.load %arg6[%c0_192, %c0_193] : memref<128x384xbf16, #tpu.memory_space<vmem>>, vector<128x384xbf16>
    %cst_194 = arith.constant dense<0.000000e+00> : vector<8x384xf32>
    %460 = tpu.matmul %458, %459, %cst_194 {dimension_numbers = #tpu.dot_dimension_numbers<[1], [0], [0], [1], [0, 0, 1, 1], [], []>} : vector<8x128xbf16>, vector<128x384xbf16>, vector<8x384xf32> -> vector<8x384xf32>
    %461 = vector.extract_strided_slice %457 {offsets = [0, 0], sizes = [8, 128], strides = [1, 1]} : vector<8x384xf32> to vector<8x128xf32>
    %462 = vector.extract_strided_slice %460 {offsets = [0, 0], sizes = [8, 128], strides = [1, 1]} : vector<8x384xf32> to vector<8x128xf32>
    %463 = arith.addf %461, %462 : vector<8x128xf32>
    %464 = arith.negf %463 : vector<8x128xf32>
    %465 = math.exp %464 : vector<8x128xf32>
    %cst_195 = arith.constant 1.000000e+00 : f32
    %466 = vector.broadcast %cst_195 : f32 to vector<8x128xf32>
    %467 = arith.addf %466, %465 : vector<8x128xf32>
    %468 = arith.divf %466, %467 : vector<8x128xf32>
    %469 = vector.extract_strided_slice %457 {offsets = [0, 128], sizes = [8, 128], strides = [1, 1]} : vector<8x384xf32> to vector<8x128xf32>
    %470 = vector.extract_strided_slice %460 {offsets = [0, 128], sizes = [8, 128], strides = [1, 1]} : vector<8x384xf32> to vector<8x128xf32>
    %471 = arith.addf %469, %470 : vector<8x128xf32>
    %472 = arith.negf %471 : vector<8x128xf32>
    %473 = math.exp %472 : vector<8x128xf32>
    %cst_196 = arith.constant 1.000000e+00 : f32
    %474 = vector.broadcast %cst_196 : f32 to vector<8x128xf32>
    %475 = arith.addf %474, %473 : vector<8x128xf32>
    %476 = arith.divf %474, %475 : vector<8x128xf32>
    %477 = vector.extract_strided_slice %457 {offsets = [0, 256], sizes = [8, 128], strides = [1, 1]} : vector<8x384xf32> to vector<8x128xf32>
    %478 = vector.extract_strided_slice %460 {offsets = [0, 256], sizes = [8, 128], strides = [1, 1]} : vector<8x384xf32> to vector<8x128xf32>
    %c0_197 = arith.constant 0 : index
    %c0_198 = arith.constant 0 : index
    %479 = vector.load %arg8[%c0_197, %c0_198] : memref<1x128xf32, #tpu.memory_space<vmem>>, vector<1x128xf32>
    %480 = vector.broadcast %479 : vector<1x128xf32> to vector<8x128xf32>
    %481 = arith.addf %478, %480 : vector<8x128xf32>
    %482 = arith.mulf %468, %481 : vector<8x128xf32>
    %483 = arith.addf %477, %482 : vector<8x128xf32>
    %484 = math.tanh %483 : vector<8x128xf32>
    %cst_199 = arith.constant 1.000000e+00 : f32
    %485 = vector.broadcast %cst_199 : f32 to vector<8x128xf32>
    %486 = arith.subf %485, %476 : vector<8x128xf32>
    %487 = arith.mulf %486, %484 : vector<8x128xf32>
    %488 = arith.mulf %476, %455 : vector<8x128xf32>
    %489 = arith.addf %487, %488 : vector<8x128xf32>
    %c0_200 = arith.constant 0 : index
    %c0_201 = arith.constant 0 : index
    %490 = vector.load %arg14[%c0_200, %c0_201] : memref<8x128xf32, #tpu.memory_space<vmem>>, vector<8x128xf32>
    tpu.vector_store %arg14[%c0_200, %c0_201], %489 {strides = array<i32>} : memref<8x128xf32, #tpu.memory_space<vmem>>, vector<8x128xf32>,
    %c4_i32_202 = arith.constant 4 : i32
    %c8_i32_203 = arith.constant 8 : i32
    %491 = arith.muli %c4_i32_202, %c8_i32_203 : i32
    %492 = tpu.assume_multiple %491, 8 : i32
    %c0_204 = arith.constant 0 : index
    %c0_205 = arith.constant 0 : index
    %493 = vector.load %arg14[%c0_204, %c0_205] : memref<8x128xf32, #tpu.memory_space<vmem>>, vector<8x128xf32>
    %494 = arith.index_cast %492 : i32 to index
    %c0_206 = arith.constant 0 : index
    %495 = vector.load %arg12[%494, %c0_206] : memref<64x384xf32, #tpu.memory_space<vmem>>, vector<8x384xf32>
    %496 = arith.truncf %493 : vector<8x128xf32> to vector<8x128xbf16>
    %c0_207 = arith.constant 0 : index
    %c0_208 = arith.constant 0 : index
    %497 = vector.load %arg6[%c0_207, %c0_208] : memref<128x384xbf16, #tpu.memory_space<vmem>>, vector<128x384xbf16>
    %cst_209 = arith.constant dense<0.000000e+00> : vector<8x384xf32>
    %498 = tpu.matmul %496, %497, %cst_209 {dimension_numbers = #tpu.dot_dimension_numbers<[1], [0], [0], [1], [0, 0, 1, 1], [], []>} : vector<8x128xbf16>, vector<128x384xbf16>, vector<8x384xf32> -> vector<8x384xf32>
    %499 = vector.extract_strided_slice %495 {offsets = [0, 0], sizes = [8, 128], strides = [1, 1]} : vector<8x384xf32> to vector<8x128xf32>
    %500 = vector.extract_strided_slice %498 {offsets = [0, 0], sizes = [8, 128], strides = [1, 1]} : vector<8x384xf32> to vector<8x128xf32>
    %501 = arith.addf %499, %500 : vector<8x128xf32>
    %502 = arith.negf %501 : vector<8x128xf32>
    %503 = math.exp %502 : vector<8x128xf32>
    %cst_210 = arith.constant 1.000000e+00 : f32
    %504 = vector.broadcast %cst_210 : f32 to vector<8x128xf32>
    %505 = arith.addf %504, %503 : vector<8x128xf32>
    %506 = arith.divf %504, %505 : vector<8x128xf32>
    %507 = vector.extract_strided_slice %495 {offsets = [0, 128], sizes = [8, 128], strides = [1, 1]} : vector<8x384xf32> to vector<8x128xf32>
    %508 = vector.extract_strided_slice %498 {offsets = [0, 128], sizes = [8, 128], strides = [1, 1]} : vector<8x384xf32> to vector<8x128xf32>
    %509 = arith.addf %507, %508 : vector<8x128xf32>
    %510 = arith.negf %509 : vector<8x128xf32>
    %511 = math.exp %510 : vector<8x128xf32>
    %cst_211 = arith.constant 1.000000e+00 : f32
    %512 = vector.broadcast %cst_211 : f32 to vector<8x128xf32>
    %513 = arith.addf %512, %511 : vector<8x128xf32>
    %514 = arith.divf %512, %513 : vector<8x128xf32>
    %515 = vector.extract_strided_slice %495 {offsets = [0, 256], sizes = [8, 128], strides = [1, 1]} : vector<8x384xf32> to vector<8x128xf32>
    %516 = vector.extract_strided_slice %498 {offsets = [0, 256], sizes = [8, 128], strides = [1, 1]} : vector<8x384xf32> to vector<8x128xf32>
    %c0_212 = arith.constant 0 : index
    %c0_213 = arith.constant 0 : index
    %517 = vector.load %arg8[%c0_212, %c0_213] : memref<1x128xf32, #tpu.memory_space<vmem>>, vector<1x128xf32>
    %518 = vector.broadcast %517 : vector<1x128xf32> to vector<8x128xf32>
    %519 = arith.addf %516, %518 : vector<8x128xf32>
    %520 = arith.mulf %506, %519 : vector<8x128xf32>
    %521 = arith.addf %515, %520 : vector<8x128xf32>
    %522 = math.tanh %521 : vector<8x128xf32>
    %cst_214 = arith.constant 1.000000e+00 : f32
    %523 = vector.broadcast %cst_214 : f32 to vector<8x128xf32>
    %524 = arith.subf %523, %514 : vector<8x128xf32>
    %525 = arith.mulf %524, %522 : vector<8x128xf32>
    %526 = arith.mulf %514, %493 : vector<8x128xf32>
    %527 = arith.addf %525, %526 : vector<8x128xf32>
    %c0_215 = arith.constant 0 : index
    %c0_216 = arith.constant 0 : index
    %528 = vector.load %arg14[%c0_215, %c0_216] : memref<8x128xf32, #tpu.memory_space<vmem>>, vector<8x128xf32>
    tpu.vector_store %arg14[%c0_215, %c0_216], %527 {strides = array<i32>} : memref<8x128xf32, #tpu.memory_space<vmem>>, vector<8x128xf32>,
    %c5_i32_217 = arith.constant 5 : i32
    %c8_i32_218 = arith.constant 8 : i32
    %529 = arith.muli %c5_i32_217, %c8_i32_218 : i32
    %530 = tpu.assume_multiple %529, 8 : i32
    %c0_219 = arith.constant 0 : index
    %c0_220 = arith.constant 0 : index
    %531 = vector.load %arg14[%c0_219, %c0_220] : memref<8x128xf32, #tpu.memory_space<vmem>>, vector<8x128xf32>
    %532 = arith.index_cast %530 : i32 to index
    %c0_221 = arith.constant 0 : index
    %533 = vector.load %arg12[%532, %c0_221] : memref<64x384xf32, #tpu.memory_space<vmem>>, vector<8x384xf32>
    %534 = arith.truncf %531 : vector<8x128xf32> to vector<8x128xbf16>
    %c0_222 = arith.constant 0 : index
    %c0_223 = arith.constant 0 : index
    %535 = vector.load %arg6[%c0_222, %c0_223] : memref<128x384xbf16, #tpu.memory_space<vmem>>, vector<128x384xbf16>
    %cst_224 = arith.constant dense<0.000000e+00> : vector<8x384xf32>
    %536 = tpu.matmul %534, %535, %cst_224 {dimension_numbers = #tpu.dot_dimension_numbers<[1], [0], [0], [1], [0, 0, 1, 1], [], []>} : vector<8x128xbf16>, vector<128x384xbf16>, vector<8x384xf32> -> vector<8x384xf32>
    %537 = vector.extract_strided_slice %533 {offsets = [0, 0], sizes = [8, 128], strides = [1, 1]} : vector<8x384xf32> to vector<8x128xf32>
    %538 = vector.extract_strided_slice %536 {offsets = [0, 0], sizes = [8, 128], strides = [1, 1]} : vector<8x384xf32> to vector<8x128xf32>
    %539 = arith.addf %537, %538 : vector<8x128xf32>
    %540 = arith.negf %539 : vector<8x128xf32>
    %541 = math.exp %540 : vector<8x128xf32>
    %cst_225 = arith.constant 1.000000e+00 : f32
    %542 = vector.broadcast %cst_225 : f32 to vector<8x128xf32>
    %543 = arith.addf %542, %541 : vector<8x128xf32>
    %544 = arith.divf %542, %543 : vector<8x128xf32>
    %545 = vector.extract_strided_slice %533 {offsets = [0, 128], sizes = [8, 128], strides = [1, 1]} : vector<8x384xf32> to vector<8x128xf32>
    %546 = vector.extract_strided_slice %536 {offsets = [0, 128], sizes = [8, 128], strides = [1, 1]} : vector<8x384xf32> to vector<8x128xf32>
    %547 = arith.addf %545, %546 : vector<8x128xf32>
    %548 = arith.negf %547 : vector<8x128xf32>
    %549 = math.exp %548 : vector<8x128xf32>
    %cst_226 = arith.constant 1.000000e+00 : f32
    %550 = vector.broadcast %cst_226 : f32 to vector<8x128xf32>
    %551 = arith.addf %550, %549 : vector<8x128xf32>
    %552 = arith.divf %550, %551 : vector<8x128xf32>
    %553 = vector.extract_strided_slice %533 {offsets = [0, 256], sizes = [8, 128], strides = [1, 1]} : vector<8x384xf32> to vector<8x128xf32>
    %554 = vector.extract_strided_slice %536 {offsets = [0, 256], sizes = [8, 128], strides = [1, 1]} : vector<8x384xf32> to vector<8x128xf32>
    %c0_227 = arith.constant 0 : index
    %c0_228 = arith.constant 0 : index
    %555 = vector.load %arg8[%c0_227, %c0_228] : memref<1x128xf32, #tpu.memory_space<vmem>>, vector<1x128xf32>
    %556 = vector.broadcast %555 : vector<1x128xf32> to vector<8x128xf32>
    %557 = arith.addf %554, %556 : vector<8x128xf32>
    %558 = arith.mulf %544, %557 : vector<8x128xf32>
    %559 = arith.addf %553, %558 : vector<8x128xf32>
    %560 = math.tanh %559 : vector<8x128xf32>
    %cst_229 = arith.constant 1.000000e+00 : f32
    %561 = vector.broadcast %cst_229 : f32 to vector<8x128xf32>
    %562 = arith.subf %561, %552 : vector<8x128xf32>
    %563 = arith.mulf %562, %560 : vector<8x128xf32>
    %564 = arith.mulf %552, %531 : vector<8x128xf32>
    %565 = arith.addf %563, %564 : vector<8x128xf32>
    %c0_230 = arith.constant 0 : index
    %c0_231 = arith.constant 0 : index
    %566 = vector.load %arg14[%c0_230, %c0_231] : memref<8x128xf32, #tpu.memory_space<vmem>>, vector<8x128xf32>
    tpu.vector_store %arg14[%c0_230, %c0_231], %565 {strides = array<i32>} : memref<8x128xf32, #tpu.memory_space<vmem>>, vector<8x128xf32>,
    %c6_i32_232 = arith.constant 6 : i32
    %c8_i32_233 = arith.constant 8 : i32
    %567 = arith.muli %c6_i32_232, %c8_i32_233 : i32
    %568 = tpu.assume_multiple %567, 8 : i32
    %c0_234 = arith.constant 0 : index
    %c0_235 = arith.constant 0 : index
    %569 = vector.load %arg14[%c0_234, %c0_235] : memref<8x128xf32, #tpu.memory_space<vmem>>, vector<8x128xf32>
    %570 = arith.index_cast %568 : i32 to index
    %c0_236 = arith.constant 0 : index
    %571 = vector.load %arg12[%570, %c0_236] : memref<64x384xf32, #tpu.memory_space<vmem>>, vector<8x384xf32>
    %572 = arith.truncf %569 : vector<8x128xf32> to vector<8x128xbf16>
    %c0_237 = arith.constant 0 : index
    %c0_238 = arith.constant 0 : index
    %573 = vector.load %arg6[%c0_237, %c0_238] : memref<128x384xbf16, #tpu.memory_space<vmem>>, vector<128x384xbf16>
    %cst_239 = arith.constant dense<0.000000e+00> : vector<8x384xf32>
    %574 = tpu.matmul %572, %573, %cst_239 {dimension_numbers = #tpu.dot_dimension_numbers<[1], [0], [0], [1], [0, 0, 1, 1], [], []>} : vector<8x128xbf16>, vector<128x384xbf16>, vector<8x384xf32> -> vector<8x384xf32>
    %575 = vector.extract_strided_slice %571 {offsets = [0, 0], sizes = [8, 128], strides = [1, 1]} : vector<8x384xf32> to vector<8x128xf32>
    %576 = vector.extract_strided_slice %574 {offsets = [0, 0], sizes = [8, 128], strides = [1, 1]} : vector<8x384xf32> to vector<8x128xf32>
    %577 = arith.addf %575, %576 : vector<8x128xf32>
    %578 = arith.negf %577 : vector<8x128xf32>
    %579 = math.exp %578 : vector<8x128xf32>
    %cst_240 = arith.constant 1.000000e+00 : f32
    %580 = vector.broadcast %cst_240 : f32 to vector<8x128xf32>
    %581 = arith.addf %580, %579 : vector<8x128xf32>
    %582 = arith.divf %580, %581 : vector<8x128xf32>
    %583 = vector.extract_strided_slice %571 {offsets = [0, 128], sizes = [8, 128], strides = [1, 1]} : vector<8x384xf32> to vector<8x128xf32>
    %584 = vector.extract_strided_slice %574 {offsets = [0, 128], sizes = [8, 128], strides = [1, 1]} : vector<8x384xf32> to vector<8x128xf32>
    %585 = arith.addf %583, %584 : vector<8x128xf32>
    %586 = arith.negf %585 : vector<8x128xf32>
    %587 = math.exp %586 : vector<8x128xf32>
    %cst_241 = arith.constant 1.000000e+00 : f32
    %588 = vector.broadcast %cst_241 : f32 to vector<8x128xf32>
    %589 = arith.addf %588, %587 : vector<8x128xf32>
    %590 = arith.divf %588, %589 : vector<8x128xf32>
    %591 = vector.extract_strided_slice %571 {offsets = [0, 256], sizes = [8, 128], strides = [1, 1]} : vector<8x384xf32> to vector<8x128xf32>
    %592 = vector.extract_strided_slice %574 {offsets = [0, 256], sizes = [8, 128], strides = [1, 1]} : vector<8x384xf32> to vector<8x128xf32>
    %c0_242 = arith.constant 0 : index
    %c0_243 = arith.constant 0 : index
    %593 = vector.load %arg8[%c0_242, %c0_243] : memref<1x128xf32, #tpu.memory_space<vmem>>, vector<1x128xf32>
    %594 = vector.broadcast %593 : vector<1x128xf32> to vector<8x128xf32>
    %595 = arith.addf %592, %594 : vector<8x128xf32>
    %596 = arith.mulf %582, %595 : vector<8x128xf32>
    %597 = arith.addf %591, %596 : vector<8x128xf32>
    %598 = math.tanh %597 : vector<8x128xf32>
    %cst_244 = arith.constant 1.000000e+00 : f32
    %599 = vector.broadcast %cst_244 : f32 to vector<8x128xf32>
    %600 = arith.subf %599, %590 : vector<8x128xf32>
    %601 = arith.mulf %600, %598 : vector<8x128xf32>
    %602 = arith.mulf %590, %569 : vector<8x128xf32>
    %603 = arith.addf %601, %602 : vector<8x128xf32>
    %c0_245 = arith.constant 0 : index
    %c0_246 = arith.constant 0 : index
    %604 = vector.load %arg14[%c0_245, %c0_246] : memref<8x128xf32, #tpu.memory_space<vmem>>, vector<8x128xf32>
    tpu.vector_store %arg14[%c0_245, %c0_246], %603 {strides = array<i32>} : memref<8x128xf32, #tpu.memory_space<vmem>>, vector<8x128xf32>,
    %c7_i32_247 = arith.constant 7 : i32
    %c8_i32_248 = arith.constant 8 : i32
    %605 = arith.muli %c7_i32_247, %c8_i32_248 : i32
    %606 = tpu.assume_multiple %605, 8 : i32
    %c0_249 = arith.constant 0 : index
    %c0_250 = arith.constant 0 : index
    %607 = vector.load %arg14[%c0_249, %c0_250] : memref<8x128xf32, #tpu.memory_space<vmem>>, vector<8x128xf32>
    %608 = arith.index_cast %606 : i32 to index
    %c0_251 = arith.constant 0 : index
    %609 = vector.load %arg12[%608, %c0_251] : memref<64x384xf32, #tpu.memory_space<vmem>>, vector<8x384xf32>
    %610 = arith.truncf %607 : vector<8x128xf32> to vector<8x128xbf16>
    %c0_252 = arith.constant 0 : index
    %c0_253 = arith.constant 0 : index
    %611 = vector.load %arg6[%c0_252, %c0_253] : memref<128x384xbf16, #tpu.memory_space<vmem>>, vector<128x384xbf16>
    %cst_254 = arith.constant dense<0.000000e+00> : vector<8x384xf32>
    %612 = tpu.matmul %610, %611, %cst_254 {dimension_numbers = #tpu.dot_dimension_numbers<[1], [0], [0], [1], [0, 0, 1, 1], [], []>} : vector<8x128xbf16>, vector<128x384xbf16>, vector<8x384xf32> -> vector<8x384xf32>
    %613 = vector.extract_strided_slice %609 {offsets = [0, 0], sizes = [8, 128], strides = [1, 1]} : vector<8x384xf32> to vector<8x128xf32>
    %614 = vector.extract_strided_slice %612 {offsets = [0, 0], sizes = [8, 128], strides = [1, 1]} : vector<8x384xf32> to vector<8x128xf32>
    %615 = arith.addf %613, %614 : vector<8x128xf32>
    %616 = arith.negf %615 : vector<8x128xf32>
    %617 = math.exp %616 : vector<8x128xf32>
    %cst_255 = arith.constant 1.000000e+00 : f32
    %618 = vector.broadcast %cst_255 : f32 to vector<8x128xf32>
    %619 = arith.addf %618, %617 : vector<8x128xf32>
    %620 = arith.divf %618, %619 : vector<8x128xf32>
    %621 = vector.extract_strided_slice %609 {offsets = [0, 128], sizes = [8, 128], strides = [1, 1]} : vector<8x384xf32> to vector<8x128xf32>
    %622 = vector.extract_strided_slice %612 {offsets = [0, 128], sizes = [8, 128], strides = [1, 1]} : vector<8x384xf32> to vector<8x128xf32>
    %623 = arith.addf %621, %622 : vector<8x128xf32>
    %624 = arith.negf %623 : vector<8x128xf32>
    %625 = math.exp %624 : vector<8x128xf32>
    %cst_256 = arith.constant 1.000000e+00 : f32
    %626 = vector.broadcast %cst_256 : f32 to vector<8x128xf32>
    %627 = arith.addf %626, %625 : vector<8x128xf32>
    %628 = arith.divf %626, %627 : vector<8x128xf32>
    %629 = vector.extract_strided_slice %609 {offsets = [0, 256], sizes = [8, 128], strides = [1, 1]} : vector<8x384xf32> to vector<8x128xf32>
    %630 = vector.extract_strided_slice %612 {offsets = [0, 256], sizes = [8, 128], strides = [1, 1]} : vector<8x384xf32> to vector<8x128xf32>
    %c0_257 = arith.constant 0 : index
    %c0_258 = arith.constant 0 : index
    %631 = vector.load %arg8[%c0_257, %c0_258] : memref<1x128xf32, #tpu.memory_space<vmem>>, vector<1x128xf32>
    %632 = vector.broadcast %631 : vector<1x128xf32> to vector<8x128xf32>
    %633 = arith.addf %630, %632 : vector<8x128xf32>
    %634 = arith.mulf %620, %633 : vector<8x128xf32>
    %635 = arith.addf %629, %634 : vector<8x128xf32>
    %636 = math.tanh %635 : vector<8x128xf32>
    %cst_259 = arith.constant 1.000000e+00 : f32
    %637 = vector.broadcast %cst_259 : f32 to vector<8x128xf32>
    %638 = arith.subf %637, %628 : vector<8x128xf32>
    %639 = arith.mulf %638, %636 : vector<8x128xf32>
    %640 = arith.mulf %628, %607 : vector<8x128xf32>
    %641 = arith.addf %639, %640 : vector<8x128xf32>
    %c0_260 = arith.constant 0 : index
    %c0_261 = arith.constant 0 : index
    %642 = vector.load %arg14[%c0_260, %c0_261] : memref<8x128xf32, #tpu.memory_space<vmem>>, vector<8x128xf32>
    tpu.vector_store %arg14[%c0_260, %c0_261], %641 {strides = array<i32>} : memref<8x128xf32, #tpu.memory_space<vmem>>, vector<8x128xf32>,
    %c8_i32_262 = arith.constant 8 : i32
    %c0_263 = arith.constant 0 : index
    %c0_264 = arith.constant 0 : index
    %643 = vector.load %arg14[%c0_263, %c0_264] : memref<8x128xf32, #tpu.memory_space<vmem>>, vector<8x128xf32>
    %644 = arith.truncf %643 : vector<8x128xf32> to vector<8x128xbf16>
    %c0_265 = arith.constant 0 : index
    %c0_266 = arith.constant 0 : index
    %645 = vector.load %arg9[%c0_265, %c0_266] : memref<128x128xbf16, #tpu.memory_space<vmem>>, vector<128x128xbf16>
    %cst_267 = arith.constant dense<0.000000e+00> : vector<8x128xf32>
    %646 = tpu.matmul %644, %645, %cst_267 {dimension_numbers = #tpu.dot_dimension_numbers<[1], [0], [0], [1], [0, 0, 1, 1], [], []>} : vector<8x128xbf16>, vector<128x128xbf16>, vector<8x128xf32> -> vector<8x128xf32>
    %c0_268 = arith.constant 0 : index
    %c0_269 = arith.constant 0 : index
    %647 = vector.load %arg10[%c0_268, %c0_269] : memref<1x128xf32, #tpu.memory_space<vmem>>, vector<1x128xf32>
    %648 = vector.broadcast %647 : vector<1x128xf32> to vector<8x128xf32>
    %649 = arith.addf %646, %648 : vector<8x128xf32>
    %650 = arith.negf %649 : vector<8x128xf32>
    %651 = math.exp %650 : vector<8x128xf32>
    %cst_270 = arith.constant 1.000000e+00 : f32
    %652 = vector.broadcast %cst_270 : f32 to vector<8x128xf32>
    %653 = arith.addf %652, %651 : vector<8x128xf32>
    %654 = arith.divf %652, %653 : vector<8x128xf32>
    %c0_271 = arith.constant 0 : index
    %c0_272 = arith.constant 0 : index
    %655 = vector.load %arg11[%c0_271, %c0_272] : memref<8x128xf32, #tpu.memory_space<vmem>>, vector<8x128xf32>
    tpu.vector_store %arg11[%c0_271, %c0_272], %654 {strides = array<i32>} : memref<8x128xf32, #tpu.memory_space<vmem>>, vector<8x128xf32>,
    return
  }
}

</mosaic_0001>

<llo_original>
// kernel: gru_model_forward.1
$region0: #{gru_model_forward.1}
  #allocation0 [shape = 'u32[]', space=smem, size = 0x4, offset = 0x4, fixed_abs, tag = 'smem constant byte address 0x4 - core index']
  #allocation1 [shape = 'u32[144,128]{1,0:T(1,128)}', space=vmem, size = 0x12000, scoped, tag = 'internal scratch']
  #allocation2 [shape = 'f32[64,384]{1,0:T(8,128)}', space=vmem, size = 0x18000, scoped, tag = 'scratch operand']
  #allocation3 [shape = 'f32[64,128]{1,0:T(8,128)}', space=vmem, size = 0x8000, scoped, tag = 'scratch operand']
  #allocation4 [shape = 'f32[8,128]{1,0:T(8,128)}', space=vmem, size = 0x1000, scoped, tag = 'scratch operand']
  %s0 = inlined_call_operand.vmem [shape: bf16[64,128], index: 0, kind: input, shape index: {}]
  %s1 = inlined_call_operand.vmem [shape: bf16[128,384], index: 1, kind: input, shape index: {}]
  %s2 = inlined_call_operand.vmem [shape: bf16[128,384], index: 2, kind: input, shape index: {}]
  %s3 = inlined_call_operand.vmem [shape: f32[1,384], index: 3, kind: input, shape index: {}]
  %s4 = inlined_call_operand.vmem [shape: f32[1,128], index: 4, kind: input, shape index: {}]
  %s5 = inlined_call_operand.vmem [shape: bf16[128,384], index: 5, kind: input, shape index: {}]
  %s6 = inlined_call_operand.vmem [shape: bf16[128,384], index: 6, kind: input, shape index: {}]
  %s7 = inlined_call_operand.vmem [shape: f32[1,384], index: 7, kind: input, shape index: {}]
  %s8 = inlined_call_operand.vmem [shape: f32[1,128], index: 8, kind: input, shape index: {}]
  %s9 = inlined_call_operand.vmem [shape: bf16[128,128], index: 9, kind: input, shape index: {}]
  %s10 = inlined_call_operand.vmem [shape: f32[1,128], index: 10, kind: input, shape index: {}]
  %s11 = inlined_call_operand.vmem [shape: f32[8,128], index: 11, kind: output, shape index: {}]
  %s12 = sld [smem:[#allocation0]]
  $region54: #{gru_model_forward.1} parent=0
    _
  %s14 = ssub.s32 1, %s12
  %s15 = scalar_select 0, %s14, %s12
  // Predicated region
  $region2: #{gru_model_forward.1} parent=0 // pred_check
    _
  $region3: #{gru_model_forward.1} parent=0 // pred_check_branch
    %17 = sbr.rel (0) target = $region5
  $region4: #{gru_model_forward.1} parent=0 // pred_region
    _
  $region5: #{gru_model_forward.1} parent=0 // pred_fallthru
    _
  // Predicated region
  $region6: #{gru_model_forward.1} parent=0 // pred_check
    _
  $region7: #{gru_model_forward.1} parent=0 // pred_check_branch
    %19 = sbr.rel (0) target = $region9
  $region8: #{gru_model_forward.1} parent=0 // pred_region
    _
  $region9: #{gru_model_forward.1} parent=0 // pred_fallthru
    _
  // Predicated region
  $region10: #{gru_model_forward.1} parent=0 // pred_check
    _
  $region11: #{gru_model_forward.1} parent=0 // pred_check_branch
    %21 = sbr.rel (0) target = $region13
  $region12: #{gru_model_forward.1} parent=0 // pred_region
    _
  $region13: #{gru_model_forward.1} parent=0 // pred_fallthru
    _
  // Predicated region
  $region14: #{gru_model_forward.1} parent=0 // pred_check
    _
  $region15: #{gru_model_forward.1} parent=0 // pred_check_branch
    %23 = sbr.rel (0) target = $region17
  $region16: #{gru_model_forward.1} parent=0 // pred_region
    _
  $region17: #{gru_model_forward.1} parent=0 // pred_fallthru
    _
  // Predicated region
  $region18: #{gru_model_forward.1} parent=0 // pred_check
    _
  $region19: #{gru_model_forward.1} parent=0 // pred_check_branch
    %25 = sbr.rel (0) target = $region21
  $region20: #{gru_model_forward.1} parent=0 // pred_region
    _
  $region21: #{gru_model_forward.1} parent=0 // pred_fallthru
    _
  // Predicated region
  $region22: #{gru_model_forward.1} parent=0 // pred_check
    _
  $region23: #{gru_model_forward.1} parent=0 // pred_check_branch
    %27 = sbr.rel (0) target = $region25
  $region24: #{gru_model_forward.1} parent=0 // pred_region
    _
  $region25: #{gru_model_forward.1} parent=0 // pred_fallthru
    _
  // Predicated region
  $region26: #{gru_model_forward.1} parent=0 // pred_check
    _
  $region27: #{gru_model_forward.1} parent=0 // pred_check_branch
    %29 = sbr.rel (0) target = $region29
  $region28: #{gru_model_forward.1} parent=0 // pred_region
    _
  $region29: #{gru_model_forward.1} parent=0 // pred_fallthru
    _
  // Predicated region
  $region30: #{gru_model_forward.1} parent=0 // pred_check
    _
  $region31: #{gru_model_forward.1} parent=0 // pred_check_branch
    %31 = sbr.rel (0) target = $region33
  $region32: #{gru_model_forward.1} parent=0 // pred_region
    _
  $region33: #{gru_model_forward.1} parent=0 // pred_fallthru
    _
  // Predicated region
  $region34: #{gru_model_forward.1} parent=0 // pred_check
    _
  $region35: #{gru_model_forward.1} parent=0 // pred_check_branch
    %33 = sbr.rel (0) target = $region37
  $region36: #{gru_model_forward.1} parent=0 // pred_region
    _
  $region37: #{gru_model_forward.1} parent=0 // pred_fallthru
    _
  // Predicated region
  $region38: #{gru_model_forward.1} parent=0 // pred_check
    _
  $region39: #{gru_model_forward.1} parent=0 // pred_check_branch
    %35 = sbr.rel (0) target = $region41
  $region40: #{gru_model_forward.1} parent=0 // pred_region
    _
  $region41: #{gru_model_forward.1} parent=0 // pred_fallthru
    _
  // Predicated region
  $region42: #{gru_model_forward.1} parent=0 // pred_check
    _
  $region43: #{gru_model_forward.1} parent=0 // pred_check_branch
    %37 = sbr.rel (0) target = $region45
  $region44: #{gru_model_forward.1} parent=0 // pred_region
    _
  $region45: #{gru_model_forward.1} parent=0 // pred_fallthru
    _
  %v39 = vld [vmem:[%s0] sm:$0xf]
  %v40 = vld [vmem:[%s0 + $0x4] sm:$0xf]
  %v41 = vld [vmem:[%s0 + $0x8] sm:$0xf]
  %v42 = vld [vmem:[%s0 + $0xc] sm:$0xf]
  %v43 = vld [vmem:[%s0 + $0x10] sm:$0xf]
  %v44 = vld [vmem:[%s0 + $0x14] sm:$0xf]
  %v45 = vld [vmem:[%s0 + $0x18] sm:$0xf]
  %v46 = vld [vmem:[%s0 + $0x1c] sm:$0xf]
  %v47 = vld [vmem:[%s1] sm:$0xff]
  %v48 = vld [vmem:[%s1 + $0x8] sm:$0xf]
  %v49 = vld [vmem:[%s1 + $0xc] sm:$0xff]
  %v50 = vld [vmem:[%s1 + $0x14] sm:$0xf]
  %v51 = vld [vmem:[%s1 + $0x18] sm:$0xff]
  %v52 = vld [vmem:[%s1 + $0x20] sm:$0xf]
  %v53 = vld [vmem:[%s1 + $0x24] sm:$0xff]
  %v54 = vld [vmem:[%s1 + $0x2c] sm:$0xf]
  %v55 = vld [vmem:[%s1 + $0x30] sm:$0xff]
  %v56 = vld [vmem:[%s1 + $0x38] sm:$0xf]
  %v57 = vld [vmem:[%s1 + $0x3c] sm:$0xff]
  %v58 = vld [vmem:[%s1 + $0x44] sm:$0xf]
  %v59 = vld [vmem:[%s1 + $0x48] sm:$0xff]
  %v60 = vld [vmem:[%s1 + $0x50] sm:$0xf]
  %v61 = vld [vmem:[%s1 + $0x54] sm:$0xff]
  %v62 = vld [vmem:[%s1 + $0x5c] sm:$0xf]
  %v63 = vld [vmem:[%s1 + $0x60] sm:$0xff]
  %v64 = vld [vmem:[%s1 + $0x68] sm:$0xf]
  %v65 = vld [vmem:[%s1 + $0x6c] sm:$0xff]
  %v66 = vld [vmem:[%s1 + $0x74] sm:$0xf]
  %v67 = vld [vmem:[%s1 + $0x78] sm:$0xff]
  %v68 = vld [vmem:[%s1 + $0x80] sm:$0xf]
  %v69 = vld [vmem:[%s1 + $0x84] sm:$0xff]
  %v70 = vld [vmem:[%s1 + $0x8c] sm:$0xf]
  %v71 = vld [vmem:[%s1 + $0x90] sm:$0xff]
  %v72 = vld [vmem:[%s1 + $0x98] sm:$0xf]
  %v73 = vld [vmem:[%s1 + $0x9c] sm:$0xff]
  %v74 = vld [vmem:[%s1 + $0xa4] sm:$0xf]
  %v75 = vld [vmem:[%s1 + $0xa8] sm:$0xff]
  %v76 = vld [vmem:[%s1 + $0xb0] sm:$0xf]
  %v77 = vld [vmem:[%s1 + $0xb4] sm:$0xff]
  %v78 = vld [vmem:[%s1 + $0xbc] sm:$0xf]
  %v79 = vld [vmem:[%s3] sm:$0x7]
  %v81 = vlaneseq
  %v82 = vshrl.u32 %v81, 7
  %v83 = vsub.s32 0, %v82
  %v84 = vrot.slane %v79, %v83
  %v85 = vlaneseq
  %v86 = vshrl.u32 %v85, 7
  %v87 = vsub.s32 1, %v86
  %v88 = vrot.slane %v79, %v87
  %v89 = vlaneseq
  %v90 = vshrl.u32 %v89, 7
  %v91 = vsub.s32 2, %v90
  %v92 = vrot.slane %v79, %v91
  %v104 = vunpack.c.l.b16 %v39
  %v105 = vunpack.c.l.b16 %v40
  %v106 = vunpack.c.l.b16 %v41
  %v107 = vunpack.c.l.b16 %v42
  %v108 = vunpack.c.l.b16 %v43
  %v109 = vunpack.c.l.b16 %v44
  %v110 = vunpack.c.l.b16 %v45
  %v111 = vunpack.c.l.b16 %v46
  %v112 = vpack.c.b16 %v105, %v104
  %v113 = vpack.c.b16 %v107, %v106
  %v114 = vpack.c.b16 %v109, %v108
  %v115 = vpack.c.b16 %v111, %v110
  %v152 = vunpack.c.l.b16 %v47
  %v153 = vunpack.c.h.b16 %v47
  %v154 = vunpack.c.l.b16 %v48
  %v155 = vunpack.c.l.b16 %v49
  %v156 = vunpack.c.h.b16 %v49
  %v157 = vunpack.c.l.b16 %v50
  %v158 = vunpack.c.l.b16 %v51
  %v159 = vunpack.c.h.b16 %v51
  %v160 = vunpack.c.l.b16 %v52
  %v161 = vunpack.c.l.b16 %v53
  %v162 = vunpack.c.h.b16 %v53
  %v163 = vunpack.c.l.b16 %v54
  %v164 = vunpack.c.l.b16 %v55
  %v165 = vunpack.c.h.b16 %v55
  %v166 = vunpack.c.l.b16 %v56
  %v167 = vunpack.c.l.b16 %v57
  %v168 = vunpack.c.h.b16 %v57
  %v169 = vunpack.c.l.b16 %v58
  %v170 = vunpack.c.l.b16 %v59
  %v171 = vunpack.c.h.b16 %v59
  %v172 = vunpack.c.l.b16 %v60
  %v173 = vunpack.c.l.b16 %v61
  %v174 = vunpack.c.h.b16 %v61
  %v175 = vunpack.c.l.b16 %v62
  %v176 = vunpack.c.l.b16 %v63
  %v177 = vunpack.c.h.b16 %v63
  %v178 = vunpack.c.l.b16 %v64
  %v179 = vunpack.c.l.b16 %v65
  %v180 = vunpack.c.h.b16 %v65
  %v181 = vunpack.c.l.b16 %v66
  %v182 = vunpack.c.l.b16 %v67
  %v183 = vunpack.c.h.b16 %v67
  %v184 = vunpack.c.l.b16 %v68
  %v185 = vunpack.c.l.b16 %v69
  %v186 = vunpack.c.h.b16 %v69
  %v187 = vunpack.c.l.b16 %v70
  %v188 = vunpack.c.l.b16 %v71
  %v189 = vunpack.c.h.b16 %v71
  %v190 = vunpack.c.l.b16 %v72
  %v191 = vunpack.c.l.b16 %v73
  %v192 = vunpack.c.h.b16 %v73
  %v193 = vunpack.c.l.b16 %v74
  %v194 = vunpack.c.l.b16 %v75
  %v195 = vunpack.c.h.b16 %v75
  %v196 = vunpack.c.l.b16 %v76
  %v197 = vunpack.c.l.b16 %v77
  %v198 = vunpack.c.h.b16 %v77
  %v199 = vunpack.c.l.b16 %v78
  %v200 = vpack.c.b16 %v155, %v152
  %v201 = vpack.c.b16 %v156, %v153
  %v202 = vpack.c.b16 %v157, %v154
  %v203 = vpack.c.b16 %v161, %v158
  %v204 = vpack.c.b16 %v162, %v159
  %v205 = vpack.c.b16 %v163, %v160
  %v206 = vpack.c.b16 %v167, %v164
  %v207 = vpack.c.b16 %v168, %v165
  %v208 = vpack.c.b16 %v169, %v166
  %v209 = vpack.c.b16 %v173, %v170
  %v210 = vpack.c.b16 %v174, %v171
  %v211 = vpack.c.b16 %v175, %v172
  %v212 = vpack.c.b16 %v179, %v176
  %v213 = vpack.c.b16 %v180, %v177
  %v214 = vpack.c.b16 %v181, %v178
  %v215 = vpack.c.b16 %v185, %v182
  %v216 = vpack.c.b16 %v186, %v183
  %v217 = vpack.c.b16 %v187, %v184
  %v218 = vpack.c.b16 %v191, %v188
  %v219 = vpack.c.b16 %v192, %v189
  %v220 = vpack.c.b16 %v193, %v190
  %v221 = vpack.c.b16 %v197, %v194
  %v222 = vpack.c.b16 %v198, %v195
  %v223 = vpack.c.b16 %v199, %v196
  %248 = vmatprep.subr.bf16.mxu0 %v222
  %249 = vmatpush1.bf16.msra.mxu0 %v221
  %250 = vmatprep.subr.bf16.mxu0 %v219
  %251 = vmatpush1.bf16.msra.mxu0 %v218
  %252 = vmatprep.subr.bf16.mxu0 %v216
  %253 = vmatpush1.bf16.msra.mxu0 %v215
  %254 = vmatprep.subr.bf16.mxu0 %v213
  %255 = vmatpush1.bf16.msra.mxu0 %v212
  %256 = vmatprep.subr.bf16.mxu0 %v210
  %257 = vmatpush1.bf16.msra.mxu0 %v209
  %258 = vmatprep.subr.bf16.mxu0 %v207
  %259 = vmatpush1.bf16.msra.mxu0 %v206
  %260 = vmatprep.subr.bf16.mxu0 %v204
  %261 = vmatpush1.bf16.msra.mxu0 %v203
  %262 = vmatprep.subr.bf16.mxu0 %v201
  %263 = vmatpush1.bf16.msra.mxu0 %v200
  %264 = vmatprep.subr.bf16.mxu0 0
  %265 = vmatpush2.bf16.msra.mxu0 0
  %266 = vmatprep.subr.bf16.mxu0 0
  %267 = vmatpush2.bf16.msra.mxu0 0
  %268 = vmatprep.subr.bf16.mxu0 0
  %269 = vmatpush2.bf16.msra.mxu0 0
  %270 = vmatprep.subr.bf16.mxu0 0
  %271 = vmatpush2.bf16.msra.mxu0 0
  %272 = vmatprep.subr.bf16.mxu0 0
  %273 = vmatpush2.bf16.msra.mxu0 0
  %274 = vmatprep.subr.bf16.mxu0 0
  %275 = vmatpush2.bf16.msra.mxu0 0
  %276 = vmatprep.subr.bf16.mxu0 0
  %277 = vmatpush2.bf16.msra.mxu0 0
  %278 = vmatprep.subr.bf16.mxu0 0
  %279 = vmatpush2.bf16.msra.mxu0 0
  %280 = vmatprep.mubr.bf16.mxu0 0
  %281 = vmatmul.mubr.bf16.gmra.mxu0 %v112
  %v282 = vpop.f32.mrf.mxu0
  %v283 = vadd.f32 %v84, %v282
  %v284 = vpop.f32.mrf.mxu0
  %v285 = vadd.f32 %v88, %v284
  %v286 = vpop.f32.mrf.mxu0
  %v287 = vadd.f32 %v84, %v286
  %v288 = vpop.f32.mrf.mxu0
  %v289 = vadd.f32 %v88, %v288
  %290 = vmatprep.mubr.bf16.mxu0 0
  %291 = vmatmul.mubr.bf16.gmra.mxu0 %v113
  %v292 = vpop.f32.mrf.mxu0
  %v293 = vadd.f32 %v84, %v292
  %v294 = vpop.f32.mrf.mxu0
  %v295 = vadd.f32 %v88, %v294
  %v296 = vpop.f32.mrf.mxu0
  %v297 = vadd.f32 %v84, %v296
  %v298 = vpop.f32.mrf.mxu0
  %v299 = vadd.f32 %v88, %v298
  %300 = vmatprep.mubr.bf16.mxu0 0
  %301 = vmatmul.mubr.bf16.gmra.mxu0 %v114
  %v302 = vpop.f32.mrf.mxu0
  %v303 = vadd.f32 %v84, %v302
  %v304 = vpop.f32.mrf.mxu0
  %v305 = vadd.f32 %v88, %v304
  %v306 = vpop.f32.mrf.mxu0
  %v307 = vadd.f32 %v84, %v306
  %v308 = vpop.f32.mrf.mxu0
  %v309 = vadd.f32 %v88, %v308
  %310 = vmatprep.mubr.bf16.mxu0 0
  %311 = vmatmul.mubr.bf16.gmra.mxu0 %v115
  %v312 = vpop.f32.mrf.mxu0
  %v313 = vadd.f32 %v84, %v312
  %v314 = vpop.f32.mrf.mxu0
  %v315 = vadd.f32 %v88, %v314
  %v316 = vpop.f32.mrf.mxu0
  %v317 = vadd.f32 %v84, %v316
  %v318 = vpop.f32.mrf.mxu0
  %v319 = vadd.f32 %v88, %v318
  %320 = vdwg.mxu0
  %321 = vmatprep.subr.bf16.mxu0 0
  %322 = vmatpush1.bf16.msra.mxu0 %v223
  %323 = vmatprep.subr.bf16.mxu0 0
  %324 = vmatpush1.bf16.msra.mxu0 %v220
  %325 = vmatprep.subr.bf16.mxu0 0
  %326 = vmatpush1.bf16.msra.mxu0 %v217
  %327 = vmatprep.subr.bf16.mxu0 0
  %328 = vmatpush1.bf16.msra.mxu0 %v214
  %329 = vmatprep.subr.bf16.mxu0 0
  %330 = vmatpush1.bf16.msra.mxu0 %v211
  %331 = vmatprep.subr.bf16.mxu0 0
  %332 = vmatpush1.bf16.msra.mxu0 %v208
  %333 = vmatprep.subr.bf16.mxu0 0
  %334 = vmatpush1.bf16.msra.mxu0 %v205
  %335 = vmatprep.subr.bf16.mxu0 0
  %336 = vmatpush1.bf16.msra.mxu0 %v202
  %337 = vmatprep.subr.bf16.mxu0 0
  %338 = vmatpush2.bf16.msra.mxu0 0
  %339 = vmatprep.subr.bf16.mxu0 0
  %340 = vmatpush2.bf16.msra.mxu0 0
  %341 = vmatprep.subr.bf16.mxu0 0
  %342 = vmatpush2.bf16.msra.mxu0 0
  %343 = vmatprep.subr.bf16.mxu0 0
  %344 = vmatpush2.bf16.msra.mxu0 0
  %345 = vmatprep.subr.bf16.mxu0 0
  %346 = vmatpush2.bf16.msra.mxu0 0
  %347 = vmatprep.subr.bf16.mxu0 0
  %348 = vmatpush2.bf16.msra.mxu0 0
  %349 = vmatprep.subr.bf16.mxu0 0
  %350 = vmatpush2.bf16.msra.mxu0 0
  %351 = vmatprep.subr.bf16.mxu0 0
  %352 = vmatpush2.bf16.msra.mxu0 0
  %353 = vmatprep.mubr.bf16.mxu0 0
  %354 = vmatmul.mubr.bf16.gmra.mxu0 %v112
  %v355 = vpop.f32.mrf.mxu0
  %v356 = vadd.f32 %v92, %v355
  %v357 = vpop.f32.mrf.mxu0
  %v358 = vpop.f32.mrf.mxu0
  %v359 = vadd.f32 %v92, %v358
  %v360 = vpop.f32.mrf.mxu0
  %361 = vmatprep.mubr.bf16.mxu0 0
  %362 = vmatmul.mubr.bf16.gmra.mxu0 %v113
  %v363 = vpop.f32.mrf.mxu0
  %v364 = vadd.f32 %v92, %v363
  %v365 = vpop.f32.mrf.mxu0
  %v366 = vpop.f32.mrf.mxu0
  %v367 = vadd.f32 %v92, %v366
  %v368 = vpop.f32.mrf.mxu0
  %369 = vmatprep.mubr.bf16.mxu0 0
  %370 = vmatmul.mubr.bf16.gmra.mxu0 %v114
  %v371 = vpop.f32.mrf.mxu0
  %v372 = vadd.f32 %v92, %v371
  %v373 = vpop.f32.mrf.mxu0
  %v374 = vpop.f32.mrf.mxu0
  %v375 = vadd.f32 %v92, %v374
  %v376 = vpop.f32.mrf.mxu0
  %377 = vmatprep.mubr.bf16.mxu0 0
  %378 = vmatmul.mubr.bf16.gmra.mxu0 %v115
  %v379 = vpop.f32.mrf.mxu0
  %v380 = vadd.f32 %v92, %v379
  %v381 = vpop.f32.mrf.mxu0
  %v382 = vpop.f32.mrf.mxu0
  %v383 = vadd.f32 %v92, %v382
  %v384 = vpop.f32.mrf.mxu0
  %385 = vdwg.mxu0
  %386 = vst [vmem:[#allocation2] sm:$0xff] %v283
  %387 = vst [vmem:[#allocation2 + $0x8] sm:$0xff] %v285
  %388 = vst [vmem:[#allocation2 + $0x10] sm:$0xff] %v356
  %389 = vst [vmem:[#allocation2 + $0x18] sm:$0xff] %v287
  %390 = vst [vmem:[#allocation2 + $0x20] sm:$0xff] %v289
  %391 = vst [vmem:[#allocation2 + $0x28] sm:$0xff] %v359
  %392 = vst [vmem:[#allocation2 + $0x30] sm:$0xff] %v293
  %393 = vst [vmem:[#allocation2 + $0x38] sm:$0xff] %v295
  %394 = vst [vmem:[#allocation2 + $0x40] sm:$0xff] %v364
  %395 = vst [vmem:[#allocation2 + $0x48] sm:$0xff] %v297
  %396 = vst [vmem:[#allocation2 + $0x50] sm:$0xff] %v299
  %397 = vst [vmem:[#allocation2 + $0x58] sm:$0xff] %v367
  %398 = vst [vmem:[#allocation2 + $0x60] sm:$0xff] %v303
  %399 = vst [vmem:[#allocation2 + $0x68] sm:$0xff] %v305
  %400 = vst [vmem:[#allocation2 + $0x70] sm:$0xff] %v372
  %401 = vst [vmem:[#allocation2 + $0x78] sm:$0xff] %v307
  %402 = vst [vmem:[#allocation2 + $0x80] sm:$0xff] %v309
  %403 = vst [vmem:[#allocation2 + $0x88] sm:$0xff] %v375
  %404 = vst [vmem:[#allocation2 + $0x90] sm:$0xff] %v313
  %405 = vst [vmem:[#allocation2 + $0x98] sm:$0xff] %v315
  %406 = vst [vmem:[#allocation2 + $0xa0] sm:$0xff] %v380
  %407 = vst [vmem:[#allocation2 + $0xa8] sm:$0xff] %v317
  %408 = vst [vmem:[#allocation2 + $0xb0] sm:$0xff] %v319
  %409 = vst [vmem:[#allocation2 + $0xb8] sm:$0xff] %v383
  %410 = vst [vmem:[#allocation4] sm:$0xff] 0.0
  %v411 = vld [vmem:[#allocation4] sm:$0xff]
  %s412 = smul.u32 0, 3
  %s413 = smul.addr %s412, 8
  %s414 = scalar_lea.vmem [#allocation2], %s413
  %v415 = vld [vmem:[%s414] sm:$0xff]
  %v416 = vld [vmem:[%s414 + $0x8] sm:$0xff]
  %v417 = vld [vmem:[%s414 + $0x10] sm:$0xff]
  %v418 = vpack.c.bf16 %v411, %v411
  %v419 = vld [vmem:[%s2] sm:$0xff]
  %v420 = vld [vmem:[%s2 + $0x8] sm:$0xf]
  %v421 = vld [vmem:[%s2 + $0xc] sm:$0xff]
  %v422 = vld [vmem:[%s2 + $0x14] sm:$0xf]
  %v423 = vld [vmem:[%s2 + $0x18] sm:$0xff]
  %v424 = vld [vmem:[%s2 + $0x20] sm:$0xf]
  %v425 = vld [vmem:[%s2 + $0x24] sm:$0xff]
  %v426 = vld [vmem:[%s2 + $0x2c] sm:$0xf]
  %v427 = vld [vmem:[%s2 + $0x30] sm:$0xff]
  %v428 = vld [vmem:[%s2 + $0x38] sm:$0xf]
  %v429 = vld [vmem:[%s2 + $0x3c] sm:$0xff]
  %v430 = vld [vmem:[%s2 + $0x44] sm:$0xf]
  %v431 = vld [vmem:[%s2 + $0x48] sm:$0xff]
  %v432 = vld [vmem:[%s2 + $0x50] sm:$0xf]
  %v433 = vld [vmem:[%s2 + $0x54] sm:$0xff]
  %v434 = vld [vmem:[%s2 + $0x5c] sm:$0xf]
  %v435 = vld [vmem:[%s2 + $0x60] sm:$0xff]
  %v436 = vld [vmem:[%s2 + $0x68] sm:$0xf]
  %v437 = vld [vmem:[%s2 + $0x6c] sm:$0xff]
  %v438 = vld [vmem:[%s2 + $0x74] sm:$0xf]
  %v439 = vld [vmem:[%s2 + $0x78] sm:$0xff]
  %v440 = vld [vmem:[%s2 + $0x80] sm:$0xf]
  %v441 = vld [vmem:[%s2 + $0x84] sm:$0xff]
  %v442 = vld [vmem:[%s2 + $0x8c] sm:$0xf]
  %v443 = vld [vmem:[%s2 + $0x90] sm:$0xff]
  %v444 = vld [vmem:[%s2 + $0x98] sm:$0xf]
  %v445 = vld [vmem:[%s2 + $0x9c] sm:$0xff]
  %v446 = vld [vmem:[%s2 + $0xa4] sm:$0xf]
  %v447 = vld [vmem:[%s2 + $0xa8] sm:$0xff]
  %v448 = vld [vmem:[%s2 + $0xb0] sm:$0xf]
  %v449 = vld [vmem:[%s2 + $0xb4] sm:$0xff]
  %v450 = vld [vmem:[%s2 + $0xbc] sm:$0xf]
  %v483 = vunpack.c.l.b16 %v419
  %v484 = vunpack.c.h.b16 %v419
  %v485 = vunpack.c.l.b16 %v420
  %v486 = vunpack.c.l.b16 %v421
  %v487 = vunpack.c.h.b16 %v421
  %v488 = vunpack.c.l.b16 %v422
  %v489 = vunpack.c.l.b16 %v423
  %v490 = vunpack.c.h.b16 %v423
  %v491 = vunpack.c.l.b16 %v424
  %v492 = vunpack.c.l.b16 %v425
  %v493 = vunpack.c.h.b16 %v425
  %v494 = vunpack.c.l.b16 %v426
  %v495 = vunpack.c.l.b16 %v427
  %v496 = vunpack.c.h.b16 %v427
  %v497 = vunpack.c.l.b16 %v428
  %v498 = vunpack.c.l.b16 %v429
  %v499 = vunpack.c.h.b16 %v429
  %v500 = vunpack.c.l.b16 %v430
  %v501 = vunpack.c.l.b16 %v431
  %v502 = vunpack.c.h.b16 %v431
  %v503 = vunpack.c.l.b16 %v432
  %v504 = vunpack.c.l.b16 %v433
  %v505 = vunpack.c.h.b16 %v433
  %v506 = vunpack.c.l.b16 %v434
  %v507 = vunpack.c.l.b16 %v435
  %v508 = vunpack.c.h.b16 %v435
  %v509 = vunpack.c.l.b16 %v436
  %v510 = vunpack.c.l.b16 %v437
  %v511 = vunpack.c.h.b16 %v437
  %v512 = vunpack.c.l.b16 %v438
  %v513 = vunpack.c.l.b16 %v439
  %v514 = vunpack.c.h.b16 %v439
  %v515 = vunpack.c.l.b16 %v440
  %v516 = vunpack.c.l.b16 %v441
  %v517 = vunpack.c.h.b16 %v441
  %v518 = vunpack.c.l.b16 %v442
  %v519 = vunpack.c.l.b16 %v443
  %v520 = vunpack.c.h.b16 %v443
  %v521 = vunpack.c.l.b16 %v444
  %v522 = vunpack.c.l.b16 %v445
  %v523 = vunpack.c.h.b16 %v445
  %v524 = vunpack.c.l.b16 %v446
  %v525 = vunpack.c.l.b16 %v447
  %v526 = vunpack.c.h.b16 %v447
  %v527 = vunpack.c.l.b16 %v448
  %v528 = vunpack.c.l.b16 %v449
  %v529 = vunpack.c.h.b16 %v449
  %v530 = vunpack.c.l.b16 %v450
  %v531 = vpack.c.b16 %v486, %v483
  %v532 = vpack.c.b16 %v487, %v484
  %v533 = vpack.c.b16 %v488, %v485
  %v534 = vpack.c.b16 %v492, %v489
  %v535 = vpack.c.b16 %v493, %v490
  %v536 = vpack.c.b16 %v494, %v491
  %v537 = vpack.c.b16 %v498, %v495
  %v538 = vpack.c.b16 %v499, %v496
  %v539 = vpack.c.b16 %v500, %v497
  %v540 = vpack.c.b16 %v504, %v501
  %v541 = vpack.c.b16 %v505, %v502
  %v542 = vpack.c.b16 %v506, %v503
  %v543 = vpack.c.b16 %v510, %v507
  %v544 = vpack.c.b16 %v511, %v508
  %v545 = vpack.c.b16 %v512, %v509
  %v546 = vpack.c.b16 %v516, %v513
  %v547 = vpack.c.b16 %v517, %v514
  %v548 = vpack.c.b16 %v518, %v515
  %v549 = vpack.c.b16 %v522, %v519
  %v550 = vpack.c.b16 %v523, %v520
  %v551 = vpack.c.b16 %v524, %v521
  %v552 = vpack.c.b16 %v528, %v525
  %v553 = vpack.c.b16 %v529, %v526
  %v554 = vpack.c.b16 %v530, %v527
  %579 = vmatprep.subr.bf16.mxu0 %v553
  %580 = vmatpush1.bf16.msra.mxu0 %v552
  %581 = vmatprep.subr.bf16.mxu0 %v550
  %582 = vmatpush1.bf16.msra.mxu0 %v549
  %583 = vmatprep.subr.bf16.mxu0 %v547
  %584 = vmatpush1.bf16.msra.mxu0 %v546
  %585 = vmatprep.subr.bf16.mxu0 %v544
  %586 = vmatpush1.bf16.msra.mxu0 %v543
  %587 = vmatprep.subr.bf16.mxu0 %v541
  %588 = vmatpush1.bf16.msra.mxu0 %v540
  %589 = vmatprep.subr.bf16.mxu0 %v538
  %590 = vmatpush1.bf16.msra.mxu0 %v537
  %591 = vmatprep.subr.bf16.mxu0 %v535
  %592 = vmatpush1.bf16.msra.mxu0 %v534
  %593 = vmatprep.subr.bf16.mxu0 %v532
  %594 = vmatpush1.bf16.msra.mxu0 %v531
  %595 = vmatprep.subr.bf16.mxu0 0
  %596 = vmatpush2.bf16.msra.mxu0 0
  %597 = vmatprep.subr.bf16.mxu0 0
  %598 = vmatpush2.bf16.msra.mxu0 0
  %599 = vmatprep.subr.bf16.mxu0 0
  %600 = vmatpush2.bf16.msra.mxu0 0
  %601 = vmatprep.subr.bf16.mxu0 0
  %602 = vmatpush2.bf16.msra.mxu0 0
  %603 = vmatprep.subr.bf16.mxu0 0
  %604 = vmatpush2.bf16.msra.mxu0 0
  %605 = vmatprep.subr.bf16.mxu0 0
  %606 = vmatpush2.bf16.msra.mxu0 0
  %607 = vmatprep.subr.bf16.mxu0 0
  %608 = vmatpush2.bf16.msra.mxu0 0
  %609 = vmatprep.subr.bf16.mxu0 0
  %610 = vmatpush2.bf16.msra.mxu0 0
  %611 = vmatprep.mubr.bf16.mxu0 0
  %612 = vmatmul.mubr.bf16.gmra.mxu0 %v418
  %v613 = vpop.f32.mrf.mxu0
  %v614 = vadd.f32 0.0, %v613
  %v615 = vpop.f32.mrf.mxu0
  %v616 = vadd.f32 0.0, %v615
  %v617 = vpop.f32.mrf.mxu0
  %v618 = vpop.f32.mrf.mxu0
  %619 = vdwg.mxu0
  %620 = vmatprep.subr.bf16.mxu0 0
  %621 = vmatpush1.bf16.msra.mxu0 %v554
  %622 = vmatprep.subr.bf16.mxu0 0
  %623 = vmatpush1.bf16.msra.mxu0 %v551
  %624 = vmatprep.subr.bf16.mxu0 0
  %625 = vmatpush1.bf16.msra.mxu0 %v548
  %626 = vmatprep.subr.bf16.mxu0 0
  %627 = vmatpush1.bf16.msra.mxu0 %v545
  %628 = vmatprep.subr.bf16.mxu0 0
  %629 = vmatpush1.bf16.msra.mxu0 %v542
  %630 = vmatprep.subr.bf16.mxu0 0
  %631 = vmatpush1.bf16.msra.mxu0 %v539
  %632 = vmatprep.subr.bf16.mxu0 0
  %633 = vmatpush1.bf16.msra.mxu0 %v536
  %634 = vmatprep.subr.bf16.mxu0 0
  %635 = vmatpush1.bf16.msra.mxu0 %v533
  %636 = vmatprep.subr.bf16.mxu0 0
  %637 = vmatpush2.bf16.msra.mxu0 0
  %638 = vmatprep.subr.bf16.mxu0 0
  %639 = vmatpush2.bf16.msra.mxu0 0
  %640 = vmatprep.subr.bf16.mxu0 0
  %641 = vmatpush2.bf16.msra.mxu0 0
  %642 = vmatprep.subr.bf16.mxu0 0
  %643 = vmatpush2.bf16.msra.mxu0 0
  %644 = vmatprep.subr.bf16.mxu0 0
  %645 = vmatpush2.bf16.msra.mxu0 0
  %646 = vmatprep.subr.bf16.mxu0 0
  %647 = vmatpush2.bf16.msra.mxu0 0
  %648 = vmatprep.subr.bf16.mxu0 0
  %649 = vmatpush2.bf16.msra.mxu0 0
  %650 = vmatprep.subr.bf16.mxu0 0
  %651 = vmatpush2.bf16.msra.mxu0 0
  %652 = vmatprep.mubr.bf16.mxu0 0
  %653 = vmatmul.mubr.bf16.gmra.mxu0 %v418
  %v654 = vpop.f32.mrf.mxu0
  %v655 = vadd.f32 0.0, %v654
  %v656 = vpop.f32.mrf.mxu0
  %v657 = vpop.f32.mrf.mxu0
  %v658 = vpop.f32.mrf.mxu0
  %659 = vdwg.mxu0
  %v660 = vadd.f32 %v415, %v614
  %v661 = vxor.u32 %v660, 2147483648
  %v662 = vmul.f32 %v661, 1.442695
  %v663 = vpow.pop %v662
  %v664 = vadd.f32 %v663, 1.0
  %v665 = vrcp.pop %v664
  %v666 = vmul.f32 1.0, %v665
  %v667 = vadd.f32 %v416, %v616
  %v668 = vxor.u32 %v667, 2147483648
  %v669 = vmul.f32 %v668, 1.442695
  %v670 = vpow.pop %v669
  %v671 = vadd.f32 %v670, 1.0
  %v672 = vrcp.pop %v671
  %v673 = vmul.f32 1.0, %v672
  %v674 = vld [vmem:[%s4] sm:$0x1]
  %v676 = vlaneseq
  %v677 = vshrl.u32 %v676, 7
  %v678 = vsub.s32 0, %v677
  %v679 = vrot.slane %v674, %v678
  %v681 = vadd.f32 %v655, %v679
  %v682 = vmul.f32 %v666, %v681
  %v683 = vadd.f32 %v417, %v682
  %v684 = vtanh.pop %v683
  %v685 = vsub.f32 1.0, %v673
  %v686 = vmul.f32 %v685, %v684
  %v687 = vmul.f32 %v673, %v411
  %v688 = vadd.f32 %v686, %v687
  %689 = vst [vmem:[#allocation4] sm:$0xff] %v688
  %690 = vst [vmem:[#allocation3] sm:$0xff] %v688
  %v691 = vld [vmem:[#allocation4] sm:$0xff]
  %s692 = smul.u32 1, 3
  %s693 = smul.addr %s692, 8
  %s694 = scalar_lea.vmem [#allocation2], %s693
  %v695 = vld [vmem:[%s694] sm:$0xff]
  %v696 = vld [vmem:[%s694 + $0x8] sm:$0xff]
  %v697 = vld [vmem:[%s694 + $0x10] sm:$0xff]
  %v698 = vpack.c.bf16 %v691, %v691
  %v699 = vld [vmem:[%s2] sm:$0xff]
  %v700 = vld [vmem:[%s2 + $0x8] sm:$0xf]
  %v701 = vld [vmem:[%s2 + $0xc] sm:$0xff]
  %v702 = vld [vmem:[%s2 + $0x14] sm:$0xf]
  %v703 = vld [vmem:[%s2 + $0x18] sm:$0xff]
  %v704 = vld [vmem:[%s2 + $0x20] sm:$0xf]
  %v705 = vld [vmem:[%s2 + $0x24] sm:$0xff]
  %v706 = vld [vmem:[%s2 + $0x2c] sm:$0xf]
  %v707 = vld [vmem:[%s2 + $0x30] sm:$0xff]
  %v708 = vld [vmem:[%s2 + $0x38] sm:$0xf]
  %v709 = vld [vmem:[%s2 + $0x3c] sm:$0xff]
  %v710 = vld [vmem:[%s2 + $0x44] sm:$0xf]
  %v711 = vld [vmem:[%s2 + $0x48] sm:$0xff]
  %v712 = vld [vmem:[%s2 + $0x50] sm:$0xf]
  %v713 = vld [vmem:[%s2 + $0x54] sm:$0xff]
  %v714 = vld [vmem:[%s2 + $0x5c] sm:$0xf]
  %v715 = vld [vmem:[%s2 + $0x60] sm:$0xff]
  %v716 = vld [vmem:[%s2 + $0x68] sm:$0xf]
  %v717 = vld [vmem:[%s2 + $0x6c] sm:$0xff]
  %v718 = vld [vmem:[%s2 + $0x74] sm:$0xf]
  %v719 = vld [vmem:[%s2 + $0x78] sm:$0xff]
  %v720 = vld [vmem:[%s2 + $0x80] sm:$0xf]
  %v721 = vld [vmem:[%s2 + $0x84] sm:$0xff]
  %v722 = vld [vmem:[%s2 + $0x8c] sm:$0xf]
  %v723 = vld [vmem:[%s2 + $0x90] sm:$0xff]
  %v724 = vld [vmem:[%s2 + $0x98] sm:$0xf]
  %v725 = vld [vmem:[%s2 + $0x9c] sm:$0xff]
  %v726 = vld [vmem:[%s2 + $0xa4] sm:$0xf]
  %v727 = vld [vmem:[%s2 + $0xa8] sm:$0xff]
  %v728 = vld [vmem:[%s2 + $0xb0] sm:$0xf]
  %v729 = vld [vmem:[%s2 + $0xb4] sm:$0xff]
  %v730 = vld [vmem:[%s2 + $0xbc] sm:$0xf]
  %v763 = vunpack.c.l.b16 %v699
  %v764 = vunpack.c.h.b16 %v699
  %v765 = vunpack.c.l.b16 %v700
  %v766 = vunpack.c.l.b16 %v701
  %v767 = vunpack.c.h.b16 %v701
  %v768 = vunpack.c.l.b16 %v702
  %v769 = vunpack.c.l.b16 %v703
  %v770 = vunpack.c.h.b16 %v703
  %v771 = vunpack.c.l.b16 %v704
  %v772 = vunpack.c.l.b16 %v705
  %v773 = vunpack.c.h.b16 %v705
  %v774 = vunpack.c.l.b16 %v706
  %v775 = vunpack.c.l.b16 %v707
  %v776 = vunpack.c.h.b16 %v707
  %v777 = vunpack.c.l.b16 %v708
  %v778 = vunpack.c.l.b16 %v709
  %v779 = vunpack.c.h.b16 %v709
  %v780 = vunpack.c.l.b16 %v710
  %v781 = vunpack.c.l.b16 %v711
  %v782 = vunpack.c.h.b16 %v711
  %v783 = vunpack.c.l.b16 %v712
  %v784 = vunpack.c.l.b16 %v713
  %v785 = vunpack.c.h.b16 %v713
  %v786 = vunpack.c.l.b16 %v714
  %v787 = vunpack.c.l.b16 %v715
  %v788 = vunpack.c.h.b16 %v715
  %v789 = vunpack.c.l.b16 %v716
  %v790 = vunpack.c.l.b16 %v717
  %v791 = vunpack.c.h.b16 %v717
  %v792 = vunpack.c.l.b16 %v718
  %v793 = vunpack.c.l.b16 %v719
  %v794 = vunpack.c.h.b16 %v719
  %v795 = vunpack.c.l.b16 %v720
  %v796 = vunpack.c.l.b16 %v721
  %v797 = vunpack.c.h.b16 %v721
  %v798 = vunpack.c.l.b16 %v722
  %v799 = vunpack.c.l.b16 %v723
  %v800 = vunpack.c.h.b16 %v723
  %v801 = vunpack.c.l.b16 %v724
  %v802 = vunpack.c.l.b16 %v725
  %v803 = vunpack.c.h.b16 %v725
  %v804 = vunpack.c.l.b16 %v726
  %v805 = vunpack.c.l.b16 %v727
  %v806 = vunpack.c.h.b16 %v727
  %v807 = vunpack.c.l.b16 %v728
  %v808 = vunpack.c.l.b16 %v729
  %v809 = vunpack.c.h.b16 %v729
  %v810 = vunpack.c.l.b16 %v730
  %v811 = vpack.c.b16 %v766, %v763
  %v812 = vpack.c.b16 %v767, %v764
  %v813 = vpack.c.b16 %v768, %v765
  %v814 = vpack.c.b16 %v772, %v769
  %v815 = vpack.c.b16 %v773, %v770
  %v816 = vpack.c.b16 %v774, %v771
  %v817 = vpack.c.b16 %v778, %v775
  %v818 = vpack.c.b16 %v779, %v776
  %v819 = vpack.c.b16 %v780, %v777
  %v820 = vpack.c.b16 %v784, %v781
  %v821 = vpack.c.b16 %v785, %v782
  %v822 = vpack.c.b16 %v786, %v783
  %v823 = vpack.c.b16 %v790, %v787
  %v824 = vpack.c.b16 %v791, %v788
  %v825 = vpack.c.b16 %v792, %v789
  %v826 = vpack.c.b16 %v796, %v793
  %v827 = vpack.c.b16 %v797, %v794
  %v828 = vpack.c.b16 %v798, %v795
  %v829 = vpack.c.b16 %v802, %v799
  %v830 = vpack.c.b16 %v803, %v800
  %v831 = vpack.c.b16 %v804, %v801
  %v832 = vpack.c.b16 %v808, %v805
  %v833 = vpack.c.b16 %v809, %v806
  %v834 = vpack.c.b16 %v810, %v807
  %859 = vmatprep.subr.bf16.mxu0 %v833
  %860 = vmatpush1.bf16.msra.mxu0 %v832
  %861 = vmatprep.subr.bf16.mxu0 %v830
  %862 = vmatpush1.bf16.msra.mxu0 %v829
  %863 = vmatprep.subr.bf16.mxu0 %v827
  %864 = vmatpush1.bf16.msra.mxu0 %v826
  %865 = vmatprep.subr.bf16.mxu0 %v824
  %866 = vmatpush1.bf16.msra.mxu0 %v823
  %867 = vmatprep.subr.bf16.mxu0 %v821
  %868 = vmatpush1.bf16.msra.mxu0 %v820
  %869 = vmatprep.subr.bf16.mxu0 %v818
  %870 = vmatpush1.bf16.msra.mxu0 %v817
  %871 = vmatprep.subr.bf16.mxu0 %v815
  %872 = vmatpush1.bf16.msra.mxu0 %v814
  %873 = vmatprep.subr.bf16.mxu0 %v812
  %874 = vmatpush1.bf16.msra.mxu0 %v811
  %875 = vmatprep.subr.bf16.mxu0 0
  %876 = vmatpush2.bf16.msra.mxu0 0
  %877 = vmatprep.subr.bf16.mxu0 0
  %878 = vmatpush2.bf16.msra.mxu0 0
  %879 = vmatprep.subr.bf16.mxu0 0
  %880 = vmatpush2.bf16.msra.mxu0 0
  %881 = vmatprep.subr.bf16.mxu0 0
  %882 = vmatpush2.bf16.msra.mxu0 0
  %883 = vmatprep.subr.bf16.mxu0 0
  %884 = vmatpush2.bf16.msra.mxu0 0
  %885 = vmatprep.subr.bf16.mxu0 0
  %886 = vmatpush2.bf16.msra.mxu0 0
  %887 = vmatprep.subr.bf16.mxu0 0
  %888 = vmatpush2.bf16.msra.mxu0 0
  %889 = vmatprep.subr.bf16.mxu0 0
  %890 = vmatpush2.bf16.msra.mxu0 0
  %891 = vmatprep.mubr.bf16.mxu0 0
  %892 = vmatmul.mubr.bf16.gmra.mxu0 %v698
  %v893 = vpop.f32.mrf.mxu0
  %v894 = vadd.f32 0.0, %v893
  %v895 = vpop.f32.mrf.mxu0
  %v896 = vadd.f32 0.0, %v895
  %v897 = vpop.f32.mrf.mxu0
  %v898 = vpop.f32.mrf.mxu0
  %899 = vdwg.mxu0
  %900 = vmatprep.subr.bf16.mxu0 0
  %901 = vmatpush1.bf16.msra.mxu0 %v834
  %902 = vmatprep.subr.bf16.mxu0 0
  %903 = vmatpush1.bf16.msra.mxu0 %v831
  %904 = vmatprep.subr.bf16.mxu0 0
  %905 = vmatpush1.bf16.msra.mxu0 %v828
  %906 = vmatprep.subr.bf16.mxu0 0
  %907 = vmatpush1.bf16.msra.mxu0 %v825
  %908 = vmatprep.subr.bf16.mxu0 0
  %909 = vmatpush1.bf16.msra.mxu0 %v822
  %910 = vmatprep.subr.bf16.mxu0 0
  %911 = vmatpush1.bf16.msra.mxu0 %v819
  %912 = vmatprep.subr.bf16.mxu0 0
  %913 = vmatpush1.bf16.msra.mxu0 %v816
  %914 = vmatprep.subr.bf16.mxu0 0
  %915 = vmatpush1.bf16.msra.mxu0 %v813
  %916 = vmatprep.subr.bf16.mxu0 0
  %917 = vmatpush2.bf16.msra.mxu0 0
  %918 = vmatprep.subr.bf16.mxu0 0
  %919 = vmatpush2.bf16.msra.mxu0 0
  %920 = vmatprep.subr.bf16.mxu0 0
  %921 = vmatpush2.bf16.msra.mxu0 0
  %922 = vmatprep.subr.bf16.mxu0 0
  %923 = vmatpush2.bf16.msra.mxu0 0
  %924 = vmatprep.subr.bf16.mxu0 0
  %925 = vmatpush2.bf16.msra.mxu0 0
  %926 = vmatprep.subr.bf16.mxu0 0
  %927 = vmatpush2.bf16.msra.mxu0 0
  %928 = vmatprep.subr.bf16.mxu0 0
  %929 = vmatpush2.bf16.msra.mxu0 0
  %930 = vmatprep.subr.bf16.mxu0 0
  %931 = vmatpush2.bf16.msra.mxu0 0
  %932 = vmatprep.mubr.bf16.mxu0 0
  %933 = vmatmul.mubr.bf16.gmra.mxu0 %v698
  %v934 = vpop.f32.mrf.mxu0
  %v935 = vadd.f32 0.0, %v934
  %v936 = vpop.f32.mrf.mxu0
  %v937 = vpop.f32.mrf.mxu0
  %v938 = vpop.f32.mrf.mxu0
  %939 = vdwg.mxu0
  %v940 = vadd.f32 %v695, %v894
  %v941 = vxor.u32 %v940, 2147483648
  %v942 = vmul.f32 %v941, 1.442695
  %v943 = vpow.pop %v942
  %v944 = vadd.f32 %v943, 1.0
  %v945 = vrcp.pop %v944
  %v946 = vmul.f32 1.0, %v945
  %v947 = vadd.f32 %v696, %v896
  %v948 = vxor.u32 %v947, 2147483648
  %v949 = vmul.f32 %v948, 1.442695
  %v950 = vpow.pop %v949
  %v951 = vadd.f32 %v950, 1.0
  %v952 = vrcp.pop %v951
  %v953 = vmul.f32 1.0, %v952
  %v954 = vld [vmem:[%s4] sm:$0x1]
  %v956 = vlaneseq
  %v957 = vshrl.u32 %v956, 7
  %v958 = vsub.s32 0, %v957
  %v959 = vrot.slane %v954, %v958
  %v961 = vadd.f32 %v935, %v959
  %v962 = vmul.f32 %v946, %v961
  %v963 = vadd.f32 %v697, %v962
  %v964 = vtanh.pop %v963
  %v965 = vsub.f32 1.0, %v953
  %v966 = vmul.f32 %v965, %v964
  %v967 = vmul.f32 %v953, %v691
  %v968 = vadd.f32 %v966, %v967
  %969 = vst [vmem:[#allocation4] sm:$0xff] %v968
  %s970 = scalar_lea.vmem [#allocation3], 8
  %971 = vst [vmem:[%s970] sm:$0xff] %v968
  %v972 = vld [vmem:[#allocation4] sm:$0xff]
  %s973 = smul.u32 2, 3
  %s974 = smul.addr %s973, 8
  %s975 = scalar_lea.vmem [#allocation2], %s974
  %v976 = vld [vmem:[%s975] sm:$0xff]
  %v977 = vld [vmem:[%s975 + $0x8] sm:$0xff]
  %v978 = vld [vmem:[%s975 + $0x10] sm:$0xff]
  %v979 = vpack.c.bf16 %v972, %v972
  %v980 = vld [vmem:[%s2] sm:$0xff]
  %v981 = vld [vmem:[%s2 + $0x8] sm:$0xf]
  %v982 = vld [vmem:[%s2 + $0xc] sm:$0xff]
  %v983 = vld [vmem:[%s2 + $0x14] sm:$0xf]
  %v984 = vld [vmem:[%s2 + $0x18] sm:$0xff]
  %v985 = vld [vmem:[%s2 + $0x20] sm:$0xf]
  %v986 = vld [vmem:[%s2 + $0x24] sm:$0xff]
  %v987 = vld [vmem:[%s2 + $0x2c] sm:$0xf]
  %v988 = vld [vmem:[%s2 + $0x30] sm:$0xff]
  %v989 = vld [vmem:[%s2 + $0x38] sm:$0xf]
  %v990 = vld [vmem:[%s2 + $0x3c] sm:$0xff]
  %v991 = vld [vmem:[%s2 + $0x44] sm:$0xf]
  %v992 = vld [vmem:[%s2 + $0x48] sm:$0xff]
  %v993 = vld [vmem:[%s2 + $0x50] sm:$0xf]
  %v994 = vld [vmem:[%s2 + $0x54] sm:$0xff]
  %v995 = vld [vmem:[%s2 + $0x5c] sm:$0xf]
  %v996 = vld [vmem:[%s2 + $0x60] sm:$0xff]
  %v997 = vld [vmem:[%s2 + $0x68] sm:$0xf]
  %v998 = vld [vmem:[%s2 + $0x6c] sm:$0xff]
  %v999 = vld [vmem:[%s2 + $0x74] sm:$0xf]
  %v1000 = vld [vmem:[%s2 + $0x78] sm:$0xff]
  %v1001 = vld [vmem:[%s2 + $0x80] sm:$0xf]
  %v1002 = vld [vmem:[%s2 + $0x84] sm:$0xff]
  %v1003 = vld [vmem:[%s2 + $0x8c] sm:$0xf]
  %v1004 = vld [vmem:[%s2 + $0x90] sm:$0xff]
  %v1005 = vld [vmem:[%s2 + $0x98] sm:$0xf]
  %v1006 = vld [vmem:[%s2 + $0x9c] sm:$0xff]
  %v1007 = vld [vmem:[%s2 + $0xa4] sm:$0xf]
  %v1008 = vld [vmem:[%s2 + $0xa8] sm:$0xff]
  %v1009 = vld [vmem:[%s2 + $0xb0] sm:$0xf]
  %v1010 = vld [vmem:[%s2 + $0xb4] sm:$0xff]
  %v1011 = vld [vmem:[%s2 + $0xbc] sm:$0xf]
  %v1044 = vunpack.c.l.b16 %v980
  %v1045 = vunpack.c.h.b16 %v980
  %v1046 = vunpack.c.l.b16 %v981
  %v1047 = vunpack.c.l.b16 %v982
  %v1048 = vunpack.c.h.b16 %v982
  %v1049 = vunpack.c.l.b16 %v983
  %v1050 = vunpack.c.l.b16 %v984
  %v1051 = vunpack.c.h.b16 %v984
  %v1052 = vunpack.c.l.b16 %v985
  %v1053 = vunpack.c.l.b16 %v986
  %v1054 = vunpack.c.h.b16 %v986
  %v1055 = vunpack.c.l.b16 %v987
  %v1056 = vunpack.c.l.b16 %v988
  %v1057 = vunpack.c.h.b16 %v988
  %v1058 = vunpack.c.l.b16 %v989
  %v1059 = vunpack.c.l.b16 %v990
  %v1060 = vunpack.c.h.b16 %v990
  %v1061 = vunpack.c.l.b16 %v991
  %v1062 = vunpack.c.l.b16 %v992
  %v1063 = vunpack.c.h.b16 %v992
  %v1064 = vunpack.c.l.b16 %v993
  %v1065 = vunpack.c.l.b16 %v994
  %v1066 = vunpack.c.h.b16 %v994
  %v1067 = vunpack.c.l.b16 %v995
  %v1068 = vunpack.c.l.b16 %v996
  %v1069 = vunpack.c.h.b16 %v996
  %v1070 = vunpack.c.l.b16 %v997
  %v1071 = vunpack.c.l.b16 %v998
  %v1072 = vunpack.c.h.b16 %v998
  %v1073 = vunpack.c.l.b16 %v999
  %v1074 = vunpack.c.l.b16 %v1000
  %v1075 = vunpack.c.h.b16 %v1000
  %v1076 = vunpack.c.l.b16 %v1001
  %v1077 = vunpack.c.l.b16 %v1002
  %v1078 = vunpack.c.h.b16 %v1002
  %v1079 = vunpack.c.l.b16 %v1003
  %v1080 = vunpack.c.l.b16 %v1004
  %v1081 = vunpack.c.h.b16 %v1004
  %v1082 = vunpack.c.l.b16 %v1005
  %v1083 = vunpack.c.l.b16 %v1006
  %v1084 = vunpack.c.h.b16 %v1006
  %v1085 = vunpack.c.l.b16 %v1007
  %v1086 = vunpack.c.l.b16 %v1008
  %v1087 = vunpack.c.h.b16 %v1008
  %v1088 = vunpack.c.l.b16 %v1009
  %v1089 = vunpack.c.l.b16 %v1010
  %v1090 = vunpack.c.h.b16 %v1010
  %v1091 = vunpack.c.l.b16 %v1011
  %v1092 = vpack.c.b16 %v1047, %v1044
  %v1093 = vpack.c.b16 %v1048, %v1045
  %v1094 = vpack.c.b16 %v1049, %v1046
  %v1095 = vpack.c.b16 %v1053, %v1050
  %v1096 = vpack.c.b16 %v1054, %v1051
  %v1097 = vpack.c.b16 %v1055, %v1052
  %v1098 = vpack.c.b16 %v1059, %v1056
  %v1099 = vpack.c.b16 %v1060, %v1057
  %v1100 = vpack.c.b16 %v1061, %v1058
  %v1101 = vpack.c.b16 %v1065, %v1062
  %v1102 = vpack.c.b16 %v1066, %v1063
  %v1103 = vpack.c.b16 %v1067, %v1064
  %v1104 = vpack.c.b16 %v1071, %v1068
  %v1105 = vpack.c.b16 %v1072, %v1069
  %v1106 = vpack.c.b16 %v1073, %v1070
  %v1107 = vpack.c.b16 %v1077, %v1074
  %v1108 = vpack.c.b16 %v1078, %v1075
  %v1109 = vpack.c.b16 %v1079, %v1076
  %v1110 = vpack.c.b16 %v1083, %v1080
  %v1111 = vpack.c.b16 %v1084, %v1081
  %v1112 = vpack.c.b16 %v1085, %v1082
  %v1113 = vpack.c.b16 %v1089, %v1086
  %v1114 = vpack.c.b16 %v1090, %v1087
  %v1115 = vpack.c.b16 %v1091, %v1088
  %1140 = vmatprep.subr.bf16.mxu0 %v1114
  %1141 = vmatpush1.bf16.msra.mxu0 %v1113
  %1142 = vmatprep.subr.bf16.mxu0 %v1111
  %1143 = vmatpush1.bf16.msra.mxu0 %v1110
  %1144 = vmatprep.subr.bf16.mxu0 %v1108
  %1145 = vmatpush1.bf16.msra.mxu0 %v1107
  %1146 = vmatprep.subr.bf16.mxu0 %v1105
  %1147 = vmatpush1.bf16.msra.mxu0 %v1104
  %1148 = vmatprep.subr.bf16.mxu0 %v1102
  %1149 = vmatpush1.bf16.msra.mxu0 %v1101
  %1150 = vmatprep.subr.bf16.mxu0 %v1099
  %1151 = vmatpush1.bf16.msra.mxu0 %v1098
  %1152 = vmatprep.subr.bf16.mxu0 %v1096
  %1153 = vmatpush1.bf16.msra.mxu0 %v1095
  %1154 = vmatprep.subr.bf16.mxu0 %v1093
  %1155 = vmatpush1.bf16.msra.mxu0 %v1092
  %1156 = vmatprep.subr.bf16.mxu0 0
  %1157 = vmatpush2.bf16.msra.mxu0 0
  %1158 = vmatprep.subr.bf16.mxu0 0
  %1159 = vmatpush2.bf16.msra.mxu0 0
  %1160 = vmatprep.subr.bf16.mxu0 0
  %1161 = vmatpush2.bf16.msra.mxu0 0
  %1162 = vmatprep.subr.bf16.mxu0 0
  %1163 = vmatpush2.bf16.msra.mxu0 0
  %1164 = vmatprep.subr.bf16.mxu0 0
  %1165 = vmatpush2.bf16.msra.mxu0 0
  %1166 = vmatprep.subr.bf16.mxu0 0
  %1167 = vmatpush2.bf16.msra.mxu0 0
  %1168 = vmatprep.subr.bf16.mxu0 0
  %1169 = vmatpush2.bf16.msra.mxu0 0
  %1170 = vmatprep.subr.bf16.mxu0 0
  %1171 = vmatpush2.bf16.msra.mxu0 0
  %1172 = vmatprep.mubr.bf16.mxu0 0
  %1173 = vmatmul.mubr.bf16.gmra.mxu0 %v979
  %v1174 = vpop.f32.mrf.mxu0
  %v1175 = vadd.f32 0.0, %v1174
  %v1176 = vpop.f32.mrf.mxu0
  %v1177 = vadd.f32 0.0, %v1176
  %v1178 = vpop.f32.mrf.mxu0
  %v1179 = vpop.f32.mrf.mxu0
  %1180 = vdwg.mxu0
  %1181 = vmatprep.subr.bf16.mxu0 0
  %1182 = vmatpush1.bf16.msra.mxu0 %v1115
  %1183 = vmatprep.subr.bf16.mxu0 0
  %1184 = vmatpush1.bf16.msra.mxu0 %v1112
  %1185 = vmatprep.subr.bf16.mxu0 0
  %1186 = vmatpush1.bf16.msra.mxu0 %v1109
  %1187 = vmatprep.subr.bf16.mxu0 0
  %1188 = vmatpush1.bf16.msra.mxu0 %v1106
  %1189 = vmatprep.subr.bf16.mxu0 0
  %1190 = vmatpush1.bf16.msra.mxu0 %v1103
  %1191 = vmatprep.subr.bf16.mxu0 0
  %1192 = vmatpush1.bf16.msra.mxu0 %v1100
  %1193 = vmatprep.subr.bf16.mxu0 0
  %1194 = vmatpush1.bf16.msra.mxu0 %v1097
  %1195 = vmatprep.subr.bf16.mxu0 0
  %1196 = vmatpush1.bf16.msra.mxu0 %v1094
  %1197 = vmatprep.subr.bf16.mxu0 0
  %1198 = vmatpush2.bf16.msra.mxu0 0
  %1199 = vmatprep.subr.bf16.mxu0 0
  %1200 = vmatpush2.bf16.msra.mxu0 0
  %1201 = vmatprep.subr.bf16.mxu0 0
  %1202 = vmatpush2.bf16.msra.mxu0 0
  %1203 = vmatprep.subr.bf16.mxu0 0
  %1204 = vmatpush2.bf16.msra.mxu0 0
  %1205 = vmatprep.subr.bf16.mxu0 0
  %1206 = vmatpush2.bf16.msra.mxu0 0
  %1207 = vmatprep.subr.bf16.mxu0 0
  %1208 = vmatpush2.bf16.msra.mxu0 0
  %1209 = vmatprep.subr.bf16.mxu0 0
  %1210 = vmatpush2.bf16.msra.mxu0 0
  %1211 = vmatprep.subr.bf16.mxu0 0
  %1212 = vmatpush2.bf16.msra.mxu0 0
  %1213 = vmatprep.mubr.bf16.mxu0 0
  %1214 = vmatmul.mubr.bf16.gmra.mxu0 %v979
  %v1215 = vpop.f32.mrf.mxu0
  %v1216 = vadd.f32 0.0, %v1215
  %v1217 = vpop.f32.mrf.mxu0
  %v1218 = vpop.f32.mrf.mxu0
  %v1219 = vpop.f32.mrf.mxu0
  %1220 = vdwg.mxu0
  %v1221 = vadd.f32 %v976, %v1175
  %v1222 = vxor.u32 %v1221, 2147483648
  %v1223 = vmul.f32 %v1222, 1.442695
  %v1224 = vpow.pop %v1223
  %v1225 = vadd.f32 %v1224, 1.0
  %v1226 = vrcp.pop %v1225
  %v1227 = vmul.f32 1.0, %v1226
  %v1228 = vadd.f32 %v977, %v1177
  %v1229 = vxor.u32 %v1228, 2147483648
  %v1230 = vmul.f32 %v1229, 1.442695
  %v1231 = vpow.pop %v1230
  %v1232 = vadd.f32 %v1231, 1.0
  %v1233 = vrcp.pop %v1232
  %v1234 = vmul.f32 1.0, %v1233
  %v1235 = vld [vmem:[%s4] sm:$0x1]
  %v1237 = vlaneseq
  %v1238 = vshrl.u32 %v1237, 7
  %v1239 = vsub.s32 0, %v1238
  %v1240 = vrot.slane %v1235, %v1239
  %v1242 = vadd.f32 %v1216, %v1240
  %v1243 = vmul.f32 %v1227, %v1242
  %v1244 = vadd.f32 %v978, %v1243
  %v1245 = vtanh.pop %v1244
  %v1246 = vsub.f32 1.0, %v1234
  %v1247 = vmul.f32 %v1246, %v1245
  %v1248 = vmul.f32 %v1234, %v972
  %v1249 = vadd.f32 %v1247, %v1248
  %1250 = vst [vmem:[#allocation4] sm:$0xff] %v1249
  %s1251 = scalar_lea.vmem [#allocation3], 16
  %1252 = vst [vmem:[%s1251] sm:$0xff] %v1249
  %v1253 = vld [vmem:[#allocation4] sm:$0xff]
  %s1254 = smul.u32 3, 3
  %s1255 = smul.addr %s1254, 8
  %s1256 = scalar_lea.vmem [#allocation2], %s1255
  %v1257 = vld [vmem:[%s1256] sm:$0xff]
  %v1258 = vld [vmem:[%s1256 + $0x8] sm:$0xff]
  %v1259 = vld [vmem:[%s1256 + $0x10] sm:$0xff]
  %v1260 = vpack.c.bf16 %v1253, %v1253
  %v1261 = vld [vmem:[%s2] sm:$0xff]
  %v1262 = vld [vmem:[%s2 + $0x8] sm:$0xf]
  %v1263 = vld [vmem:[%s2 + $0xc] sm:$0xff]
  %v1264 = vld [vmem:[%s2 + $0x14] sm:$0xf]
  %v1265 = vld [vmem:[%s2 + $0x18] sm:$0xff]
  %v1266 = vld [vmem:[%s2 + $0x20] sm:$0xf]
  %v1267 = vld [vmem:[%s2 + $0x24] sm:$0xff]
  %v1268 = vld [vmem:[%s2 + $0x2c] sm:$0xf]
  %v1269 = vld [vmem:[%s2 + $0x30] sm:$0xff]
  %v1270 = vld [vmem:[%s2 + $0x38] sm:$0xf]
  %v1271 = vld [vmem:[%s2 + $0x3c] sm:$0xff]
  %v1272 = vld [vmem:[%s2 + $0x44] sm:$0xf]
  %v1273 = vld [vmem:[%s2 + $0x48] sm:$0xff]
  %v1274 = vld [vmem:[%s2 + $0x50] sm:$0xf]
  %v1275 = vld [vmem:[%s2 + $0x54] sm:$0xff]
  %v1276 = vld [vmem:[%s2 + $0x5c] sm:$0xf]
  %v1277 = vld [vmem:[%s2 + $0x60] sm:$0xff]
  %v1278 = vld [vmem:[%s2 + $0x68] sm:$0xf]
  %v1279 = vld [vmem:[%s2 + $0x6c] sm:$0xff]
  %v1280 = vld [vmem:[%s2 + $0x74] sm:$0xf]
  %v1281 = vld [vmem:[%s2 + $0x78] sm:$0xff]
  %v1282 = vld [vmem:[%s2 + $0x80] sm:$0xf]
  %v1283 = vld [vmem:[%s2 + $0x84] sm:$0xff]
  %v1284 = vld [vmem:[%s2 + $0x8c] sm:$0xf]
  %v1285 = vld [vmem:[%s2 + $0x90] sm:$0xff]
  %v1286 = vld [vmem:[%s2 + $0x98] sm:$0xf]
  %v1287 = vld [vmem:[%s2 + $0x9c] sm:$0xff]
  %v1288 = vld [vmem:[%s2 + $0xa4] sm:$0xf]
  %v1289 = vld [vmem:[%s2 + $0xa8] sm:$0xff]
  %v1290 = vld [vmem:[%s2 + $0xb0] sm:$0xf]
  %v1291 = vld [vmem:[%s2 + $0xb4] sm:$0xff]
  %v1292 = vld [vmem:[%s2 + $0xbc] sm:$0xf]
  %v1325 = vunpack.c.l.b16 %v1261
  %v1326 = vunpack.c.h.b16 %v1261
  %v1327 = vunpack.c.l.b16 %v1262
  %v1328 = vunpack.c.l.b16 %v1263
  %v1329 = vunpack.c.h.b16 %v1263
  %v1330 = vunpack.c.l.b16 %v1264
  %v1331 = vunpack.c.l.b16 %v1265
  %v1332 = vunpack.c.h.b16 %v1265
  %v1333 = vunpack.c.l.b16 %v1266
  %v1334 = vunpack.c.l.b16 %v1267
  %v1335 = vunpack.c.h.b16 %v1267
  %v1336 = vunpack.c.l.b16 %v1268
  %v1337 = vunpack.c.l.b16 %v1269
  %v1338 = vunpack.c.h.b16 %v1269
  %v1339 = vunpack.c.l.b16 %v1270
  %v1340 = vunpack.c.l.b16 %v1271
  %v1341 = vunpack.c.h.b16 %v1271
  %v1342 = vunpack.c.l.b16 %v1272
  %v1343 = vunpack.c.l.b16 %v1273
  %v1344 = vunpack.c.h.b16 %v1273
  %v1345 = vunpack.c.l.b16 %v1274
  %v1346 = vunpack.c.l.b16 %v1275
  %v1347 = vunpack.c.h.b16 %v1275
  %v1348 = vunpack.c.l.b16 %v1276
  %v1349 = vunpack.c.l.b16 %v1277
  %v1350 = vunpack.c.h.b16 %v1277
  %v1351 = vunpack.c.l.b16 %v1278
  %v1352 = vunpack.c.l.b16 %v1279
  %v1353 = vunpack.c.h.b16 %v1279
  %v1354 = vunpack.c.l.b16 %v1280
  %v1355 = vunpack.c.l.b16 %v1281
  %v1356 = vunpack.c.h.b16 %v1281
  %v1357 = vunpack.c.l.b16 %v1282
  %v1358 = vunpack.c.l.b16 %v1283
  %v1359 = vunpack.c.h.b16 %v1283
  %v1360 = vunpack.c.l.b16 %v1284
  %v1361 = vunpack.c.l.b16 %v1285
  %v1362 = vunpack.c.h.b16 %v1285
  %v1363 = vunpack.c.l.b16 %v1286
  %v1364 = vunpack.c.l.b16 %v1287
  %v1365 = vunpack.c.h.b16 %v1287
  %v1366 = vunpack.c.l.b16 %v1288
  %v1367 = vunpack.c.l.b16 %v1289
  %v1368 = vunpack.c.h.b16 %v1289
  %v1369 = vunpack.c.l.b16 %v1290
  %v1370 = vunpack.c.l.b16 %v1291
  %v1371 = vunpack.c.h.b16 %v1291
  %v1372 = vunpack.c.l.b16 %v1292
  %v1373 = vpack.c.b16 %v1328, %v1325
  %v1374 = vpack.c.b16 %v1329, %v1326
  %v1375 = vpack.c.b16 %v1330, %v1327
  %v1376 = vpack.c.b16 %v1334, %v1331
  %v1377 = vpack.c.b16 %v1335, %v1332
  %v1378 = vpack.c.b16 %v1336, %v1333
  %v1379 = vpack.c.b16 %v1340, %v1337
  %v1380 = vpack.c.b16 %v1341, %v1338
  %v1381 = vpack.c.b16 %v1342, %v1339
  %v1382 = vpack.c.b16 %v1346, %v1343
  %v1383 = vpack.c.b16 %v1347, %v1344
  %v1384 = vpack.c.b16 %v1348, %v1345
  %v1385 = vpack.c.b16 %v1352, %v1349
  %v1386 = vpack.c.b16 %v1353, %v1350
  %v1387 = vpack.c.b16 %v1354, %v1351
  %v1388 = vpack.c.b16 %v1358, %v1355
  %v1389 = vpack.c.b16 %v1359, %v1356
  %v1390 = vpack.c.b16 %v1360, %v1357
  %v1391 = vpack.c.b16 %v1364, %v1361
  %v1392 = vpack.c.b16 %v1365, %v1362
  %v1393 = vpack.c.b16 %v1366, %v1363
  %v1394 = vpack.c.b16 %v1370, %v1367
  %v1395 = vpack.c.b16 %v1371, %v1368
  %v1396 = vpack.c.b16 %v1372, %v1369
  %1421 = vmatprep.subr.bf16.mxu0 %v1395
  %1422 = vmatpush1.bf16.msra.mxu0 %v1394
  %1423 = vmatprep.subr.bf16.mxu0 %v1392
  %1424 = vmatpush1.bf16.msra.mxu0 %v1391
  %1425 = vmatprep.subr.bf16.mxu0 %v1389
  %1426 = vmatpush1.bf16.msra.mxu0 %v1388
  %1427 = vmatprep.subr.bf16.mxu0 %v1386
  %1428 = vmatpush1.bf16.msra.mxu0 %v1385
  %1429 = vmatprep.subr.bf16.mxu0 %v1383
  %1430 = vmatpush1.bf16.msra.mxu0 %v1382
  %1431 = vmatprep.subr.bf16.mxu0 %v1380
  %1432 = vmatpush1.bf16.msra.mxu0 %v1379
  %1433 = vmatprep.subr.bf16.mxu0 %v1377
  %1434 = vmatpush1.bf16.msra.mxu0 %v1376
  %1435 = vmatprep.subr.bf16.mxu0 %v1374
  %1436 = vmatpush1.bf16.msra.mxu0 %v1373
  %1437 = vmatprep.subr.bf16.mxu0 0
  %1438 = vmatpush2.bf16.msra.mxu0 0
  %1439 = vmatprep.subr.bf16.mxu0 0
  %1440 = vmatpush2.bf16.msra.mxu0 0
  %1441 = vmatprep.subr.bf16.mxu0 0
  %1442 = vmatpush2.bf16.msra.mxu0 0
  %1443 = vmatprep.subr.bf16.mxu0 0
  %1444 = vmatpush2.bf16.msra.mxu0 0
  %1445 = vmatprep.subr.bf16.mxu0 0
  %1446 = vmatpush2.bf16.msra.mxu0 0
  %1447 = vmatprep.subr.bf16.mxu0 0
  %1448 = vmatpush2.bf16.msra.mxu0 0
  %1449 = vmatprep.subr.bf16.mxu0 0
  %1450 = vmatpush2.bf16.msra.mxu0 0
  %1451 = vmatprep.subr.bf16.mxu0 0
  %1452 = vmatpush2.bf16.msra.mxu0 0
  %1453 = vmatprep.mubr.bf16.mxu0 0
  %1454 = vmatmul.mubr.bf16.gmra.mxu0 %v1260
  %v1455 = vpop.f32.mrf.mxu0
  %v1456 = vadd.f32 0.0, %v1455
  %v1457 = vpop.f32.mrf.mxu0
  %v1458 = vadd.f32 0.0, %v1457
  %v1459 = vpop.f32.mrf.mxu0
  %v1460 = vpop.f32.mrf.mxu0
  %1461 = vdwg.mxu0
  %1462 = vmatprep.subr.bf16.mxu0 0
  %1463 = vmatpush1.bf16.msra.mxu0 %v1396
  %1464 = vmatprep.subr.bf16.mxu0 0
  %1465 = vmatpush1.bf16.msra.mxu0 %v1393
  %1466 = vmatprep.subr.bf16.mxu0 0
  %1467 = vmatpush1.bf16.msra.mxu0 %v1390
  %1468 = vmatprep.subr.bf16.mxu0 0
  %1469 = vmatpush1.bf16.msra.mxu0 %v1387
  %1470 = vmatprep.subr.bf16.mxu0 0
  %1471 = vmatpush1.bf16.msra.mxu0 %v1384
  %1472 = vmatprep.subr.bf16.mxu0 0
  %1473 = vmatpush1.bf16.msra.mxu0 %v1381
  %1474 = vmatprep.subr.bf16.mxu0 0
  %1475 = vmatpush1.bf16.msra.mxu0 %v1378
  %1476 = vmatprep.subr.bf16.mxu0 0
  %1477 = vmatpush1.bf16.msra.mxu0 %v1375
  %1478 = vmatprep.subr.bf16.mxu0 0
  %1479 = vmatpush2.bf16.msra.mxu0 0
  %1480 = vmatprep.subr.bf16.mxu0 0
  %1481 = vmatpush2.bf16.msra.mxu0 0
  %1482 = vmatprep.subr.bf16.mxu0 0
  %1483 = vmatpush2.bf16.msra.mxu0 0
  %1484 = vmatprep.subr.bf16.mxu0 0
  %1485 = vmatpush2.bf16.msra.mxu0 0
  %1486 = vmatprep.subr.bf16.mxu0 0
  %1487 = vmatpush2.bf16.msra.mxu0 0
  %1488 = vmatprep.subr.bf16.mxu0 0
  %1489 = vmatpush2.bf16.msra.mxu0 0
  %1490 = vmatprep.subr.bf16.mxu0 0
  %1491 = vmatpush2.bf16.msra.mxu0 0
  %1492 = vmatprep.subr.bf16.mxu0 0
  %1493 = vmatpush2.bf16.msra.mxu0 0
  %1494 = vmatprep.mubr.bf16.mxu0 0
  %1495 = vmatmul.mubr.bf16.gmra.mxu0 %v1260
  %v1496 = vpop.f32.mrf.mxu0
  %v1497 = vadd.f32 0.0, %v1496
  %v1498 = vpop.f32.mrf.mxu0
  %v1499 = vpop.f32.mrf.mxu0
  %v1500 = vpop.f32.mrf.mxu0
  %1501 = vdwg.mxu0
  %v1502 = vadd.f32 %v1257, %v1456
  %v1503 = vxor.u32 %v1502, 2147483648
  %v1504 = vmul.f32 %v1503, 1.442695
  %v1505 = vpow.pop %v1504
  %v1506 = vadd.f32 %v1505, 1.0
  %v1507 = vrcp.pop %v1506
  %v1508 = vmul.f32 1.0, %v1507
  %v1509 = vadd.f32 %v1258, %v1458
  %v1510 = vxor.u32 %v1509, 2147483648
  %v1511 = vmul.f32 %v1510, 1.442695
  %v1512 = vpow.pop %v1511
  %v1513 = vadd.f32 %v1512, 1.0
  %v1514 = vrcp.pop %v1513
  %v1515 = vmul.f32 1.0, %v1514
  %v1516 = vld [vmem:[%s4] sm:$0x1]
  %v1518 = vlaneseq
  %v1519 = vshrl.u32 %v1518, 7
  %v1520 = vsub.s32 0, %v1519
  %v1521 = vrot.slane %v1516, %v1520
  %v1523 = vadd.f32 %v1497, %v1521
  %v1524 = vmul.f32 %v1508, %v1523
  %v1525 = vadd.f32 %v1259, %v1524
  %v1526 = vtanh.pop %v1525
  %v1527 = vsub.f32 1.0, %v1515
  %v1528 = vmul.f32 %v1527, %v1526
  %v1529 = vmul.f32 %v1515, %v1253
  %v1530 = vadd.f32 %v1528, %v1529
  %1531 = vst [vmem:[#allocation4] sm:$0xff] %v1530
  %s1532 = scalar_lea.vmem [#allocation3], 24
  %1533 = vst [vmem:[%s1532] sm:$0xff] %v1530
  %v1534 = vld [vmem:[#allocation4] sm:$0xff]
  %s1535 = smul.u32 4, 3
  %s1536 = smul.addr %s1535, 8
  %s1537 = scalar_lea.vmem [#allocation2], %s1536
  %v1538 = vld [vmem:[%s1537] sm:$0xff]
  %v1539 = vld [vmem:[%s1537 + $0x8] sm:$0xff]
  %v1540 = vld [vmem:[%s1537 + $0x10] sm:$0xff]
  %v1541 = vpack.c.bf16 %v1534, %v1534
  %v1542 = vld [vmem:[%s2] sm:$0xff]
  %v1543 = vld [vmem:[%s2 + $0x8] sm:$0xf]
  %v1544 = vld [vmem:[%s2 + $0xc] sm:$0xff]
  %v1545 = vld [vmem:[%s2 + $0x14] sm:$0xf]
  %v1546 = vld [vmem:[%s2 + $0x18] sm:$0xff]
  %v1547 = vld [vmem:[%s2 + $0x20] sm:$0xf]
  %v1548 = vld [vmem:[%s2 + $0x24] sm:$0xff]
  %v1549 = vld [vmem:[%s2 + $0x2c] sm:$0xf]
  %v1550 = vld [vmem:[%s2 + $0x30] sm:$0xff]
  %v1551 = vld [vmem:[%s2 + $0x38] sm:$0xf]
  %v1552 = vld [vmem:[%s2 + $0x3c] sm:$0xff]
  %v1553 = vld [vmem:[%s2 + $0x44] sm:$0xf]
  %v1554 = vld [vmem:[%s2 + $0x48] sm:$0xff]
  %v1555 = vld [vmem:[%s2 + $0x50] sm:$0xf]
  %v1556 = vld [vmem:[%s2 + $0x54] sm:$0xff]
  %v1557 = vld [vmem:[%s2 + $0x5c] sm:$0xf]
  %v1558 = vld [vmem:[%s2 + $0x60] sm:$0xff]
  %v1559 = vld [vmem:[%s2 + $0x68] sm:$0xf]
  %v1560 = vld [vmem:[%s2 + $0x6c] sm:$0xff]
  %v1561 = vld [vmem:[%s2 + $0x74] sm:$0xf]
  %v1562 = vld [vmem:[%s2 + $0x78] sm:$0xff]
  %v1563 = vld [vmem:[%s2 + $0x80] sm:$0xf]
  %v1564 = vld [vmem:[%s2 + $0x84] sm:$0xff]
  %v1565 = vld [vmem:[%s2 + $0x8c] sm:$0xf]
  %v1566 = vld [vmem:[%s2 + $0x90] sm:$0xff]
  %v1567 = vld [vmem:[%s2 + $0x98] sm:$0xf]
  %v1568 = vld [vmem:[%s2 + $0x9c] sm:$0xff]
  %v1569 = vld [vmem:[%s2 + $0xa4] sm:$0xf]
  %v1570 = vld [vmem:[%s2 + $0xa8] sm:$0xff]
  %v1571 = vld [vmem:[%s2 + $0xb0] sm:$0xf]
  %v1572 = vld [vmem:[%s2 + $0xb4] sm:$0xff]
  %v1573 = vld [vmem:[%s2 + $0xbc] sm:$0xf]
  %v1606 = vunpack.c.l.b16 %v1542
  %v1607 = vunpack.c.h.b16 %v1542
  %v1608 = vunpack.c.l.b16 %v1543
  %v1609 = vunpack.c.l.b16 %v1544
  %v1610 = vunpack.c.h.b16 %v1544
  %v1611 = vunpack.c.l.b16 %v1545
  %v1612 = vunpack.c.l.b16 %v1546
  %v1613 = vunpack.c.h.b16 %v1546
  %v1614 = vunpack.c.l.b16 %v1547
  %v1615 = vunpack.c.l.b16 %v1548
  %v1616 = vunpack.c.h.b16 %v1548
  %v1617 = vunpack.c.l.b16 %v1549
  %v1618 = vunpack.c.l.b16 %v1550
  %v1619 = vunpack.c.h.b16 %v1550
  %v1620 = vunpack.c.l.b16 %v1551
  %v1621 = vunpack.c.l.b16 %v1552
  %v1622 = vunpack.c.h.b16 %v1552
  %v1623 = vunpack.c.l.b16 %v1553
  %v1624 = vunpack.c.l.b16 %v1554
  %v1625 = vunpack.c.h.b16 %v1554
  %v1626 = vunpack.c.l.b16 %v1555
  %v1627 = vunpack.c.l.b16 %v1556
  %v1628 = vunpack.c.h.b16 %v1556
  %v1629 = vunpack.c.l.b16 %v1557
  %v1630 = vunpack.c.l.b16 %v1558
  %v1631 = vunpack.c.h.b16 %v1558
  %v1632 = vunpack.c.l.b16 %v1559
  %v1633 = vunpack.c.l.b16 %v1560
  %v1634 = vunpack.c.h.b16 %v1560
  %v1635 = vunpack.c.l.b16 %v1561
  %v1636 = vunpack.c.l.b16 %v1562
  %v1637 = vunpack.c.h.b16 %v1562
  %v1638 = vunpack.c.l.b16 %v1563
  %v1639 = vunpack.c.l.b16 %v1564
  %v1640 = vunpack.c.h.b16 %v1564
  %v1641 = vunpack.c.l.b16 %v1565
  %v1642 = vunpack.c.l.b16 %v1566
  %v1643 = vunpack.c.h.b16 %v1566
  %v1644 = vunpack.c.l.b16 %v1567
  %v1645 = vunpack.c.l.b16 %v1568
  %v1646 = vunpack.c.h.b16 %v1568
  %v1647 = vunpack.c.l.b16 %v1569
  %v1648 = vunpack.c.l.b16 %v1570
  %v1649 = vunpack.c.h.b16 %v1570
  %v1650 = vunpack.c.l.b16 %v1571
  %v1651 = vunpack.c.l.b16 %v1572
  %v1652 = vunpack.c.h.b16 %v1572
  %v1653 = vunpack.c.l.b16 %v1573
  %v1654 = vpack.c.b16 %v1609, %v1606
  %v1655 = vpack.c.b16 %v1610, %v1607
  %v1656 = vpack.c.b16 %v1611, %v1608
  %v1657 = vpack.c.b16 %v1615, %v1612
  %v1658 = vpack.c.b16 %v1616, %v1613
  %v1659 = vpack.c.b16 %v1617, %v1614
  %v1660 = vpack.c.b16 %v1621, %v1618
  %v1661 = vpack.c.b16 %v1622, %v1619
  %v1662 = vpack.c.b16 %v1623, %v1620
  %v1663 = vpack.c.b16 %v1627, %v1624
  %v1664 = vpack.c.b16 %v1628, %v1625
  %v1665 = vpack.c.b16 %v1629, %v1626
  %v1666 = vpack.c.b16 %v1633, %v1630
  %v1667 = vpack.c.b16 %v1634, %v1631
  %v1668 = vpack.c.b16 %v1635, %v1632
  %v1669 = vpack.c.b16 %v1639, %v1636
  %v1670 = vpack.c.b16 %v1640, %v1637
  %v1671 = vpack.c.b16 %v1641, %v1638
  %v1672 = vpack.c.b16 %v1645, %v1642
  %v1673 = vpack.c.b16 %v1646, %v1643
  %v1674 = vpack.c.b16 %v1647, %v1644
  %v1675 = vpack.c.b16 %v1651, %v1648
  %v1676 = vpack.c.b16 %v1652, %v1649
  %v1677 = vpack.c.b16 %v1653, %v1650
  %1702 = vmatprep.subr.bf16.mxu0 %v1676
  %1703 = vmatpush1.bf16.msra.mxu0 %v1675
  %1704 = vmatprep.subr.bf16.mxu0 %v1673
  %1705 = vmatpush1.bf16.msra.mxu0 %v1672
  %1706 = vmatprep.subr.bf16.mxu0 %v1670
  %1707 = vmatpush1.bf16.msra.mxu0 %v1669
  %1708 = vmatprep.subr.bf16.mxu0 %v1667
  %1709 = vmatpush1.bf16.msra.mxu0 %v1666
  %1710 = vmatprep.subr.bf16.mxu0 %v1664
  %1711 = vmatpush1.bf16.msra.mxu0 %v1663
  %1712 = vmatprep.subr.bf16.mxu0 %v1661
  %1713 = vmatpush1.bf16.msra.mxu0 %v1660
  %1714 = vmatprep.subr.bf16.mxu0 %v1658
  %1715 = vmatpush1.bf16.msra.mxu0 %v1657
  %1716 = vmatprep.subr.bf16.mxu0 %v1655
  %1717 = vmatpush1.bf16.msra.mxu0 %v1654
  %1718 = vmatprep.subr.bf16.mxu0 0
  %1719 = vmatpush2.bf16.msra.mxu0 0
  %1720 = vmatprep.subr.bf16.mxu0 0
  %1721 = vmatpush2.bf16.msra.mxu0 0
  %1722 = vmatprep.subr.bf16.mxu0 0
  %1723 = vmatpush2.bf16.msra.mxu0 0
  %1724 = vmatprep.subr.bf16.mxu0 0
  %1725 = vmatpush2.bf16.msra.mxu0 0
  %1726 = vmatprep.subr.bf16.mxu0 0
  %1727 = vmatpush2.bf16.msra.mxu0 0
  %1728 = vmatprep.subr.bf16.mxu0 0
  %1729 = vmatpush2.bf16.msra.mxu0 0
  %1730 = vmatprep.subr.bf16.mxu0 0
  %1731 = vmatpush2.bf16.msra.mxu0 0
  %1732 = vmatprep.subr.bf16.mxu0 0
  %1733 = vmatpush2.bf16.msra.mxu0 0
  %1734 = vmatprep.mubr.bf16.mxu0 0
  %1735 = vmatmul.mubr.bf16.gmra.mxu0 %v1541
  %v1736 = vpop.f32.mrf.mxu0
  %v1737 = vadd.f32 0.0, %v1736
  %v1738 = vpop.f32.mrf.mxu0
  %v1739 = vadd.f32 0.0, %v1738
  %v1740 = vpop.f32.mrf.mxu0
  %v1741 = vpop.f32.mrf.mxu0
  %1742 = vdwg.mxu0
  %1743 = vmatprep.subr.bf16.mxu0 0
  %1744 = vmatpush1.bf16.msra.mxu0 %v1677
  %1745 = vmatprep.subr.bf16.mxu0 0
  %1746 = vmatpush1.bf16.msra.mxu0 %v1674
  %1747 = vmatprep.subr.bf16.mxu0 0
  %1748 = vmatpush1.bf16.msra.mxu0 %v1671
  %1749 = vmatprep.subr.bf16.mxu0 0
  %1750 = vmatpush1.bf16.msra.mxu0 %v1668
  %1751 = vmatprep.subr.bf16.mxu0 0
  %1752 = vmatpush1.bf16.msra.mxu0 %v1665
  %1753 = vmatprep.subr.bf16.mxu0 0
  %1754 = vmatpush1.bf16.msra.mxu0 %v1662
  %1755 = vmatprep.subr.bf16.mxu0 0
  %1756 = vmatpush1.bf16.msra.mxu0 %v1659
  %1757 = vmatprep.subr.bf16.mxu0 0
  %1758 = vmatpush1.bf16.msra.mxu0 %v1656
  %1759 = vmatprep.subr.bf16.mxu0 0
  %1760 = vmatpush2.bf16.msra.mxu0 0
  %1761 = vmatprep.subr.bf16.mxu0 0
  %1762 = vmatpush2.bf16.msra.mxu0 0
  %1763 = vmatprep.subr.bf16.mxu0 0
  %1764 = vmatpush2.bf16.msra.mxu0 0
  %1765 = vmatprep.subr.bf16.mxu0 0
  %1766 = vmatpush2.bf16.msra.mxu0 0
  %1767 = vmatprep.subr.bf16.mxu0 0
  %1768 = vmatpush2.bf16.msra.mxu0 0
  %1769 = vmatprep.subr.bf16.mxu0 0
  %1770 = vmatpush2.bf16.msra.mxu0 0
  %1771 = vmatprep.subr.bf16.mxu0 0
  %1772 = vmatpush2.bf16.msra.mxu0 0
  %1773 = vmatprep.subr.bf16.mxu0 0
  %1774 = vmatpush2.bf16.msra.mxu0 0
  %1775 = vmatprep.mubr.bf16.mxu0 0
  %1776 = vmatmul.mubr.bf16.gmra.mxu0 %v1541
  %v1777 = vpop.f32.mrf.mxu0
  %v1778 = vadd.f32 0.0, %v1777
  %v1779 = vpop.f32.mrf.mxu0
  %v1780 = vpop.f32.mrf.mxu0
  %v1781 = vpop.f32.mrf.mxu0
  %1782 = vdwg.mxu0
  %v1783 = vadd.f32 %v1538, %v1737
  %v1784 = vxor.u32 %v1783, 2147483648
  %v1785 = vmul.f32 %v1784, 1.442695
  %v1786 = vpow.pop %v1785
  %v1787 = vadd.f32 %v1786, 1.0
  %v1788 = vrcp.pop %v1787
  %v1789 = vmul.f32 1.0, %v1788
  %v1790 = vadd.f32 %v1539, %v1739
  %v1791 = vxor.u32 %v1790, 2147483648
  %v1792 = vmul.f32 %v1791, 1.442695
  %v1793 = vpow.pop %v1792
  %v1794 = vadd.f32 %v1793, 1.0
  %v1795 = vrcp.pop %v1794
  %v1796 = vmul.f32 1.0, %v1795
  %v1797 = vld [vmem:[%s4] sm:$0x1]
  %v1799 = vlaneseq
  %v1800 = vshrl.u32 %v1799, 7
  %v1801 = vsub.s32 0, %v1800
  %v1802 = vrot.slane %v1797, %v1801
  %v1804 = vadd.f32 %v1778, %v1802
  %v1805 = vmul.f32 %v1789, %v1804
  %v1806 = vadd.f32 %v1540, %v1805
  %v1807 = vtanh.pop %v1806
  %v1808 = vsub.f32 1.0, %v1796
  %v1809 = vmul.f32 %v1808, %v1807
  %v1810 = vmul.f32 %v1796, %v1534
  %v1811 = vadd.f32 %v1809, %v1810
  %1812 = vst [vmem:[#allocation4] sm:$0xff] %v1811
  %s1813 = scalar_lea.vmem [#allocation3], 32
  %1814 = vst [vmem:[%s1813] sm:$0xff] %v1811
  %v1815 = vld [vmem:[#allocation4] sm:$0xff]
  %s1816 = smul.u32 5, 3
  %s1817 = smul.addr %s1816, 8
  %s1818 = scalar_lea.vmem [#allocation2], %s1817
  %v1819 = vld [vmem:[%s1818] sm:$0xff]
  %v1820 = vld [vmem:[%s1818 + $0x8] sm:$0xff]
  %v1821 = vld [vmem:[%s1818 + $0x10] sm:$0xff]
  %v1822 = vpack.c.bf16 %v1815, %v1815
  %v1823 = vld [vmem:[%s2] sm:$0xff]
  %v1824 = vld [vmem:[%s2 + $0x8] sm:$0xf]
  %v1825 = vld [vmem:[%s2 + $0xc] sm:$0xff]
  %v1826 = vld [vmem:[%s2 + $0x14] sm:$0xf]
  %v1827 = vld [vmem:[%s2 + $0x18] sm:$0xff]
  %v1828 = vld [vmem:[%s2 + $0x20] sm:$0xf]
  %v1829 = vld [vmem:[%s2 + $0x24] sm:$0xff]
  %v1830 = vld [vmem:[%s2 + $0x2c] sm:$0xf]
  %v1831 = vld [vmem:[%s2 + $0x30] sm:$0xff]
  %v1832 = vld [vmem:[%s2 + $0x38] sm:$0xf]
  %v1833 = vld [vmem:[%s2 + $0x3c] sm:$0xff]
  %v1834 = vld [vmem:[%s2 + $0x44] sm:$0xf]
  %v1835 = vld [vmem:[%s2 + $0x48] sm:$0xff]
  %v1836 = vld [vmem:[%s2 + $0x50] sm:$0xf]
  %v1837 = vld [vmem:[%s2 + $0x54] sm:$0xff]
  %v1838 = vld [vmem:[%s2 + $0x5c] sm:$0xf]
  %v1839 = vld [vmem:[%s2 + $0x60] sm:$0xff]
  %v1840 = vld [vmem:[%s2 + $0x68] sm:$0xf]
  %v1841 = vld [vmem:[%s2 + $0x6c] sm:$0xff]
  %v1842 = vld [vmem:[%s2 + $0x74] sm:$0xf]
  %v1843 = vld [vmem:[%s2 + $0x78] sm:$0xff]
  %v1844 = vld [vmem:[%s2 + $0x80] sm:$0xf]
  %v1845 = vld [vmem:[%s2 + $0x84] sm:$0xff]
  %v1846 = vld [vmem:[%s2 + $0x8c] sm:$0xf]
  %v1847 = vld [vmem:[%s2 + $0x90] sm:$0xff]
  %v1848 = vld [vmem:[%s2 + $0x98] sm:$0xf]
  %v1849 = vld [vmem:[%s2 + $0x9c] sm:$0xff]
  %v1850 = vld [vmem:[%s2 + $0xa4] sm:$0xf]
  %v1851 = vld [vmem:[%s2 + $0xa8] sm:$0xff]
  %v1852 = vld [vmem:[%s2 + $0xb0] sm:$0xf]
  %v1853 = vld [vmem:[%s2 + $0xb4] sm:$0xff]
  %v1854 = vld [vmem:[%s2 + $0xbc] sm:$0xf]
  %v1887 = vunpack.c.l.b16 %v1823
  %v1888 = vunpack.c.h.b16 %v1823
  %v1889 = vunpack.c.l.b16 %v1824
  %v1890 = vunpack.c.l.b16 %v1825
  %v1891 = vunpack.c.h.b16 %v1825
  %v1892 = vunpack.c.l.b16 %v1826
  %v1893 = vunpack.c.l.b16 %v1827
  %v1894 = vunpack.c.h.b16 %v1827
  %v1895 = vunpack.c.l.b16 %v1828
  %v1896 = vunpack.c.l.b16 %v1829
  %v1897 = vunpack.c.h.b16 %v1829
  %v1898 = vunpack.c.l.b16 %v1830
  %v1899 = vunpack.c.l.b16 %v1831
  %v1900 = vunpack.c.h.b16 %v1831
  %v1901 = vunpack.c.l.b16 %v1832
  %v1902 = vunpack.c.l.b16 %v1833
  %v1903 = vunpack.c.h.b16 %v1833
  %v1904 = vunpack.c.l.b16 %v1834
  %v1905 = vunpack.c.l.b16 %v1835
  %v1906 = vunpack.c.h.b16 %v1835
  %v1907 = vunpack.c.l.b16 %v1836
  %v1908 = vunpack.c.l.b16 %v1837
  %v1909 = vunpack.c.h.b16 %v1837
  %v1910 = vunpack.c.l.b16 %v1838
  %v1911 = vunpack.c.l.b16 %v1839
  %v1912 = vunpack.c.h.b16 %v1839
  %v1913 = vunpack.c.l.b16 %v1840
  %v1914 = vunpack.c.l.b16 %v1841
  %v1915 = vunpack.c.h.b16 %v1841
  %v1916 = vunpack.c.l.b16 %v1842
  %v1917 = vunpack.c.l.b16 %v1843
  %v1918 = vunpack.c.h.b16 %v1843
  %v1919 = vunpack.c.l.b16 %v1844
  %v1920 = vunpack.c.l.b16 %v1845
  %v1921 = vunpack.c.h.b16 %v1845
  %v1922 = vunpack.c.l.b16 %v1846
  %v1923 = vunpack.c.l.b16 %v1847
  %v1924 = vunpack.c.h.b16 %v1847
  %v1925 = vunpack.c.l.b16 %v1848
  %v1926 = vunpack.c.l.b16 %v1849
  %v1927 = vunpack.c.h.b16 %v1849
  %v1928 = vunpack.c.l.b16 %v1850
  %v1929 = vunpack.c.l.b16 %v1851
  %v1930 = vunpack.c.h.b16 %v1851
  %v1931 = vunpack.c.l.b16 %v1852
  %v1932 = vunpack.c.l.b16 %v1853
  %v1933 = vunpack.c.h.b16 %v1853
  %v1934 = vunpack.c.l.b16 %v1854
  %v1935 = vpack.c.b16 %v1890, %v1887
  %v1936 = vpack.c.b16 %v1891, %v1888
  %v1937 = vpack.c.b16 %v1892, %v1889
  %v1938 = vpack.c.b16 %v1896, %v1893
  %v1939 = vpack.c.b16 %v1897, %v1894
  %v1940 = vpack.c.b16 %v1898, %v1895
  %v1941 = vpack.c.b16 %v1902, %v1899
  %v1942 = vpack.c.b16 %v1903, %v1900
  %v1943 = vpack.c.b16 %v1904, %v1901
  %v1944 = vpack.c.b16 %v1908, %v1905
  %v1945 = vpack.c.b16 %v1909, %v1906
  %v1946 = vpack.c.b16 %v1910, %v1907
  %v1947 = vpack.c.b16 %v1914, %v1911
  %v1948 = vpack.c.b16 %v1915, %v1912
  %v1949 = vpack.c.b16 %v1916, %v1913
  %v1950 = vpack.c.b16 %v1920, %v1917
  %v1951 = vpack.c.b16 %v1921, %v1918
  %v1952 = vpack.c.b16 %v1922, %v1919
  %v1953 = vpack.c.b16 %v1926, %v1923
  %v1954 = vpack.c.b16 %v1927, %v1924
  %v1955 = vpack.c.b16 %v1928, %v1925
  %v1956 = vpack.c.b16 %v1932, %v1929
  %v1957 = vpack.c.b16 %v1933, %v1930
  %v1958 = vpack.c.b16 %v1934, %v1931
  %1983 = vmatprep.subr.bf16.mxu0 %v1957
  %1984 = vmatpush1.bf16.msra.mxu0 %v1956
  %1985 = vmatprep.subr.bf16.mxu0 %v1954
  %1986 = vmatpush1.bf16.msra.mxu0 %v1953
  %1987 = vmatprep.subr.bf16.mxu0 %v1951
  %1988 = vmatpush1.bf16.msra.mxu0 %v1950
  %1989 = vmatprep.subr.bf16.mxu0 %v1948
  %1990 = vmatpush1.bf16.msra.mxu0 %v1947
  %1991 = vmatprep.subr.bf16.mxu0 %v1945
  %1992 = vmatpush1.bf16.msra.mxu0 %v1944
  %1993 = vmatprep.subr.bf16.mxu0 %v1942
  %1994 = vmatpush1.bf16.msra.mxu0 %v1941
  %1995 = vmatprep.subr.bf16.mxu0 %v1939
  %1996 = vmatpush1.bf16.msra.mxu0 %v1938
  %1997 = vmatprep.subr.bf16.mxu0 %v1936
  %1998 = vmatpush1.bf16.msra.mxu0 %v1935
  %1999 = vmatprep.subr.bf16.mxu0 0
  %2000 = vmatpush2.bf16.msra.mxu0 0
  %2001 = vmatprep.subr.bf16.mxu0 0
  %2002 = vmatpush2.bf16.msra.mxu0 0
  %2003 = vmatprep.subr.bf16.mxu0 0
  %2004 = vmatpush2.bf16.msra.mxu0 0
  %2005 = vmatprep.subr.bf16.mxu0 0
  %2006 = vmatpush2.bf16.msra.mxu0 0
  %2007 = vmatprep.subr.bf16.mxu0 0
  %2008 = vmatpush2.bf16.msra.mxu0 0
  %2009 = vmatprep.subr.bf16.mxu0 0
  %2010 = vmatpush2.bf16.msra.mxu0 0
  %2011 = vmatprep.subr.bf16.mxu0 0
  %2012 = vmatpush2.bf16.msra.mxu0 0
  %2013 = vmatprep.subr.bf16.mxu0 0
  %2014 = vmatpush2.bf16.msra.mxu0 0
  %2015 = vmatprep.mubr.bf16.mxu0 0
  %2016 = vmatmul.mubr.bf16.gmra.mxu0 %v1822
  %v2017 = vpop.f32.mrf.mxu0
  %v2018 = vadd.f32 0.0, %v2017
  %v2019 = vpop.f32.mrf.mxu0
  %v2020 = vadd.f32 0.0, %v2019
  %v2021 = vpop.f32.mrf.mxu0
  %v2022 = vpop.f32.mrf.mxu0
  %2023 = vdwg.mxu0
  %2024 = vmatprep.subr.bf16.mxu0 0
  %2025 = vmatpush1.bf16.msra.mxu0 %v1958
  %2026 = vmatprep.subr.bf16.mxu0 0
  %2027 = vmatpush1.bf16.msra.mxu0 %v1955
  %2028 = vmatprep.subr.bf16.mxu0 0
  %2029 = vmatpush1.bf16.msra.mxu0 %v1952
  %2030 = vmatprep.subr.bf16.mxu0 0
  %2031 = vmatpush1.bf16.msra.mxu0 %v1949
  %2032 = vmatprep.subr.bf16.mxu0 0
  %2033 = vmatpush1.bf16.msra.mxu0 %v1946
  %2034 = vmatprep.subr.bf16.mxu0 0
  %2035 = vmatpush1.bf16.msra.mxu0 %v1943
  %2036 = vmatprep.subr.bf16.mxu0 0
  %2037 = vmatpush1.bf16.msra.mxu0 %v1940
  %2038 = vmatprep.subr.bf16.mxu0 0
  %2039 = vmatpush1.bf16.msra.mxu0 %v1937
  %2040 = vmatprep.subr.bf16.mxu0 0
  %2041 = vmatpush2.bf16.msra.mxu0 0
  %2042 = vmatprep.subr.bf16.mxu0 0
  %2043 = vmatpush2.bf16.msra.mxu0 0
  %2044 = vmatprep.subr.bf16.mxu0 0
  %2045 = vmatpush2.bf16.msra.mxu0 0
  %2046 = vmatprep.subr.bf16.mxu0 0
  %2047 = vmatpush2.bf16.msra.mxu0 0
  %2048 = vmatprep.subr.bf16.mxu0 0
  %2049 = vmatpush2.bf16.msra.mxu0 0
  %2050 = vmatprep.subr.bf16.mxu0 0
  %2051 = vmatpush2.bf16.msra.mxu0 0
  %2052 = vmatprep.subr.bf16.mxu0 0
  %2053 = vmatpush2.bf16.msra.mxu0 0
  %2054 = vmatprep.subr.bf16.mxu0 0
  %2055 = vmatpush2.bf16.msra.mxu0 0
  %2056 = vmatprep.mubr.bf16.mxu0 0
  %2057 = vmatmul.mubr.bf16.gmra.mxu0 %v1822
  %v2058 = vpop.f32.mrf.mxu0
  %v2059 = vadd.f32 0.0, %v2058
  %v2060 = vpop.f32.mrf.mxu0
  %v2061 = vpop.f32.mrf.mxu0
  %v2062 = vpop.f32.mrf.mxu0
  %2063 = vdwg.mxu0
  %v2064 = vadd.f32 %v1819, %v2018
  %v2065 = vxor.u32 %v2064, 2147483648
  %v2066 = vmul.f32 %v2065, 1.442695
  %v2067 = vpow.pop %v2066
  %v2068 = vadd.f32 %v2067, 1.0
  %v2069 = vrcp.pop %v2068
  %v2070 = vmul.f32 1.0, %v2069
  %v2071 = vadd.f32 %v1820, %v2020
  %v2072 = vxor.u32 %v2071, 2147483648
  %v2073 = vmul.f32 %v2072, 1.442695
  %v2074 = vpow.pop %v2073
  %v2075 = vadd.f32 %v2074, 1.0
  %v2076 = vrcp.pop %v2075
  %v2077 = vmul.f32 1.0, %v2076
  %v2078 = vld [vmem:[%s4] sm:$0x1]
  %v2080 = vlaneseq
  %v2081 = vshrl.u32 %v2080, 7
  %v2082 = vsub.s32 0, %v2081
  %v2083 = vrot.slane %v2078, %v2082
  %v2085 = vadd.f32 %v2059, %v2083
  %v2086 = vmul.f32 %v2070, %v2085
  %v2087 = vadd.f32 %v1821, %v2086
  %v2088 = vtanh.pop %v2087
  %v2089 = vsub.f32 1.0, %v2077
  %v2090 = vmul.f32 %v2089, %v2088
  %v2091 = vmul.f32 %v2077, %v1815
  %v2092 = vadd.f32 %v2090, %v2091
  %2093 = vst [vmem:[#allocation4] sm:$0xff] %v2092
  %s2094 = scalar_lea.vmem [#allocation3], 40
  %2095 = vst [vmem:[%s2094] sm:$0xff] %v2092
  %v2096 = vld [vmem:[#allocation4] sm:$0xff]
  %s2097 = smul.u32 6, 3
  %s2098 = smul.addr %s2097, 8
  %s2099 = scalar_lea.vmem [#allocation2], %s2098
  %v2100 = vld [vmem:[%s2099] sm:$0xff]
  %v2101 = vld [vmem:[%s2099 + $0x8] sm:$0xff]
  %v2102 = vld [vmem:[%s2099 + $0x10] sm:$0xff]
  %v2103 = vpack.c.bf16 %v2096, %v2096
  %v2104 = vld [vmem:[%s2] sm:$0xff]
  %v2105 = vld [vmem:[%s2 + $0x8] sm:$0xf]
  %v2106 = vld [vmem:[%s2 + $0xc] sm:$0xff]
  %v2107 = vld [vmem:[%s2 + $0x14] sm:$0xf]
  %v2108 = vld [vmem:[%s2 + $0x18] sm:$0xff]
  %v2109 = vld [vmem:[%s2 + $0x20] sm:$0xf]
  %v2110 = vld [vmem:[%s2 + $0x24] sm:$0xff]
  %v2111 = vld [vmem:[%s2 + $0x2c] sm:$0xf]
  %v2112 = vld [vmem:[%s2 + $0x30] sm:$0xff]
  %v2113 = vld [vmem:[%s2 + $0x38] sm:$0xf]
  %v2114 = vld [vmem:[%s2 + $0x3c] sm:$0xff]
  %v2115 = vld [vmem:[%s2 + $0x44] sm:$0xf]
  %v2116 = vld [vmem:[%s2 + $0x48] sm:$0xff]
  %v2117 = vld [vmem:[%s2 + $0x50] sm:$0xf]
  %v2118 = vld [vmem:[%s2 + $0x54] sm:$0xff]
  %v2119 = vld [vmem:[%s2 + $0x5c] sm:$0xf]
  %v2120 = vld [vmem:[%s2 + $0x60] sm:$0xff]
  %v2121 = vld [vmem:[%s2 + $0x68] sm:$0xf]
  %v2122 = vld [vmem:[%s2 + $0x6c] sm:$0xff]
  %v2123 = vld [vmem:[%s2 + $0x74] sm:$0xf]
  %v2124 = vld [vmem:[%s2 + $0x78] sm:$0xff]
  %v2125 = vld [vmem:[%s2 + $0x80] sm:$0xf]
  %v2126 = vld [vmem:[%s2 + $0x84] sm:$0xff]
  %v2127 = vld [vmem:[%s2 + $0x8c] sm:$0xf]
  %v2128 = vld [vmem:[%s2 + $0x90] sm:$0xff]
  %v2129 = vld [vmem:[%s2 + $0x98] sm:$0xf]
  %v2130 = vld [vmem:[%s2 + $0x9c] sm:$0xff]
  %v2131 = vld [vmem:[%s2 + $0xa4] sm:$0xf]
  %v2132 = vld [vmem:[%s2 + $0xa8] sm:$0xff]
  %v2133 = vld [vmem:[%s2 + $0xb0] sm:$0xf]
  %v2134 = vld [vmem:[%s2 + $0xb4] sm:$0xff]
  %v2135 = vld [vmem:[%s2 + $0xbc] sm:$0xf]
  %v2168 = vunpack.c.l.b16 %v2104
  %v2169 = vunpack.c.h.b16 %v2104
  %v2170 = vunpack.c.l.b16 %v2105
  %v2171 = vunpack.c.l.b16 %v2106
  %v2172 = vunpack.c.h.b16 %v2106
  %v2173 = vunpack.c.l.b16 %v2107
  %v2174 = vunpack.c.l.b16 %v2108
  %v2175 = vunpack.c.h.b16 %v2108
  %v2176 = vunpack.c.l.b16 %v2109
  %v2177 = vunpack.c.l.b16 %v2110
  %v2178 = vunpack.c.h.b16 %v2110
  %v2179 = vunpack.c.l.b16 %v2111
  %v2180 = vunpack.c.l.b16 %v2112
  %v2181 = vunpack.c.h.b16 %v2112
  %v2182 = vunpack.c.l.b16 %v2113
  %v2183 = vunpack.c.l.b16 %v2114
  %v2184 = vunpack.c.h.b16 %v2114
  %v2185 = vunpack.c.l.b16 %v2115
  %v2186 = vunpack.c.l.b16 %v2116
  %v2187 = vunpack.c.h.b16 %v2116
  %v2188 = vunpack.c.l.b16 %v2117
  %v2189 = vunpack.c.l.b16 %v2118
  %v2190 = vunpack.c.h.b16 %v2118
  %v2191 = vunpack.c.l.b16 %v2119
  %v2192 = vunpack.c.l.b16 %v2120
  %v2193 = vunpack.c.h.b16 %v2120
  %v2194 = vunpack.c.l.b16 %v2121
  %v2195 = vunpack.c.l.b16 %v2122
  %v2196 = vunpack.c.h.b16 %v2122
  %v2197 = vunpack.c.l.b16 %v2123
  %v2198 = vunpack.c.l.b16 %v2124
  %v2199 = vunpack.c.h.b16 %v2124
  %v2200 = vunpack.c.l.b16 %v2125
  %v2201 = vunpack.c.l.b16 %v2126
  %v2202 = vunpack.c.h.b16 %v2126
  %v2203 = vunpack.c.l.b16 %v2127
  %v2204 = vunpack.c.l.b16 %v2128
  %v2205 = vunpack.c.h.b16 %v2128
  %v2206 = vunpack.c.l.b16 %v2129
  %v2207 = vunpack.c.l.b16 %v2130
  %v2208 = vunpack.c.h.b16 %v2130
  %v2209 = vunpack.c.l.b16 %v2131
  %v2210 = vunpack.c.l.b16 %v2132
  %v2211 = vunpack.c.h.b16 %v2132
  %v2212 = vunpack.c.l.b16 %v2133
  %v2213 = vunpack.c.l.b16 %v2134
  %v2214 = vunpack.c.h.b16 %v2134
  %v2215 = vunpack.c.l.b16 %v2135
  %v2216 = vpack.c.b16 %v2171, %v2168
  %v2217 = vpack.c.b16 %v2172, %v2169
  %v2218 = vpack.c.b16 %v2173, %v2170
  %v2219 = vpack.c.b16 %v2177, %v2174
  %v2220 = vpack.c.b16 %v2178, %v2175
  %v2221 = vpack.c.b16 %v2179, %v2176
  %v2222 = vpack.c.b16 %v2183, %v2180
  %v2223 = vpack.c.b16 %v2184, %v2181
  %v2224 = vpack.c.b16 %v2185, %v2182
  %v2225 = vpack.c.b16 %v2189, %v2186
  %v2226 = vpack.c.b16 %v2190, %v2187
  %v2227 = vpack.c.b16 %v2191, %v2188
  %v2228 = vpack.c.b16 %v2195, %v2192
  %v2229 = vpack.c.b16 %v2196, %v2193
  %v2230 = vpack.c.b16 %v2197, %v2194
  %v2231 = vpack.c.b16 %v2201, %v2198
  %v2232 = vpack.c.b16 %v2202, %v2199
  %v2233 = vpack.c.b16 %v2203, %v2200
  %v2234 = vpack.c.b16 %v2207, %v2204
  %v2235 = vpack.c.b16 %v2208, %v2205
  %v2236 = vpack.c.b16 %v2209, %v2206
  %v2237 = vpack.c.b16 %v2213, %v2210
  %v2238 = vpack.c.b16 %v2214, %v2211
  %v2239 = vpack.c.b16 %v2215, %v2212
  %2264 = vmatprep.subr.bf16.mxu0 %v2238
  %2265 = vmatpush1.bf16.msra.mxu0 %v2237
  %2266 = vmatprep.subr.bf16.mxu0 %v2235
  %2267 = vmatpush1.bf16.msra.mxu0 %v2234
  %2268 = vmatprep.subr.bf16.mxu0 %v2232
  %2269 = vmatpush1.bf16.msra.mxu0 %v2231
  %2270 = vmatprep.subr.bf16.mxu0 %v2229
  %2271 = vmatpush1.bf16.msra.mxu0 %v2228
  %2272 = vmatprep.subr.bf16.mxu0 %v2226
  %2273 = vmatpush1.bf16.msra.mxu0 %v2225
  %2274 = vmatprep.subr.bf16.mxu0 %v2223
  %2275 = vmatpush1.bf16.msra.mxu0 %v2222
  %2276 = vmatprep.subr.bf16.mxu0 %v2220
  %2277 = vmatpush1.bf16.msra.mxu0 %v2219
  %2278 = vmatprep.subr.bf16.mxu0 %v2217
  %2279 = vmatpush1.bf16.msra.mxu0 %v2216
  %2280 = vmatprep.subr.bf16.mxu0 0
  %2281 = vmatpush2.bf16.msra.mxu0 0
  %2282 = vmatprep.subr.bf16.mxu0 0
  %2283 = vmatpush2.bf16.msra.mxu0 0
  %2284 = vmatprep.subr.bf16.mxu0 0
  %2285 = vmatpush2.bf16.msra.mxu0 0
  %2286 = vmatprep.subr.bf16.mxu0 0
  %2287 = vmatpush2.bf16.msra.mxu0 0
  %2288 = vmatprep.subr.bf16.mxu0 0
  %2289 = vmatpush2.bf16.msra.mxu0 0
  %2290 = vmatprep.subr.bf16.mxu0 0
  %2291 = vmatpush2.bf16.msra.mxu0 0
  %2292 = vmatprep.subr.bf16.mxu0 0
  %2293 = vmatpush2.bf16.msra.mxu0 0
  %2294 = vmatprep.subr.bf16.mxu0 0
  %2295 = vmatpush2.bf16.msra.mxu0 0
  %2296 = vmatprep.mubr.bf16.mxu0 0
  %2297 = vmatmul.mubr.bf16.gmra.mxu0 %v2103
  %v2298 = vpop.f32.mrf.mxu0
  %v2299 = vadd.f32 0.0, %v2298
  %v2300 = vpop.f32.mrf.mxu0
  %v2301 = vadd.f32 0.0, %v2300
  %v2302 = vpop.f32.mrf.mxu0
  %v2303 = vpop.f32.mrf.mxu0
  %2304 = vdwg.mxu0
  %2305 = vmatprep.subr.bf16.mxu0 0
  %2306 = vmatpush1.bf16.msra.mxu0 %v2239
  %2307 = vmatprep.subr.bf16.mxu0 0
  %2308 = vmatpush1.bf16.msra.mxu0 %v2236
  %2309 = vmatprep.subr.bf16.mxu0 0
  %2310 = vmatpush1.bf16.msra.mxu0 %v2233
  %2311 = vmatprep.subr.bf16.mxu0 0
  %2312 = vmatpush1.bf16.msra.mxu0 %v2230
  %2313 = vmatprep.subr.bf16.mxu0 0
  %2314 = vmatpush1.bf16.msra.mxu0 %v2227
  %2315 = vmatprep.subr.bf16.mxu0 0
  %2316 = vmatpush1.bf16.msra.mxu0 %v2224
  %2317 = vmatprep.subr.bf16.mxu0 0
  %2318 = vmatpush1.bf16.msra.mxu0 %v2221
  %2319 = vmatprep.subr.bf16.mxu0 0
  %2320 = vmatpush1.bf16.msra.mxu0 %v2218
  %2321 = vmatprep.subr.bf16.mxu0 0
  %2322 = vmatpush2.bf16.msra.mxu0 0
  %2323 = vmatprep.subr.bf16.mxu0 0
  %2324 = vmatpush2.bf16.msra.mxu0 0
  %2325 = vmatprep.subr.bf16.mxu0 0
  %2326 = vmatpush2.bf16.msra.mxu0 0
  %2327 = vmatprep.subr.bf16.mxu0 0
  %2328 = vmatpush2.bf16.msra.mxu0 0
  %2329 = vmatprep.subr.bf16.mxu0 0
  %2330 = vmatpush2.bf16.msra.mxu0 0
  %2331 = vmatprep.subr.bf16.mxu0 0
  %2332 = vmatpush2.bf16.msra.mxu0 0
  %2333 = vmatprep.subr.bf16.mxu0 0
  %2334 = vmatpush2.bf16.msra.mxu0 0
  %2335 = vmatprep.subr.bf16.mxu0 0
  %2336 = vmatpush2.bf16.msra.mxu0 0
  %2337 = vmatprep.mubr.bf16.mxu0 0
  %2338 = vmatmul.mubr.bf16.gmra.mxu0 %v2103
  %v2339 = vpop.f32.mrf.mxu0
  %v2340 = vadd.f32 0.0, %v2339
  %v2341 = vpop.f32.mrf.mxu0
  %v2342 = vpop.f32.mrf.mxu0
  %v2343 = vpop.f32.mrf.mxu0
  %2344 = vdwg.mxu0
  %v2345 = vadd.f32 %v2100, %v2299
  %v2346 = vxor.u32 %v2345, 2147483648
  %v2347 = vmul.f32 %v2346, 1.442695
  %v2348 = vpow.pop %v2347
  %v2349 = vadd.f32 %v2348, 1.0
  %v2350 = vrcp.pop %v2349
  %v2351 = vmul.f32 1.0, %v2350
  %v2352 = vadd.f32 %v2101, %v2301
  %v2353 = vxor.u32 %v2352, 2147483648
  %v2354 = vmul.f32 %v2353, 1.442695
  %v2355 = vpow.pop %v2354
  %v2356 = vadd.f32 %v2355, 1.0
  %v2357 = vrcp.pop %v2356
  %v2358 = vmul.f32 1.0, %v2357
  %v2359 = vld [vmem:[%s4] sm:$0x1]
  %v2361 = vlaneseq
  %v2362 = vshrl.u32 %v2361, 7
  %v2363 = vsub.s32 0, %v2362
  %v2364 = vrot.slane %v2359, %v2363
  %v2366 = vadd.f32 %v2340, %v2364
  %v2367 = vmul.f32 %v2351, %v2366
  %v2368 = vadd.f32 %v2102, %v2367
  %v2369 = vtanh.pop %v2368
  %v2370 = vsub.f32 1.0, %v2358
  %v2371 = vmul.f32 %v2370, %v2369
  %v2372 = vmul.f32 %v2358, %v2096
  %v2373 = vadd.f32 %v2371, %v2372
  %2374 = vst [vmem:[#allocation4] sm:$0xff] %v2373
  %s2375 = scalar_lea.vmem [#allocation3], 48
  %2376 = vst [vmem:[%s2375] sm:$0xff] %v2373
  %v2377 = vld [vmem:[#allocation4] sm:$0xff]
  %s2378 = smul.u32 7, 3
  %s2379 = smul.addr %s2378, 8
  %s2380 = scalar_lea.vmem [#allocation2], %s2379
  %v2381 = vld [vmem:[%s2380] sm:$0xff]
  %v2382 = vld [vmem:[%s2380 + $0x8] sm:$0xff]
  %v2383 = vld [vmem:[%s2380 + $0x10] sm:$0xff]
  %v2384 = vpack.c.bf16 %v2377, %v2377
  %v2385 = vld [vmem:[%s2] sm:$0xff]
  %v2386 = vld [vmem:[%s2 + $0x8] sm:$0xf]
  %v2387 = vld [vmem:[%s2 + $0xc] sm:$0xff]
  %v2388 = vld [vmem:[%s2 + $0x14] sm:$0xf]
  %v2389 = vld [vmem:[%s2 + $0x18] sm:$0xff]
  %v2390 = vld [vmem:[%s2 + $0x20] sm:$0xf]
  %v2391 = vld [vmem:[%s2 + $0x24] sm:$0xff]
  %v2392 = vld [vmem:[%s2 + $0x2c] sm:$0xf]
  %v2393 = vld [vmem:[%s2 + $0x30] sm:$0xff]
  %v2394 = vld [vmem:[%s2 + $0x38] sm:$0xf]
  %v2395 = vld [vmem:[%s2 + $0x3c] sm:$0xff]
  %v2396 = vld [vmem:[%s2 + $0x44] sm:$0xf]
  %v2397 = vld [vmem:[%s2 + $0x48] sm:$0xff]
  %v2398 = vld [vmem:[%s2 + $0x50] sm:$0xf]
  %v2399 = vld [vmem:[%s2 + $0x54] sm:$0xff]
  %v2400 = vld [vmem:[%s2 + $0x5c] sm:$0xf]
  %v2401 = vld [vmem:[%s2 + $0x60] sm:$0xff]
  %v2402 = vld [vmem:[%s2 + $0x68] sm:$0xf]
  %v2403 = vld [vmem:[%s2 + $0x6c] sm:$0xff]
  %v2404 = vld [vmem:[%s2 + $0x74] sm:$0xf]
  %v2405 = vld [vmem:[%s2 + $0x78] sm:$0xff]
  %v2406 = vld [vmem:[%s2 + $0x80] sm:$0xf]
  %v2407 = vld [vmem:[%s2 + $0x84] sm:$0xff]
  %v2408 = vld [vmem:[%s2 + $0x8c] sm:$0xf]
  %v2409 = vld [vmem:[%s2 + $0x90] sm:$0xff]
  %v2410 = vld [vmem:[%s2 + $0x98] sm:$0xf]
  %v2411 = vld [vmem:[%s2 + $0x9c] sm:$0xff]
  %v2412 = vld [vmem:[%s2 + $0xa4] sm:$0xf]
  %v2413 = vld [vmem:[%s2 + $0xa8] sm:$0xff]
  %v2414 = vld [vmem:[%s2 + $0xb0] sm:$0xf]
  %v2415 = vld [vmem:[%s2 + $0xb4] sm:$0xff]
  %v2416 = vld [vmem:[%s2 + $0xbc] sm:$0xf]
  %v2449 = vunpack.c.l.b16 %v2385
  %v2450 = vunpack.c.h.b16 %v2385
  %v2451 = vunpack.c.l.b16 %v2386
  %v2452 = vunpack.c.l.b16 %v2387
  %v2453 = vunpack.c.h.b16 %v2387
  %v2454 = vunpack.c.l.b16 %v2388
  %v2455 = vunpack.c.l.b16 %v2389
  %v2456 = vunpack.c.h.b16 %v2389
  %v2457 = vunpack.c.l.b16 %v2390
  %v2458 = vunpack.c.l.b16 %v2391
  %v2459 = vunpack.c.h.b16 %v2391
  %v2460 = vunpack.c.l.b16 %v2392
  %v2461 = vunpack.c.l.b16 %v2393
  %v2462 = vunpack.c.h.b16 %v2393
  %v2463 = vunpack.c.l.b16 %v2394
  %v2464 = vunpack.c.l.b16 %v2395
  %v2465 = vunpack.c.h.b16 %v2395
  %v2466 = vunpack.c.l.b16 %v2396
  %v2467 = vunpack.c.l.b16 %v2397
  %v2468 = vunpack.c.h.b16 %v2397
  %v2469 = vunpack.c.l.b16 %v2398
  %v2470 = vunpack.c.l.b16 %v2399
  %v2471 = vunpack.c.h.b16 %v2399
  %v2472 = vunpack.c.l.b16 %v2400
  %v2473 = vunpack.c.l.b16 %v2401
  %v2474 = vunpack.c.h.b16 %v2401
  %v2475 = vunpack.c.l.b16 %v2402
  %v2476 = vunpack.c.l.b16 %v2403
  %v2477 = vunpack.c.h.b16 %v2403
  %v2478 = vunpack.c.l.b16 %v2404
  %v2479 = vunpack.c.l.b16 %v2405
  %v2480 = vunpack.c.h.b16 %v2405
  %v2481 = vunpack.c.l.b16 %v2406
  %v2482 = vunpack.c.l.b16 %v2407
  %v2483 = vunpack.c.h.b16 %v2407
  %v2484 = vunpack.c.l.b16 %v2408
  %v2485 = vunpack.c.l.b16 %v2409
  %v2486 = vunpack.c.h.b16 %v2409
  %v2487 = vunpack.c.l.b16 %v2410
  %v2488 = vunpack.c.l.b16 %v2411
  %v2489 = vunpack.c.h.b16 %v2411
  %v2490 = vunpack.c.l.b16 %v2412
  %v2491 = vunpack.c.l.b16 %v2413
  %v2492 = vunpack.c.h.b16 %v2413
  %v2493 = vunpack.c.l.b16 %v2414
  %v2494 = vunpack.c.l.b16 %v2415
  %v2495 = vunpack.c.h.b16 %v2415
  %v2496 = vunpack.c.l.b16 %v2416
  %v2497 = vpack.c.b16 %v2452, %v2449
  %v2498 = vpack.c.b16 %v2453, %v2450
  %v2499 = vpack.c.b16 %v2454, %v2451
  %v2500 = vpack.c.b16 %v2458, %v2455
  %v2501 = vpack.c.b16 %v2459, %v2456
  %v2502 = vpack.c.b16 %v2460, %v2457
  %v2503 = vpack.c.b16 %v2464, %v2461
  %v2504 = vpack.c.b16 %v2465, %v2462
  %v2505 = vpack.c.b16 %v2466, %v2463
  %v2506 = vpack.c.b16 %v2470, %v2467
  %v2507 = vpack.c.b16 %v2471, %v2468
  %v2508 = vpack.c.b16 %v2472, %v2469
  %v2509 = vpack.c.b16 %v2476, %v2473
  %v2510 = vpack.c.b16 %v2477, %v2474
  %v2511 = vpack.c.b16 %v2478, %v2475
  %v2512 = vpack.c.b16 %v2482, %v2479
  %v2513 = vpack.c.b16 %v2483, %v2480
  %v2514 = vpack.c.b16 %v2484, %v2481
  %v2515 = vpack.c.b16 %v2488, %v2485
  %v2516 = vpack.c.b16 %v2489, %v2486
  %v2517 = vpack.c.b16 %v2490, %v2487
  %v2518 = vpack.c.b16 %v2494, %v2491
  %v2519 = vpack.c.b16 %v2495, %v2492
  %v2520 = vpack.c.b16 %v2496, %v2493
  %2545 = vmatprep.subr.bf16.mxu0 %v2519
  %2546 = vmatpush1.bf16.msra.mxu0 %v2518
  %2547 = vmatprep.subr.bf16.mxu0 %v2516
  %2548 = vmatpush1.bf16.msra.mxu0 %v2515
  %2549 = vmatprep.subr.bf16.mxu0 %v2513
  %2550 = vmatpush1.bf16.msra.mxu0 %v2512
  %2551 = vmatprep.subr.bf16.mxu0 %v2510
  %2552 = vmatpush1.bf16.msra.mxu0 %v2509
  %2553 = vmatprep.subr.bf16.mxu0 %v2507
  %2554 = vmatpush1.bf16.msra.mxu0 %v2506
  %2555 = vmatprep.subr.bf16.mxu0 %v2504
  %2556 = vmatpush1.bf16.msra.mxu0 %v2503
  %2557 = vmatprep.subr.bf16.mxu0 %v2501
  %2558 = vmatpush1.bf16.msra.mxu0 %v2500
  %2559 = vmatprep.subr.bf16.mxu0 %v2498
  %2560 = vmatpush1.bf16.msra.mxu0 %v2497
  %2561 = vmatprep.subr.bf16.mxu0 0
  %2562 = vmatpush2.bf16.msra.mxu0 0
  %2563 = vmatprep.subr.bf16.mxu0 0
  %2564 = vmatpush2.bf16.msra.mxu0 0
  %2565 = vmatprep.subr.bf16.mxu0 0
  %2566 = vmatpush2.bf16.msra.mxu0 0
  %2567 = vmatprep.subr.bf16.mxu0 0
  %2568 = vmatpush2.bf16.msra.mxu0 0
  %2569 = vmatprep.subr.bf16.mxu0 0
  %2570 = vmatpush2.bf16.msra.mxu0 0
  %2571 = vmatprep.subr.bf16.mxu0 0
  %2572 = vmatpush2.bf16.msra.mxu0 0
  %2573 = vmatprep.subr.bf16.mxu0 0
  %2574 = vmatpush2.bf16.msra.mxu0 0
  %2575 = vmatprep.subr.bf16.mxu0 0
  %2576 = vmatpush2.bf16.msra.mxu0 0
  %2577 = vmatprep.mubr.bf16.mxu0 0
  %2578 = vmatmul.mubr.bf16.gmra.mxu0 %v2384
  %v2579 = vpop.f32.mrf.mxu0
  %v2580 = vadd.f32 0.0, %v2579
  %v2581 = vpop.f32.mrf.mxu0
  %v2582 = vadd.f32 0.0, %v2581
  %v2583 = vpop.f32.mrf.mxu0
  %v2584 = vpop.f32.mrf.mxu0
  %2585 = vdwg.mxu0
  %2586 = vmatprep.subr.bf16.mxu0 0
  %2587 = vmatpush1.bf16.msra.mxu0 %v2520
  %2588 = vmatprep.subr.bf16.mxu0 0
  %2589 = vmatpush1.bf16.msra.mxu0 %v2517
  %2590 = vmatprep.subr.bf16.mxu0 0
  %2591 = vmatpush1.bf16.msra.mxu0 %v2514
  %2592 = vmatprep.subr.bf16.mxu0 0
  %2593 = vmatpush1.bf16.msra.mxu0 %v2511
  %2594 = vmatprep.subr.bf16.mxu0 0
  %2595 = vmatpush1.bf16.msra.mxu0 %v2508
  %2596 = vmatprep.subr.bf16.mxu0 0
  %2597 = vmatpush1.bf16.msra.mxu0 %v2505
  %2598 = vmatprep.subr.bf16.mxu0 0
  %2599 = vmatpush1.bf16.msra.mxu0 %v2502
  %2600 = vmatprep.subr.bf16.mxu0 0
  %2601 = vmatpush1.bf16.msra.mxu0 %v2499
  %2602 = vmatprep.subr.bf16.mxu0 0
  %2603 = vmatpush2.bf16.msra.mxu0 0
  %2604 = vmatprep.subr.bf16.mxu0 0
  %2605 = vmatpush2.bf16.msra.mxu0 0
  %2606 = vmatprep.subr.bf16.mxu0 0
  %2607 = vmatpush2.bf16.msra.mxu0 0
  %2608 = vmatprep.subr.bf16.mxu0 0
  %2609 = vmatpush2.bf16.msra.mxu0 0
  %2610 = vmatprep.subr.bf16.mxu0 0
  %2611 = vmatpush2.bf16.msra.mxu0 0
  %2612 = vmatprep.subr.bf16.mxu0 0
  %2613 = vmatpush2.bf16.msra.mxu0 0
  %2614 = vmatprep.subr.bf16.mxu0 0
  %2615 = vmatpush2.bf16.msra.mxu0 0
  %2616 = vmatprep.subr.bf16.mxu0 0
  %2617 = vmatpush2.bf16.msra.mxu0 0
  %2618 = vmatprep.mubr.bf16.mxu0 0
  %2619 = vmatmul.mubr.bf16.gmra.mxu0 %v2384
  %v2620 = vpop.f32.mrf.mxu0
  %v2621 = vadd.f32 0.0, %v2620
  %v2622 = vpop.f32.mrf.mxu0
  %v2623 = vpop.f32.mrf.mxu0
  %v2624 = vpop.f32.mrf.mxu0
  %2625 = vdwg.mxu0
  %v2626 = vadd.f32 %v2381, %v2580
  %v2627 = vxor.u32 %v2626, 2147483648
  %v2628 = vmul.f32 %v2627, 1.442695
  %v2629 = vpow.pop %v2628
  %v2630 = vadd.f32 %v2629, 1.0
  %v2631 = vrcp.pop %v2630
  %v2632 = vmul.f32 1.0, %v2631
  %v2633 = vadd.f32 %v2382, %v2582
  %v2634 = vxor.u32 %v2633, 2147483648
  %v2635 = vmul.f32 %v2634, 1.442695
  %v2636 = vpow.pop %v2635
  %v2637 = vadd.f32 %v2636, 1.0
  %v2638 = vrcp.pop %v2637
  %v2639 = vmul.f32 1.0, %v2638
  %v2640 = vld [vmem:[%s4] sm:$0x1]
  %v2642 = vlaneseq
  %v2643 = vshrl.u32 %v2642, 7
  %v2644 = vsub.s32 0, %v2643
  %v2645 = vrot.slane %v2640, %v2644
  %v2647 = vadd.f32 %v2621, %v2645
  %v2648 = vmul.f32 %v2632, %v2647
  %v2649 = vadd.f32 %v2383, %v2648
  %v2650 = vtanh.pop %v2649
  %v2651 = vsub.f32 1.0, %v2639
  %v2652 = vmul.f32 %v2651, %v2650
  %v2653 = vmul.f32 %v2639, %v2377
  %v2654 = vadd.f32 %v2652, %v2653
  %2655 = vst [vmem:[#allocation4] sm:$0xff] %v2654
  %s2656 = scalar_lea.vmem [#allocation3], 56
  %2657 = vst [vmem:[%s2656] sm:$0xff] %v2654
  %v2658 = vld [vmem:[#allocation3] sm:$0xff]
  %v2659 = vld [vmem:[#allocation3 + $0x8] sm:$0xff]
  %v2660 = vld [vmem:[#allocation3 + $0x10] sm:$0xff]
  %v2661 = vld [vmem:[#allocation3 + $0x18] sm:$0xff]
  %v2662 = vld [vmem:[#allocation3 + $0x20] sm:$0xff]
  %v2663 = vld [vmem:[#allocation3 + $0x28] sm:$0xff]
  %v2664 = vld [vmem:[#allocation3 + $0x30] sm:$0xff]
  %v2665 = vld [vmem:[#allocation3 + $0x38] sm:$0xff]
  %v2666 = vpack.c.bf16 %v2659, %v2658
  %v2667 = vpack.c.bf16 %v2661, %v2660
  %v2668 = vpack.c.bf16 %v2663, %v2662
  %v2669 = vpack.c.bf16 %v2665, %v2664
  %v2670 = vld [vmem:[%s5] sm:$0xff]
  %v2671 = vld [vmem:[%s5 + $0x8] sm:$0xf]
  %v2672 = vld [vmem:[%s5 + $0xc] sm:$0xff]
  %v2673 = vld [vmem:[%s5 + $0x14] sm:$0xf]
  %v2674 = vld [vmem:[%s5 + $0x18] sm:$0xff]
  %v2675 = vld [vmem:[%s5 + $0x20] sm:$0xf]
  %v2676 = vld [vmem:[%s5 + $0x24] sm:$0xff]
  %v2677 = vld [vmem:[%s5 + $0x2c] sm:$0xf]
  %v2678 = vld [vmem:[%s5 + $0x30] sm:$0xff]
  %v2679 = vld [vmem:[%s5 + $0x38] sm:$0xf]
  %v2680 = vld [vmem:[%s5 + $0x3c] sm:$0xff]
  %v2681 = vld [vmem:[%s5 + $0x44] sm:$0xf]
  %v2682 = vld [vmem:[%s5 + $0x48] sm:$0xff]
  %v2683 = vld [vmem:[%s5 + $0x50] sm:$0xf]
  %v2684 = vld [vmem:[%s5 + $0x54] sm:$0xff]
  %v2685 = vld [vmem:[%s5 + $0x5c] sm:$0xf]
  %v2686 = vld [vmem:[%s5 + $0x60] sm:$0xff]
  %v2687 = vld [vmem:[%s5 + $0x68] sm:$0xf]
  %v2688 = vld [vmem:[%s5 + $0x6c] sm:$0xff]
  %v2689 = vld [vmem:[%s5 + $0x74] sm:$0xf]
  %v2690 = vld [vmem:[%s5 + $0x78] sm:$0xff]
  %v2691 = vld [vmem:[%s5 + $0x80] sm:$0xf]
  %v2692 = vld [vmem:[%s5 + $0x84] sm:$0xff]
  %v2693 = vld [vmem:[%s5 + $0x8c] sm:$0xf]
  %v2694 = vld [vmem:[%s5 + $0x90] sm:$0xff]
  %v2695 = vld [vmem:[%s5 + $0x98] sm:$0xf]
  %v2696 = vld [vmem:[%s5 + $0x9c] sm:$0xff]
  %v2697 = vld [vmem:[%s5 + $0xa4] sm:$0xf]
  %v2698 = vld [vmem:[%s5 + $0xa8] sm:$0xff]
  %v2699 = vld [vmem:[%s5 + $0xb0] sm:$0xf]
  %v2700 = vld [vmem:[%s5 + $0xb4] sm:$0xff]
  %v2701 = vld [vmem:[%s5 + $0xbc] sm:$0xf]
  %v2702 = vld [vmem:[%s7] sm:$0x7]
  %v2704 = vlaneseq
  %v2705 = vshrl.u32 %v2704, 7
  %v2706 = vsub.s32 0, %v2705
  %v2707 = vrot.slane %v2702, %v2706
  %v2708 = vlaneseq
  %v2709 = vshrl.u32 %v2708, 7
  %v2710 = vsub.s32 1, %v2709
  %v2711 = vrot.slane %v2702, %v2710
  %v2712 = vlaneseq
  %v2713 = vshrl.u32 %v2712, 7
  %v2714 = vsub.s32 2, %v2713
  %v2715 = vrot.slane %v2702, %v2714
  %v2751 = vunpack.c.l.b16 %v2670
  %v2752 = vunpack.c.h.b16 %v2670
  %v2753 = vunpack.c.l.b16 %v2671
  %v2754 = vunpack.c.l.b16 %v2672
  %v2755 = vunpack.c.h.b16 %v2672
  %v2756 = vunpack.c.l.b16 %v2673
  %v2757 = vunpack.c.l.b16 %v2674
  %v2758 = vunpack.c.h.b16 %v2674
  %v2759 = vunpack.c.l.b16 %v2675
  %v2760 = vunpack.c.l.b16 %v2676
  %v2761 = vunpack.c.h.b16 %v2676
  %v2762 = vunpack.c.l.b16 %v2677
  %v2763 = vunpack.c.l.b16 %v2678
  %v2764 = vunpack.c.h.b16 %v2678
  %v2765 = vunpack.c.l.b16 %v2679
  %v2766 = vunpack.c.l.b16 %v2680
  %v2767 = vunpack.c.h.b16 %v2680
  %v2768 = vunpack.c.l.b16 %v2681
  %v2769 = vunpack.c.l.b16 %v2682
  %v2770 = vunpack.c.h.b16 %v2682
  %v2771 = vunpack.c.l.b16 %v2683
  %v2772 = vunpack.c.l.b16 %v2684
  %v2773 = vunpack.c.h.b16 %v2684
  %v2774 = vunpack.c.l.b16 %v2685
  %v2775 = vunpack.c.l.b16 %v2686
  %v2776 = vunpack.c.h.b16 %v2686
  %v2777 = vunpack.c.l.b16 %v2687
  %v2778 = vunpack.c.l.b16 %v2688
  %v2779 = vunpack.c.h.b16 %v2688
  %v2780 = vunpack.c.l.b16 %v2689
  %v2781 = vunpack.c.l.b16 %v2690
  %v2782 = vunpack.c.h.b16 %v2690
  %v2783 = vunpack.c.l.b16 %v2691
  %v2784 = vunpack.c.l.b16 %v2692
  %v2785 = vunpack.c.h.b16 %v2692
  %v2786 = vunpack.c.l.b16 %v2693
  %v2787 = vunpack.c.l.b16 %v2694
  %v2788 = vunpack.c.h.b16 %v2694
  %v2789 = vunpack.c.l.b16 %v2695
  %v2790 = vunpack.c.l.b16 %v2696
  %v2791 = vunpack.c.h.b16 %v2696
  %v2792 = vunpack.c.l.b16 %v2697
  %v2793 = vunpack.c.l.b16 %v2698
  %v2794 = vunpack.c.h.b16 %v2698
  %v2795 = vunpack.c.l.b16 %v2699
  %v2796 = vunpack.c.l.b16 %v2700
  %v2797 = vunpack.c.h.b16 %v2700
  %v2798 = vunpack.c.l.b16 %v2701
  %v2799 = vpack.c.b16 %v2754, %v2751
  %v2800 = vpack.c.b16 %v2755, %v2752
  %v2801 = vpack.c.b16 %v2756, %v2753
  %v2802 = vpack.c.b16 %v2760, %v2757
  %v2803 = vpack.c.b16 %v2761, %v2758
  %v2804 = vpack.c.b16 %v2762, %v2759
  %v2805 = vpack.c.b16 %v2766, %v2763
  %v2806 = vpack.c.b16 %v2767, %v2764
  %v2807 = vpack.c.b16 %v2768, %v2765
  %v2808 = vpack.c.b16 %v2772, %v2769
  %v2809 = vpack.c.b16 %v2773, %v2770
  %v2810 = vpack.c.b16 %v2774, %v2771
  %v2811 = vpack.c.b16 %v2778, %v2775
  %v2812 = vpack.c.b16 %v2779, %v2776
  %v2813 = vpack.c.b16 %v2780, %v2777
  %v2814 = vpack.c.b16 %v2784, %v2781
  %v2815 = vpack.c.b16 %v2785, %v2782
  %v2816 = vpack.c.b16 %v2786, %v2783
  %v2817 = vpack.c.b16 %v2790, %v2787
  %v2818 = vpack.c.b16 %v2791, %v2788
  %v2819 = vpack.c.b16 %v2792, %v2789
  %v2820 = vpack.c.b16 %v2796, %v2793
  %v2821 = vpack.c.b16 %v2797, %v2794
  %v2822 = vpack.c.b16 %v2798, %v2795
  %2847 = vmatprep.subr.bf16.mxu0 %v2821
  %2848 = vmatpush1.bf16.msra.mxu0 %v2820
  %2849 = vmatprep.subr.bf16.mxu0 %v2818
  %2850 = vmatpush1.bf16.msra.mxu0 %v2817
  %2851 = vmatprep.subr.bf16.mxu0 %v2815
  %2852 = vmatpush1.bf16.msra.mxu0 %v2814
  %2853 = vmatprep.subr.bf16.mxu0 %v2812
  %2854 = vmatpush1.bf16.msra.mxu0 %v2811
  %2855 = vmatprep.subr.bf16.mxu0 %v2809
  %2856 = vmatpush1.bf16.msra.mxu0 %v2808
  %2857 = vmatprep.subr.bf16.mxu0 %v2806
  %2858 = vmatpush1.bf16.msra.mxu0 %v2805
  %2859 = vmatprep.subr.bf16.mxu0 %v2803
  %2860 = vmatpush1.bf16.msra.mxu0 %v2802
  %2861 = vmatprep.subr.bf16.mxu0 %v2800
  %2862 = vmatpush1.bf16.msra.mxu0 %v2799
  %2863 = vmatprep.subr.bf16.mxu0 0
  %2864 = vmatpush2.bf16.msra.mxu0 0
  %2865 = vmatprep.subr.bf16.mxu0 0
  %2866 = vmatpush2.bf16.msra.mxu0 0
  %2867 = vmatprep.subr.bf16.mxu0 0
  %2868 = vmatpush2.bf16.msra.mxu0 0
  %2869 = vmatprep.subr.bf16.mxu0 0
  %2870 = vmatpush2.bf16.msra.mxu0 0
  %2871 = vmatprep.subr.bf16.mxu0 0
  %2872 = vmatpush2.bf16.msra.mxu0 0
  %2873 = vmatprep.subr.bf16.mxu0 0
  %2874 = vmatpush2.bf16.msra.mxu0 0
  %2875 = vmatprep.subr.bf16.mxu0 0
  %2876 = vmatpush2.bf16.msra.mxu0 0
  %2877 = vmatprep.subr.bf16.mxu0 0
  %2878 = vmatpush2.bf16.msra.mxu0 0
  %2879 = vmatprep.mubr.bf16.mxu0 0
  %2880 = vmatmul.mubr.bf16.gmra.mxu0 %v2666
  %v2881 = vpop.f32.mrf.mxu0
  %v2882 = vadd.f32 %v2707, %v2881
  %v2883 = vpop.f32.mrf.mxu0
  %v2884 = vadd.f32 %v2711, %v2883
  %v2885 = vpop.f32.mrf.mxu0
  %v2886 = vadd.f32 %v2707, %v2885
  %v2887 = vpop.f32.mrf.mxu0
  %v2888 = vadd.f32 %v2711, %v2887
  %2889 = vmatprep.mubr.bf16.mxu0 0
  %2890 = vmatmul.mubr.bf16.gmra.mxu0 %v2667
  %v2891 = vpop.f32.mrf.mxu0
  %v2892 = vadd.f32 %v2707, %v2891
  %v2893 = vpop.f32.mrf.mxu0
  %v2894 = vadd.f32 %v2711, %v2893
  %v2895 = vpop.f32.mrf.mxu0
  %v2896 = vadd.f32 %v2707, %v2895
  %v2897 = vpop.f32.mrf.mxu0
  %v2898 = vadd.f32 %v2711, %v2897
  %2899 = vmatprep.mubr.bf16.mxu0 0
  %2900 = vmatmul.mubr.bf16.gmra.mxu0 %v2668
  %v2901 = vpop.f32.mrf.mxu0
  %v2902 = vadd.f32 %v2707, %v2901
  %v2903 = vpop.f32.mrf.mxu0
  %v2904 = vadd.f32 %v2711, %v2903
  %v2905 = vpop.f32.mrf.mxu0
  %v2906 = vadd.f32 %v2707, %v2905
  %v2907 = vpop.f32.mrf.mxu0
  %v2908 = vadd.f32 %v2711, %v2907
  %2909 = vmatprep.mubr.bf16.mxu0 0
  %2910 = vmatmul.mubr.bf16.gmra.mxu0 %v2669
  %v2911 = vpop.f32.mrf.mxu0
  %v2912 = vadd.f32 %v2707, %v2911
  %v2913 = vpop.f32.mrf.mxu0
  %v2914 = vadd.f32 %v2711, %v2913
  %v2915 = vpop.f32.mrf.mxu0
  %v2916 = vadd.f32 %v2707, %v2915
  %v2917 = vpop.f32.mrf.mxu0
  %v2918 = vadd.f32 %v2711, %v2917
  %2919 = vdwg.mxu0
  %2920 = vmatprep.subr.bf16.mxu0 0
  %2921 = vmatpush1.bf16.msra.mxu0 %v2822
  %2922 = vmatprep.subr.bf16.mxu0 0
  %2923 = vmatpush1.bf16.msra.mxu0 %v2819
  %2924 = vmatprep.subr.bf16.mxu0 0
  %2925 = vmatpush1.bf16.msra.mxu0 %v2816
  %2926 = vmatprep.subr.bf16.mxu0 0
  %2927 = vmatpush1.bf16.msra.mxu0 %v2813
  %2928 = vmatprep.subr.bf16.mxu0 0
  %2929 = vmatpush1.bf16.msra.mxu0 %v2810
  %2930 = vmatprep.subr.bf16.mxu0 0
  %2931 = vmatpush1.bf16.msra.mxu0 %v2807
  %2932 = vmatprep.subr.bf16.mxu0 0
  %2933 = vmatpush1.bf16.msra.mxu0 %v2804
  %2934 = vmatprep.subr.bf16.mxu0 0
  %2935 = vmatpush1.bf16.msra.mxu0 %v2801
  %2936 = vmatprep.subr.bf16.mxu0 0
  %2937 = vmatpush2.bf16.msra.mxu0 0
  %2938 = vmatprep.subr.bf16.mxu0 0
  %2939 = vmatpush2.bf16.msra.mxu0 0
  %2940 = vmatprep.subr.bf16.mxu0 0
  %2941 = vmatpush2.bf16.msra.mxu0 0
  %2942 = vmatprep.subr.bf16.mxu0 0
  %2943 = vmatpush2.bf16.msra.mxu0 0
  %2944 = vmatprep.subr.bf16.mxu0 0
  %2945 = vmatpush2.bf16.msra.mxu0 0
  %2946 = vmatprep.subr.bf16.mxu0 0
  %2947 = vmatpush2.bf16.msra.mxu0 0
  %2948 = vmatprep.subr.bf16.mxu0 0
  %2949 = vmatpush2.bf16.msra.mxu0 0
  %2950 = vmatprep.subr.bf16.mxu0 0
  %2951 = vmatpush2.bf16.msra.mxu0 0
  %2952 = vmatprep.mubr.bf16.mxu0 0
  %2953 = vmatmul.mubr.bf16.gmra.mxu0 %v2666
  %v2954 = vpop.f32.mrf.mxu0
  %v2955 = vadd.f32 %v2715, %v2954
  %v2956 = vpop.f32.mrf.mxu0
  %v2957 = vpop.f32.mrf.mxu0
  %v2958 = vadd.f32 %v2715, %v2957
  %v2959 = vpop.f32.mrf.mxu0
  %2960 = vmatprep.mubr.bf16.mxu0 0
  %2961 = vmatmul.mubr.bf16.gmra.mxu0 %v2667
  %v2962 = vpop.f32.mrf.mxu0
  %v2963 = vadd.f32 %v2715, %v2962
  %v2964 = vpop.f32.mrf.mxu0
  %v2965 = vpop.f32.mrf.mxu0
  %v2966 = vadd.f32 %v2715, %v2965
  %v2967 = vpop.f32.mrf.mxu0
  %2968 = vmatprep.mubr.bf16.mxu0 0
  %2969 = vmatmul.mubr.bf16.gmra.mxu0 %v2668
  %v2970 = vpop.f32.mrf.mxu0
  %v2971 = vadd.f32 %v2715, %v2970
  %v2972 = vpop.f32.mrf.mxu0
  %v2973 = vpop.f32.mrf.mxu0
  %v2974 = vadd.f32 %v2715, %v2973
  %v2975 = vpop.f32.mrf.mxu0
  %2976 = vmatprep.mubr.bf16.mxu0 0
  %2977 = vmatmul.mubr.bf16.gmra.mxu0 %v2669
  %v2978 = vpop.f32.mrf.mxu0
  %v2979 = vadd.f32 %v2715, %v2978
  %v2980 = vpop.f32.mrf.mxu0
  %v2981 = vpop.f32.mrf.mxu0
  %v2982 = vadd.f32 %v2715, %v2981
  %v2983 = vpop.f32.mrf.mxu0
  %2984 = vdwg.mxu0
  %2985 = vst [vmem:[#allocation2] sm:$0xff] %v2882
  %2986 = vst [vmem:[#allocation2 + $0x8] sm:$0xff] %v2884
  %2987 = vst [vmem:[#allocation2 + $0x10] sm:$0xff] %v2955
  %2988 = vst [vmem:[#allocation2 + $0x18] sm:$0xff] %v2886
  %2989 = vst [vmem:[#allocation2 + $0x20] sm:$0xff] %v2888
  %2990 = vst [vmem:[#allocation2 + $0x28] sm:$0xff] %v2958
  %2991 = vst [vmem:[#allocation2 + $0x30] sm:$0xff] %v2892
  %2992 = vst [vmem:[#allocation2 + $0x38] sm:$0xff] %v2894
  %2993 = vst [vmem:[#allocation2 + $0x40] sm:$0xff] %v2963
  %2994 = vst [vmem:[#allocation2 + $0x48] sm:$0xff] %v2896
  %2995 = vst [vmem:[#allocation2 + $0x50] sm:$0xff] %v2898
  %2996 = vst [vmem:[#allocation2 + $0x58] sm:$0xff] %v2966
  %2997 = vst [vmem:[#allocation2 + $0x60] sm:$0xff] %v2902
  %2998 = vst [vmem:[#allocation2 + $0x68] sm:$0xff] %v2904
  %2999 = vst [vmem:[#allocation2 + $0x70] sm:$0xff] %v2971
  %3000 = vst [vmem:[#allocation2 + $0x78] sm:$0xff] %v2906
  %3001 = vst [vmem:[#allocation2 + $0x80] sm:$0xff] %v2908
  %3002 = vst [vmem:[#allocation2 + $0x88] sm:$0xff] %v2974
  %3003 = vst [vmem:[#allocation2 + $0x90] sm:$0xff] %v2912
  %3004 = vst [vmem:[#allocation2 + $0x98] sm:$0xff] %v2914
  %3005 = vst [vmem:[#allocation2 + $0xa0] sm:$0xff] %v2979
  %3006 = vst [vmem:[#allocation2 + $0xa8] sm:$0xff] %v2916
  %3007 = vst [vmem:[#allocation2 + $0xb0] sm:$0xff] %v2918
  %3008 = vst [vmem:[#allocation2 + $0xb8] sm:$0xff] %v2982
  %3009 = vst [vmem:[#allocation4] sm:$0xff] 0.0
  %v3010 = vld [vmem:[#allocation4] sm:$0xff]
  %v3011 = vld [vmem:[%s414] sm:$0xff]
  %v3012 = vld [vmem:[%s414 + $0x8] sm:$0xff]
  %v3013 = vld [vmem:[%s414 + $0x10] sm:$0xff]
  %v3014 = vpack.c.bf16 %v3010, %v3010
  %v3015 = vld [vmem:[%s6] sm:$0xff]
  %v3016 = vld [vmem:[%s6 + $0x8] sm:$0xf]
  %v3017 = vld [vmem:[%s6 + $0xc] sm:$0xff]
  %v3018 = vld [vmem:[%s6 + $0x14] sm:$0xf]
  %v3019 = vld [vmem:[%s6 + $0x18] sm:$0xff]
  %v3020 = vld [vmem:[%s6 + $0x20] sm:$0xf]
  %v3021 = vld [vmem:[%s6 + $0x24] sm:$0xff]
  %v3022 = vld [vmem:[%s6 + $0x2c] sm:$0xf]
  %v3023 = vld [vmem:[%s6 + $0x30] sm:$0xff]
  %v3024 = vld [vmem:[%s6 + $0x38] sm:$0xf]
  %v3025 = vld [vmem:[%s6 + $0x3c] sm:$0xff]
  %v3026 = vld [vmem:[%s6 + $0x44] sm:$0xf]
  %v3027 = vld [vmem:[%s6 + $0x48] sm:$0xff]
  %v3028 = vld [vmem:[%s6 + $0x50] sm:$0xf]
  %v3029 = vld [vmem:[%s6 + $0x54] sm:$0xff]
  %v3030 = vld [vmem:[%s6 + $0x5c] sm:$0xf]
  %v3031 = vld [vmem:[%s6 + $0x60] sm:$0xff]
  %v3032 = vld [vmem:[%s6 + $0x68] sm:$0xf]
  %v3033 = vld [vmem:[%s6 + $0x6c] sm:$0xff]
  %v3034 = vld [vmem:[%s6 + $0x74] sm:$0xf]
  %v3035 = vld [vmem:[%s6 + $0x78] sm:$0xff]
  %v3036 = vld [vmem:[%s6 + $0x80] sm:$0xf]
  %v3037 = vld [vmem:[%s6 + $0x84] sm:$0xff]
  %v3038 = vld [vmem:[%s6 + $0x8c] sm:$0xf]
  %v3039 = vld [vmem:[%s6 + $0x90] sm:$0xff]
  %v3040 = vld [vmem:[%s6 + $0x98] sm:$0xf]
  %v3041 = vld [vmem:[%s6 + $0x9c] sm:$0xff]
  %v3042 = vld [vmem:[%s6 + $0xa4] sm:$0xf]
  %v3043 = vld [vmem:[%s6 + $0xa8] sm:$0xff]
  %v3044 = vld [vmem:[%s6 + $0xb0] sm:$0xf]
  %v3045 = vld [vmem:[%s6 + $0xb4] sm:$0xff]
  %v3046 = vld [vmem:[%s6 + $0xbc] sm:$0xf]
  %v3079 = vunpack.c.l.b16 %v3015
  %v3080 = vunpack.c.h.b16 %v3015
  %v3081 = vunpack.c.l.b16 %v3016
  %v3082 = vunpack.c.l.b16 %v3017
  %v3083 = vunpack.c.h.b16 %v3017
  %v3084 = vunpack.c.l.b16 %v3018
  %v3085 = vunpack.c.l.b16 %v3019
  %v3086 = vunpack.c.h.b16 %v3019
  %v3087 = vunpack.c.l.b16 %v3020
  %v3088 = vunpack.c.l.b16 %v3021
  %v3089 = vunpack.c.h.b16 %v3021
  %v3090 = vunpack.c.l.b16 %v3022
  %v3091 = vunpack.c.l.b16 %v3023
  %v3092 = vunpack.c.h.b16 %v3023
  %v3093 = vunpack.c.l.b16 %v3024
  %v3094 = vunpack.c.l.b16 %v3025
  %v3095 = vunpack.c.h.b16 %v3025
  %v3096 = vunpack.c.l.b16 %v3026
  %v3097 = vunpack.c.l.b16 %v3027
  %v3098 = vunpack.c.h.b16 %v3027
  %v3099 = vunpack.c.l.b16 %v3028
  %v3100 = vunpack.c.l.b16 %v3029
  %v3101 = vunpack.c.h.b16 %v3029
  %v3102 = vunpack.c.l.b16 %v3030
  %v3103 = vunpack.c.l.b16 %v3031
  %v3104 = vunpack.c.h.b16 %v3031
  %v3105 = vunpack.c.l.b16 %v3032
  %v3106 = vunpack.c.l.b16 %v3033
  %v3107 = vunpack.c.h.b16 %v3033
  %v3108 = vunpack.c.l.b16 %v3034
  %v3109 = vunpack.c.l.b16 %v3035
  %v3110 = vunpack.c.h.b16 %v3035
  %v3111 = vunpack.c.l.b16 %v3036
  %v3112 = vunpack.c.l.b16 %v3037
  %v3113 = vunpack.c.h.b16 %v3037
  %v3114 = vunpack.c.l.b16 %v3038
  %v3115 = vunpack.c.l.b16 %v3039
  %v3116 = vunpack.c.h.b16 %v3039
  %v3117 = vunpack.c.l.b16 %v3040
  %v3118 = vunpack.c.l.b16 %v3041
  %v3119 = vunpack.c.h.b16 %v3041
  %v3120 = vunpack.c.l.b16 %v3042
  %v3121 = vunpack.c.l.b16 %v3043
  %v3122 = vunpack.c.h.b16 %v3043
  %v3123 = vunpack.c.l.b16 %v3044
  %v3124 = vunpack.c.l.b16 %v3045
  %v3125 = vunpack.c.h.b16 %v3045
  %v3126 = vunpack.c.l.b16 %v3046
  %v3127 = vpack.c.b16 %v3082, %v3079
  %v3128 = vpack.c.b16 %v3083, %v3080
  %v3129 = vpack.c.b16 %v3084, %v3081
  %v3130 = vpack.c.b16 %v3088, %v3085
  %v3131 = vpack.c.b16 %v3089, %v3086
  %v3132 = vpack.c.b16 %v3090, %v3087
  %v3133 = vpack.c.b16 %v3094, %v3091
  %v3134 = vpack.c.b16 %v3095, %v3092
  %v3135 = vpack.c.b16 %v3096, %v3093
  %v3136 = vpack.c.b16 %v3100, %v3097
  %v3137 = vpack.c.b16 %v3101, %v3098
  %v3138 = vpack.c.b16 %v3102, %v3099
  %v3139 = vpack.c.b16 %v3106, %v3103
  %v3140 = vpack.c.b16 %v3107, %v3104
  %v3141 = vpack.c.b16 %v3108, %v3105
  %v3142 = vpack.c.b16 %v3112, %v3109
  %v3143 = vpack.c.b16 %v3113, %v3110
  %v3144 = vpack.c.b16 %v3114, %v3111
  %v3145 = vpack.c.b16 %v3118, %v3115
  %v3146 = vpack.c.b16 %v3119, %v3116
  %v3147 = vpack.c.b16 %v3120, %v3117
  %v3148 = vpack.c.b16 %v3124, %v3121
  %v3149 = vpack.c.b16 %v3125, %v3122
  %v3150 = vpack.c.b16 %v3126, %v3123
  %3175 = vmatprep.subr.bf16.mxu0 %v3149
  %3176 = vmatpush1.bf16.msra.mxu0 %v3148
  %3177 = vmatprep.subr.bf16.mxu0 %v3146
  %3178 = vmatpush1.bf16.msra.mxu0 %v3145
  %3179 = vmatprep.subr.bf16.mxu0 %v3143
  %3180 = vmatpush1.bf16.msra.mxu0 %v3142
  %3181 = vmatprep.subr.bf16.mxu0 %v3140
  %3182 = vmatpush1.bf16.msra.mxu0 %v3139
  %3183 = vmatprep.subr.bf16.mxu0 %v3137
  %3184 = vmatpush1.bf16.msra.mxu0 %v3136
  %3185 = vmatprep.subr.bf16.mxu0 %v3134
  %3186 = vmatpush1.bf16.msra.mxu0 %v3133
  %3187 = vmatprep.subr.bf16.mxu0 %v3131
  %3188 = vmatpush1.bf16.msra.mxu0 %v3130
  %3189 = vmatprep.subr.bf16.mxu0 %v3128
  %3190 = vmatpush1.bf16.msra.mxu0 %v3127
  %3191 = vmatprep.subr.bf16.mxu0 0
  %3192 = vmatpush2.bf16.msra.mxu0 0
  %3193 = vmatprep.subr.bf16.mxu0 0
  %3194 = vmatpush2.bf16.msra.mxu0 0
  %3195 = vmatprep.subr.bf16.mxu0 0
  %3196 = vmatpush2.bf16.msra.mxu0 0
  %3197 = vmatprep.subr.bf16.mxu0 0
  %3198 = vmatpush2.bf16.msra.mxu0 0
  %3199 = vmatprep.subr.bf16.mxu0 0
  %3200 = vmatpush2.bf16.msra.mxu0 0
  %3201 = vmatprep.subr.bf16.mxu0 0
  %3202 = vmatpush2.bf16.msra.mxu0 0
  %3203 = vmatprep.subr.bf16.mxu0 0
  %3204 = vmatpush2.bf16.msra.mxu0 0
  %3205 = vmatprep.subr.bf16.mxu0 0
  %3206 = vmatpush2.bf16.msra.mxu0 0
  %3207 = vmatprep.mubr.bf16.mxu0 0
  %3208 = vmatmul.mubr.bf16.gmra.mxu0 %v3014
  %v3209 = vpop.f32.mrf.mxu0
  %v3210 = vadd.f32 0.0, %v3209
  %v3211 = vpop.f32.mrf.mxu0
  %v3212 = vadd.f32 0.0, %v3211
  %v3213 = vpop.f32.mrf.mxu0
  %v3214 = vpop.f32.mrf.mxu0
  %3215 = vdwg.mxu0
  %3216 = vmatprep.subr.bf16.mxu0 0
  %3217 = vmatpush1.bf16.msra.mxu0 %v3150
  %3218 = vmatprep.subr.bf16.mxu0 0
  %3219 = vmatpush1.bf16.msra.mxu0 %v3147
  %3220 = vmatprep.subr.bf16.mxu0 0
  %3221 = vmatpush1.bf16.msra.mxu0 %v3144
  %3222 = vmatprep.subr.bf16.mxu0 0
  %3223 = vmatpush1.bf16.msra.mxu0 %v3141
  %3224 = vmatprep.subr.bf16.mxu0 0
  %3225 = vmatpush1.bf16.msra.mxu0 %v3138
  %3226 = vmatprep.subr.bf16.mxu0 0
  %3227 = vmatpush1.bf16.msra.mxu0 %v3135
  %3228 = vmatprep.subr.bf16.mxu0 0
  %3229 = vmatpush1.bf16.msra.mxu0 %v3132
  %3230 = vmatprep.subr.bf16.mxu0 0
  %3231 = vmatpush1.bf16.msra.mxu0 %v3129
  %3232 = vmatprep.subr.bf16.mxu0 0
  %3233 = vmatpush2.bf16.msra.mxu0 0
  %3234 = vmatprep.subr.bf16.mxu0 0
  %3235 = vmatpush2.bf16.msra.mxu0 0
  %3236 = vmatprep.subr.bf16.mxu0 0
  %3237 = vmatpush2.bf16.msra.mxu0 0
  %3238 = vmatprep.subr.bf16.mxu0 0
  %3239 = vmatpush2.bf16.msra.mxu0 0
  %3240 = vmatprep.subr.bf16.mxu0 0
  %3241 = vmatpush2.bf16.msra.mxu0 0
  %3242 = vmatprep.subr.bf16.mxu0 0
  %3243 = vmatpush2.bf16.msra.mxu0 0
  %3244 = vmatprep.subr.bf16.mxu0 0
  %3245 = vmatpush2.bf16.msra.mxu0 0
  %3246 = vmatprep.subr.bf16.mxu0 0
  %3247 = vmatpush2.bf16.msra.mxu0 0
  %3248 = vmatprep.mubr.bf16.mxu0 0
  %3249 = vmatmul.mubr.bf16.gmra.mxu0 %v3014
  %v3250 = vpop.f32.mrf.mxu0
  %v3251 = vadd.f32 0.0, %v3250
  %v3252 = vpop.f32.mrf.mxu0
  %v3253 = vpop.f32.mrf.mxu0
  %v3254 = vpop.f32.mrf.mxu0
  %3255 = vdwg.mxu0
  %v3256 = vadd.f32 %v3011, %v3210
  %v3257 = vxor.u32 %v3256, 2147483648
  %v3258 = vmul.f32 %v3257, 1.442695
  %v3259 = vpow.pop %v3258
  %v3260 = vadd.f32 %v3259, 1.0
  %v3261 = vrcp.pop %v3260
  %v3262 = vmul.f32 1.0, %v3261
  %v3263 = vadd.f32 %v3012, %v3212
  %v3264 = vxor.u32 %v3263, 2147483648
  %v3265 = vmul.f32 %v3264, 1.442695
  %v3266 = vpow.pop %v3265
  %v3267 = vadd.f32 %v3266, 1.0
  %v3268 = vrcp.pop %v3267
  %v3269 = vmul.f32 1.0, %v3268
  %v3270 = vld [vmem:[%s8] sm:$0x1]
  %v3272 = vlaneseq
  %v3273 = vshrl.u32 %v3272, 7
  %v3274 = vsub.s32 0, %v3273
  %v3275 = vrot.slane %v3270, %v3274
  %v3277 = vadd.f32 %v3251, %v3275
  %v3278 = vmul.f32 %v3262, %v3277
  %v3279 = vadd.f32 %v3013, %v3278
  %v3280 = vtanh.pop %v3279
  %v3281 = vsub.f32 1.0, %v3269
  %v3282 = vmul.f32 %v3281, %v3280
  %v3283 = vmul.f32 %v3269, %v3010
  %v3284 = vadd.f32 %v3282, %v3283
  %3285 = vst [vmem:[#allocation4] sm:$0xff] %v3284
  %v3286 = vld [vmem:[#allocation4] sm:$0xff]
  %v3287 = vld [vmem:[%s694] sm:$0xff]
  %v3288 = vld [vmem:[%s694 + $0x8] sm:$0xff]
  %v3289 = vld [vmem:[%s694 + $0x10] sm:$0xff]
  %v3290 = vpack.c.bf16 %v3286, %v3286
  %v3291 = vld [vmem:[%s6] sm:$0xff]
  %v3292 = vld [vmem:[%s6 + $0x8] sm:$0xf]
  %v3293 = vld [vmem:[%s6 + $0xc] sm:$0xff]
  %v3294 = vld [vmem:[%s6 + $0x14] sm:$0xf]
  %v3295 = vld [vmem:[%s6 + $0x18] sm:$0xff]
  %v3296 = vld [vmem:[%s6 + $0x20] sm:$0xf]
  %v3297 = vld [vmem:[%s6 + $0x24] sm:$0xff]
  %v3298 = vld [vmem:[%s6 + $0x2c] sm:$0xf]
  %v3299 = vld [vmem:[%s6 + $0x30] sm:$0xff]
  %v3300 = vld [vmem:[%s6 + $0x38] sm:$0xf]
  %v3301 = vld [vmem:[%s6 + $0x3c] sm:$0xff]
  %v3302 = vld [vmem:[%s6 + $0x44] sm:$0xf]
  %v3303 = vld [vmem:[%s6 + $0x48] sm:$0xff]
  %v3304 = vld [vmem:[%s6 + $0x50] sm:$0xf]
  %v3305 = vld [vmem:[%s6 + $0x54] sm:$0xff]
  %v3306 = vld [vmem:[%s6 + $0x5c] sm:$0xf]
  %v3307 = vld [vmem:[%s6 + $0x60] sm:$0xff]
  %v3308 = vld [vmem:[%s6 + $0x68] sm:$0xf]
  %v3309 = vld [vmem:[%s6 + $0x6c] sm:$0xff]
  %v3310 = vld [vmem:[%s6 + $0x74] sm:$0xf]
  %v3311 = vld [vmem:[%s6 + $0x78] sm:$0xff]
  %v3312 = vld [vmem:[%s6 + $0x80] sm:$0xf]
  %v3313 = vld [vmem:[%s6 + $0x84] sm:$0xff]
  %v3314 = vld [vmem:[%s6 + $0x8c] sm:$0xf]
  %v3315 = vld [vmem:[%s6 + $0x90] sm:$0xff]
  %v3316 = vld [vmem:[%s6 + $0x98] sm:$0xf]
  %v3317 = vld [vmem:[%s6 + $0x9c] sm:$0xff]
  %v3318 = vld [vmem:[%s6 + $0xa4] sm:$0xf]
  %v3319 = vld [vmem:[%s6 + $0xa8] sm:$0xff]
  %v3320 = vld [vmem:[%s6 + $0xb0] sm:$0xf]
  %v3321 = vld [vmem:[%s6 + $0xb4] sm:$0xff]
  %v3322 = vld [vmem:[%s6 + $0xbc] sm:$0xf]
  %v3355 = vunpack.c.l.b16 %v3291
  %v3356 = vunpack.c.h.b16 %v3291
  %v3357 = vunpack.c.l.b16 %v3292
  %v3358 = vunpack.c.l.b16 %v3293
  %v3359 = vunpack.c.h.b16 %v3293
  %v3360 = vunpack.c.l.b16 %v3294
  %v3361 = vunpack.c.l.b16 %v3295
  %v3362 = vunpack.c.h.b16 %v3295
  %v3363 = vunpack.c.l.b16 %v3296
  %v3364 = vunpack.c.l.b16 %v3297
  %v3365 = vunpack.c.h.b16 %v3297
  %v3366 = vunpack.c.l.b16 %v3298
  %v3367 = vunpack.c.l.b16 %v3299
  %v3368 = vunpack.c.h.b16 %v3299
  %v3369 = vunpack.c.l.b16 %v3300
  %v3370 = vunpack.c.l.b16 %v3301
  %v3371 = vunpack.c.h.b16 %v3301
  %v3372 = vunpack.c.l.b16 %v3302
  %v3373 = vunpack.c.l.b16 %v3303
  %v3374 = vunpack.c.h.b16 %v3303
  %v3375 = vunpack.c.l.b16 %v3304
  %v3376 = vunpack.c.l.b16 %v3305
  %v3377 = vunpack.c.h.b16 %v3305
  %v3378 = vunpack.c.l.b16 %v3306
  %v3379 = vunpack.c.l.b16 %v3307
  %v3380 = vunpack.c.h.b16 %v3307
  %v3381 = vunpack.c.l.b16 %v3308
  %v3382 = vunpack.c.l.b16 %v3309
  %v3383 = vunpack.c.h.b16 %v3309
  %v3384 = vunpack.c.l.b16 %v3310
  %v3385 = vunpack.c.l.b16 %v3311
  %v3386 = vunpack.c.h.b16 %v3311
  %v3387 = vunpack.c.l.b16 %v3312
  %v3388 = vunpack.c.l.b16 %v3313
  %v3389 = vunpack.c.h.b16 %v3313
  %v3390 = vunpack.c.l.b16 %v3314
  %v3391 = vunpack.c.l.b16 %v3315
  %v3392 = vunpack.c.h.b16 %v3315
  %v3393 = vunpack.c.l.b16 %v3316
  %v3394 = vunpack.c.l.b16 %v3317
  %v3395 = vunpack.c.h.b16 %v3317
  %v3396 = vunpack.c.l.b16 %v3318
  %v3397 = vunpack.c.l.b16 %v3319
  %v3398 = vunpack.c.h.b16 %v3319
  %v3399 = vunpack.c.l.b16 %v3320
  %v3400 = vunpack.c.l.b16 %v3321
  %v3401 = vunpack.c.h.b16 %v3321
  %v3402 = vunpack.c.l.b16 %v3322
  %v3403 = vpack.c.b16 %v3358, %v3355
  %v3404 = vpack.c.b16 %v3359, %v3356
  %v3405 = vpack.c.b16 %v3360, %v3357
  %v3406 = vpack.c.b16 %v3364, %v3361
  %v3407 = vpack.c.b16 %v3365, %v3362
  %v3408 = vpack.c.b16 %v3366, %v3363
  %v3409 = vpack.c.b16 %v3370, %v3367
  %v3410 = vpack.c.b16 %v3371, %v3368
  %v3411 = vpack.c.b16 %v3372, %v3369
  %v3412 = vpack.c.b16 %v3376, %v3373
  %v3413 = vpack.c.b16 %v3377, %v3374
  %v3414 = vpack.c.b16 %v3378, %v3375
  %v3415 = vpack.c.b16 %v3382, %v3379
  %v3416 = vpack.c.b16 %v3383, %v3380
  %v3417 = vpack.c.b16 %v3384, %v3381
  %v3418 = vpack.c.b16 %v3388, %v3385
  %v3419 = vpack.c.b16 %v3389, %v3386
  %v3420 = vpack.c.b16 %v3390, %v3387
  %v3421 = vpack.c.b16 %v3394, %v3391
  %v3422 = vpack.c.b16 %v3395, %v3392
  %v3423 = vpack.c.b16 %v3396, %v3393
  %v3424 = vpack.c.b16 %v3400, %v3397
  %v3425 = vpack.c.b16 %v3401, %v3398
  %v3426 = vpack.c.b16 %v3402, %v3399
  %3451 = vmatprep.subr.bf16.mxu0 %v3425
  %3452 = vmatpush1.bf16.msra.mxu0 %v3424
  %3453 = vmatprep.subr.bf16.mxu0 %v3422
  %3454 = vmatpush1.bf16.msra.mxu0 %v3421
  %3455 = vmatprep.subr.bf16.mxu0 %v3419
  %3456 = vmatpush1.bf16.msra.mxu0 %v3418
  %3457 = vmatprep.subr.bf16.mxu0 %v3416
  %3458 = vmatpush1.bf16.msra.mxu0 %v3415
  %3459 = vmatprep.subr.bf16.mxu0 %v3413
  %3460 = vmatpush1.bf16.msra.mxu0 %v3412
  %3461 = vmatprep.subr.bf16.mxu0 %v3410
  %3462 = vmatpush1.bf16.msra.mxu0 %v3409
  %3463 = vmatprep.subr.bf16.mxu0 %v3407
  %3464 = vmatpush1.bf16.msra.mxu0 %v3406
  %3465 = vmatprep.subr.bf16.mxu0 %v3404
  %3466 = vmatpush1.bf16.msra.mxu0 %v3403
  %3467 = vmatprep.subr.bf16.mxu0 0
  %3468 = vmatpush2.bf16.msra.mxu0 0
  %3469 = vmatprep.subr.bf16.mxu0 0
  %3470 = vmatpush2.bf16.msra.mxu0 0
  %3471 = vmatprep.subr.bf16.mxu0 0
  %3472 = vmatpush2.bf16.msra.mxu0 0
  %3473 = vmatprep.subr.bf16.mxu0 0
  %3474 = vmatpush2.bf16.msra.mxu0 0
  %3475 = vmatprep.subr.bf16.mxu0 0
  %3476 = vmatpush2.bf16.msra.mxu0 0
  %3477 = vmatprep.subr.bf16.mxu0 0
  %3478 = vmatpush2.bf16.msra.mxu0 0
  %3479 = vmatprep.subr.bf16.mxu0 0
  %3480 = vmatpush2.bf16.msra.mxu0 0
  %3481 = vmatprep.subr.bf16.mxu0 0
  %3482 = vmatpush2.bf16.msra.mxu0 0
  %3483 = vmatprep.mubr.bf16.mxu0 0
  %3484 = vmatmul.mubr.bf16.gmra.mxu0 %v3290
  %v3485 = vpop.f32.mrf.mxu0
  %v3486 = vadd.f32 0.0, %v3485
  %v3487 = vpop.f32.mrf.mxu0
  %v3488 = vadd.f32 0.0, %v3487
  %v3489 = vpop.f32.mrf.mxu0
  %v3490 = vpop.f32.mrf.mxu0
  %3491 = vdwg.mxu0
  %3492 = vmatprep.subr.bf16.mxu0 0
  %3493 = vmatpush1.bf16.msra.mxu0 %v3426
  %3494 = vmatprep.subr.bf16.mxu0 0
  %3495 = vmatpush1.bf16.msra.mxu0 %v3423
  %3496 = vmatprep.subr.bf16.mxu0 0
  %3497 = vmatpush1.bf16.msra.mxu0 %v3420
  %3498 = vmatprep.subr.bf16.mxu0 0
  %3499 = vmatpush1.bf16.msra.mxu0 %v3417
  %3500 = vmatprep.subr.bf16.mxu0 0
  %3501 = vmatpush1.bf16.msra.mxu0 %v3414
  %3502 = vmatprep.subr.bf16.mxu0 0
  %3503 = vmatpush1.bf16.msra.mxu0 %v3411
  %3504 = vmatprep.subr.bf16.mxu0 0
  %3505 = vmatpush1.bf16.msra.mxu0 %v3408
  %3506 = vmatprep.subr.bf16.mxu0 0
  %3507 = vmatpush1.bf16.msra.mxu0 %v3405
  %3508 = vmatprep.subr.bf16.mxu0 0
  %3509 = vmatpush2.bf16.msra.mxu0 0
  %3510 = vmatprep.subr.bf16.mxu0 0
  %3511 = vmatpush2.bf16.msra.mxu0 0
  %3512 = vmatprep.subr.bf16.mxu0 0
  %3513 = vmatpush2.bf16.msra.mxu0 0
  %3514 = vmatprep.subr.bf16.mxu0 0
  %3515 = vmatpush2.bf16.msra.mxu0 0
  %3516 = vmatprep.subr.bf16.mxu0 0
  %3517 = vmatpush2.bf16.msra.mxu0 0
  %3518 = vmatprep.subr.bf16.mxu0 0
  %3519 = vmatpush2.bf16.msra.mxu0 0
  %3520 = vmatprep.subr.bf16.mxu0 0
  %3521 = vmatpush2.bf16.msra.mxu0 0
  %3522 = vmatprep.subr.bf16.mxu0 0
  %3523 = vmatpush2.bf16.msra.mxu0 0
  %3524 = vmatprep.mubr.bf16.mxu0 0
  %3525 = vmatmul.mubr.bf16.gmra.mxu0 %v3290
  %v3526 = vpop.f32.mrf.mxu0
  %v3527 = vadd.f32 0.0, %v3526
  %v3528 = vpop.f32.mrf.mxu0
  %v3529 = vpop.f32.mrf.mxu0
  %v3530 = vpop.f32.mrf.mxu0
  %3531 = vdwg.mxu0
  %v3532 = vadd.f32 %v3287, %v3486
  %v3533 = vxor.u32 %v3532, 2147483648
  %v3534 = vmul.f32 %v3533, 1.442695
  %v3535 = vpow.pop %v3534
  %v3536 = vadd.f32 %v3535, 1.0
  %v3537 = vrcp.pop %v3536
  %v3538 = vmul.f32 1.0, %v3537
  %v3539 = vadd.f32 %v3288, %v3488
  %v3540 = vxor.u32 %v3539, 2147483648
  %v3541 = vmul.f32 %v3540, 1.442695
  %v3542 = vpow.pop %v3541
  %v3543 = vadd.f32 %v3542, 1.0
  %v3544 = vrcp.pop %v3543
  %v3545 = vmul.f32 1.0, %v3544
  %v3546 = vld [vmem:[%s8] sm:$0x1]
  %v3548 = vlaneseq
  %v3549 = vshrl.u32 %v3548, 7
  %v3550 = vsub.s32 0, %v3549
  %v3551 = vrot.slane %v3546, %v3550
  %v3553 = vadd.f32 %v3527, %v3551
  %v3554 = vmul.f32 %v3538, %v3553
  %v3555 = vadd.f32 %v3289, %v3554
  %v3556 = vtanh.pop %v3555
  %v3557 = vsub.f32 1.0, %v3545
  %v3558 = vmul.f32 %v3557, %v3556
  %v3559 = vmul.f32 %v3545, %v3286
  %v3560 = vadd.f32 %v3558, %v3559
  %3561 = vst [vmem:[#allocation4] sm:$0xff] %v3560
  %v3562 = vld [vmem:[#allocation4] sm:$0xff]
  %v3563 = vld [vmem:[%s975] sm:$0xff]
  %v3564 = vld [vmem:[%s975 + $0x8] sm:$0xff]
  %v3565 = vld [vmem:[%s975 + $0x10] sm:$0xff]
  %v3566 = vpack.c.bf16 %v3562, %v3562
  %v3567 = vld [vmem:[%s6] sm:$0xff]
  %v3568 = vld [vmem:[%s6 + $0x8] sm:$0xf]
  %v3569 = vld [vmem:[%s6 + $0xc] sm:$0xff]
  %v3570 = vld [vmem:[%s6 + $0x14] sm:$0xf]
  %v3571 = vld [vmem:[%s6 + $0x18] sm:$0xff]
  %v3572 = vld [vmem:[%s6 + $0x20] sm:$0xf]
  %v3573 = vld [vmem:[%s6 + $0x24] sm:$0xff]
  %v3574 = vld [vmem:[%s6 + $0x2c] sm:$0xf]
  %v3575 = vld [vmem:[%s6 + $0x30] sm:$0xff]
  %v3576 = vld [vmem:[%s6 + $0x38] sm:$0xf]
  %v3577 = vld [vmem:[%s6 + $0x3c] sm:$0xff]
  %v3578 = vld [vmem:[%s6 + $0x44] sm:$0xf]
  %v3579 = vld [vmem:[%s6 + $0x48] sm:$0xff]
  %v3580 = vld [vmem:[%s6 + $0x50] sm:$0xf]
  %v3581 = vld [vmem:[%s6 + $0x54] sm:$0xff]
  %v3582 = vld [vmem:[%s6 + $0x5c] sm:$0xf]
  %v3583 = vld [vmem:[%s6 + $0x60] sm:$0xff]
  %v3584 = vld [vmem:[%s6 + $0x68] sm:$0xf]
  %v3585 = vld [vmem:[%s6 + $0x6c] sm:$0xff]
  %v3586 = vld [vmem:[%s6 + $0x74] sm:$0xf]
  %v3587 = vld [vmem:[%s6 + $0x78] sm:$0xff]
  %v3588 = vld [vmem:[%s6 + $0x80] sm:$0xf]
  %v3589 = vld [vmem:[%s6 + $0x84] sm:$0xff]
  %v3590 = vld [vmem:[%s6 + $0x8c] sm:$0xf]
  %v3591 = vld [vmem:[%s6 + $0x90] sm:$0xff]
  %v3592 = vld [vmem:[%s6 + $0x98] sm:$0xf]
  %v3593 = vld [vmem:[%s6 + $0x9c] sm:$0xff]
  %v3594 = vld [vmem:[%s6 + $0xa4] sm:$0xf]
  %v3595 = vld [vmem:[%s6 + $0xa8] sm:$0xff]
  %v3596 = vld [vmem:[%s6 + $0xb0] sm:$0xf]
  %v3597 = vld [vmem:[%s6 + $0xb4] sm:$0xff]
  %v3598 = vld [vmem:[%s6 + $0xbc] sm:$0xf]
  %v3631 = vunpack.c.l.b16 %v3567
  %v3632 = vunpack.c.h.b16 %v3567
  %v3633 = vunpack.c.l.b16 %v3568
  %v3634 = vunpack.c.l.b16 %v3569
  %v3635 = vunpack.c.h.b16 %v3569
  %v3636 = vunpack.c.l.b16 %v3570
  %v3637 = vunpack.c.l.b16 %v3571
  %v3638 = vunpack.c.h.b16 %v3571
  %v3639 = vunpack.c.l.b16 %v3572
  %v3640 = vunpack.c.l.b16 %v3573
  %v3641 = vunpack.c.h.b16 %v3573
  %v3642 = vunpack.c.l.b16 %v3574
  %v3643 = vunpack.c.l.b16 %v3575
  %v3644 = vunpack.c.h.b16 %v3575
  %v3645 = vunpack.c.l.b16 %v3576
  %v3646 = vunpack.c.l.b16 %v3577
  %v3647 = vunpack.c.h.b16 %v3577
  %v3648 = vunpack.c.l.b16 %v3578
  %v3649 = vunpack.c.l.b16 %v3579
  %v3650 = vunpack.c.h.b16 %v3579
  %v3651 = vunpack.c.l.b16 %v3580
  %v3652 = vunpack.c.l.b16 %v3581
  %v3653 = vunpack.c.h.b16 %v3581
  %v3654 = vunpack.c.l.b16 %v3582
  %v3655 = vunpack.c.l.b16 %v3583
  %v3656 = vunpack.c.h.b16 %v3583
  %v3657 = vunpack.c.l.b16 %v3584
  %v3658 = vunpack.c.l.b16 %v3585
  %v3659 = vunpack.c.h.b16 %v3585
  %v3660 = vunpack.c.l.b16 %v3586
  %v3661 = vunpack.c.l.b16 %v3587
  %v3662 = vunpack.c.h.b16 %v3587
  %v3663 = vunpack.c.l.b16 %v3588
  %v3664 = vunpack.c.l.b16 %v3589
  %v3665 = vunpack.c.h.b16 %v3589
  %v3666 = vunpack.c.l.b16 %v3590
  %v3667 = vunpack.c.l.b16 %v3591
  %v3668 = vunpack.c.h.b16 %v3591
  %v3669 = vunpack.c.l.b16 %v3592
  %v3670 = vunpack.c.l.b16 %v3593
  %v3671 = vunpack.c.h.b16 %v3593
  %v3672 = vunpack.c.l.b16 %v3594
  %v3673 = vunpack.c.l.b16 %v3595
  %v3674 = vunpack.c.h.b16 %v3595
  %v3675 = vunpack.c.l.b16 %v3596
  %v3676 = vunpack.c.l.b16 %v3597
  %v3677 = vunpack.c.h.b16 %v3597
  %v3678 = vunpack.c.l.b16 %v3598
  %v3679 = vpack.c.b16 %v3634, %v3631
  %v3680 = vpack.c.b16 %v3635, %v3632
  %v3681 = vpack.c.b16 %v3636, %v3633
  %v3682 = vpack.c.b16 %v3640, %v3637
  %v3683 = vpack.c.b16 %v3641, %v3638
  %v3684 = vpack.c.b16 %v3642, %v3639
  %v3685 = vpack.c.b16 %v3646, %v3643
  %v3686 = vpack.c.b16 %v3647, %v3644
  %v3687 = vpack.c.b16 %v3648, %v3645
  %v3688 = vpack.c.b16 %v3652, %v3649
  %v3689 = vpack.c.b16 %v3653, %v3650
  %v3690 = vpack.c.b16 %v3654, %v3651
  %v3691 = vpack.c.b16 %v3658, %v3655
  %v3692 = vpack.c.b16 %v3659, %v3656
  %v3693 = vpack.c.b16 %v3660, %v3657
  %v3694 = vpack.c.b16 %v3664, %v3661
  %v3695 = vpack.c.b16 %v3665, %v3662
  %v3696 = vpack.c.b16 %v3666, %v3663
  %v3697 = vpack.c.b16 %v3670, %v3667
  %v3698 = vpack.c.b16 %v3671, %v3668
  %v3699 = vpack.c.b16 %v3672, %v3669
  %v3700 = vpack.c.b16 %v3676, %v3673
  %v3701 = vpack.c.b16 %v3677, %v3674
  %v3702 = vpack.c.b16 %v3678, %v3675
  %3727 = vmatprep.subr.bf16.mxu0 %v3701
  %3728 = vmatpush1.bf16.msra.mxu0 %v3700
  %3729 = vmatprep.subr.bf16.mxu0 %v3698
  %3730 = vmatpush1.bf16.msra.mxu0 %v3697
  %3731 = vmatprep.subr.bf16.mxu0 %v3695
  %3732 = vmatpush1.bf16.msra.mxu0 %v3694
  %3733 = vmatprep.subr.bf16.mxu0 %v3692
  %3734 = vmatpush1.bf16.msra.mxu0 %v3691
  %3735 = vmatprep.subr.bf16.mxu0 %v3689
  %3736 = vmatpush1.bf16.msra.mxu0 %v3688
  %3737 = vmatprep.subr.bf16.mxu0 %v3686
  %3738 = vmatpush1.bf16.msra.mxu0 %v3685
  %3739 = vmatprep.subr.bf16.mxu0 %v3683
  %3740 = vmatpush1.bf16.msra.mxu0 %v3682
  %3741 = vmatprep.subr.bf16.mxu0 %v3680
  %3742 = vmatpush1.bf16.msra.mxu0 %v3679
  %3743 = vmatprep.subr.bf16.mxu0 0
  %3744 = vmatpush2.bf16.msra.mxu0 0
  %3745 = vmatprep.subr.bf16.mxu0 0
  %3746 = vmatpush2.bf16.msra.mxu0 0
  %3747 = vmatprep.subr.bf16.mxu0 0
  %3748 = vmatpush2.bf16.msra.mxu0 0
  %3749 = vmatprep.subr.bf16.mxu0 0
  %3750 = vmatpush2.bf16.msra.mxu0 0
  %3751 = vmatprep.subr.bf16.mxu0 0
  %3752 = vmatpush2.bf16.msra.mxu0 0
  %3753 = vmatprep.subr.bf16.mxu0 0
  %3754 = vmatpush2.bf16.msra.mxu0 0
  %3755 = vmatprep.subr.bf16.mxu0 0
  %3756 = vmatpush2.bf16.msra.mxu0 0
  %3757 = vmatprep.subr.bf16.mxu0 0
  %3758 = vmatpush2.bf16.msra.mxu0 0
  %3759 = vmatprep.mubr.bf16.mxu0 0
  %3760 = vmatmul.mubr.bf16.gmra.mxu0 %v3566
  %v3761 = vpop.f32.mrf.mxu0
  %v3762 = vadd.f32 0.0, %v3761
  %v3763 = vpop.f32.mrf.mxu0
  %v3764 = vadd.f32 0.0, %v3763
  %v3765 = vpop.f32.mrf.mxu0
  %v3766 = vpop.f32.mrf.mxu0
  %3767 = vdwg.mxu0
  %3768 = vmatprep.subr.bf16.mxu0 0
  %3769 = vmatpush1.bf16.msra.mxu0 %v3702
  %3770 = vmatprep.subr.bf16.mxu0 0
  %3771 = vmatpush1.bf16.msra.mxu0 %v3699
  %3772 = vmatprep.subr.bf16.mxu0 0
  %3773 = vmatpush1.bf16.msra.mxu0 %v3696
  %3774 = vmatprep.subr.bf16.mxu0 0
  %3775 = vmatpush1.bf16.msra.mxu0 %v3693
  %3776 = vmatprep.subr.bf16.mxu0 0
  %3777 = vmatpush1.bf16.msra.mxu0 %v3690
  %3778 = vmatprep.subr.bf16.mxu0 0
  %3779 = vmatpush1.bf16.msra.mxu0 %v3687
  %3780 = vmatprep.subr.bf16.mxu0 0
  %3781 = vmatpush1.bf16.msra.mxu0 %v3684
  %3782 = vmatprep.subr.bf16.mxu0 0
  %3783 = vmatpush1.bf16.msra.mxu0 %v3681
  %3784 = vmatprep.subr.bf16.mxu0 0
  %3785 = vmatpush2.bf16.msra.mxu0 0
  %3786 = vmatprep.subr.bf16.mxu0 0
  %3787 = vmatpush2.bf16.msra.mxu0 0
  %3788 = vmatprep.subr.bf16.mxu0 0
  %3789 = vmatpush2.bf16.msra.mxu0 0
  %3790 = vmatprep.subr.bf16.mxu0 0
  %3791 = vmatpush2.bf16.msra.mxu0 0
  %3792 = vmatprep.subr.bf16.mxu0 0
  %3793 = vmatpush2.bf16.msra.mxu0 0
  %3794 = vmatprep.subr.bf16.mxu0 0
  %3795 = vmatpush2.bf16.msra.mxu0 0
  %3796 = vmatprep.subr.bf16.mxu0 0
  %3797 = vmatpush2.bf16.msra.mxu0 0
  %3798 = vmatprep.subr.bf16.mxu0 0
  %3799 = vmatpush2.bf16.msra.mxu0 0
  %3800 = vmatprep.mubr.bf16.mxu0 0
  %3801 = vmatmul.mubr.bf16.gmra.mxu0 %v3566
  %v3802 = vpop.f32.mrf.mxu0
  %v3803 = vadd.f32 0.0, %v3802
  %v3804 = vpop.f32.mrf.mxu0
  %v3805 = vpop.f32.mrf.mxu0
  %v3806 = vpop.f32.mrf.mxu0
  %3807 = vdwg.mxu0
  %v3808 = vadd.f32 %v3563, %v3762
  %v3809 = vxor.u32 %v3808, 2147483648
  %v3810 = vmul.f32 %v3809, 1.442695
  %v3811 = vpow.pop %v3810
  %v3812 = vadd.f32 %v3811, 1.0
  %v3813 = vrcp.pop %v3812
  %v3814 = vmul.f32 1.0, %v3813
  %v3815 = vadd.f32 %v3564, %v3764
  %v3816 = vxor.u32 %v3815, 2147483648
  %v3817 = vmul.f32 %v3816, 1.442695
  %v3818 = vpow.pop %v3817
  %v3819 = vadd.f32 %v3818, 1.0
  %v3820 = vrcp.pop %v3819
  %v3821 = vmul.f32 1.0, %v3820
  %v3822 = vld [vmem:[%s8] sm:$0x1]
  %v3824 = vlaneseq
  %v3825 = vshrl.u32 %v3824, 7
  %v3826 = vsub.s32 0, %v3825
  %v3827 = vrot.slane %v3822, %v3826
  %v3829 = vadd.f32 %v3803, %v3827
  %v3830 = vmul.f32 %v3814, %v3829
  %v3831 = vadd.f32 %v3565, %v3830
  %v3832 = vtanh.pop %v3831
  %v3833 = vsub.f32 1.0, %v3821
  %v3834 = vmul.f32 %v3833, %v3832
  %v3835 = vmul.f32 %v3821, %v3562
  %v3836 = vadd.f32 %v3834, %v3835
  %3837 = vst [vmem:[#allocation4] sm:$0xff] %v3836
  %v3838 = vld [vmem:[#allocation4] sm:$0xff]
  %v3839 = vld [vmem:[%s1256] sm:$0xff]
  %v3840 = vld [vmem:[%s1256 + $0x8] sm:$0xff]
  %v3841 = vld [vmem:[%s1256 + $0x10] sm:$0xff]
  %v3842 = vpack.c.bf16 %v3838, %v3838
  %v3843 = vld [vmem:[%s6] sm:$0xff]
  %v3844 = vld [vmem:[%s6 + $0x8] sm:$0xf]
  %v3845 = vld [vmem:[%s6 + $0xc] sm:$0xff]
  %v3846 = vld [vmem:[%s6 + $0x14] sm:$0xf]
  %v3847 = vld [vmem:[%s6 + $0x18] sm:$0xff]
  %v3848 = vld [vmem:[%s6 + $0x20] sm:$0xf]
  %v3849 = vld [vmem:[%s6 + $0x24] sm:$0xff]
  %v3850 = vld [vmem:[%s6 + $0x2c] sm:$0xf]
  %v3851 = vld [vmem:[%s6 + $0x30] sm:$0xff]
  %v3852 = vld [vmem:[%s6 + $0x38] sm:$0xf]
  %v3853 = vld [vmem:[%s6 + $0x3c] sm:$0xff]
  %v3854 = vld [vmem:[%s6 + $0x44] sm:$0xf]
  %v3855 = vld [vmem:[%s6 + $0x48] sm:$0xff]
  %v3856 = vld [vmem:[%s6 + $0x50] sm:$0xf]
  %v3857 = vld [vmem:[%s6 + $0x54] sm:$0xff]
  %v3858 = vld [vmem:[%s6 + $0x5c] sm:$0xf]
  %v3859 = vld [vmem:[%s6 + $0x60] sm:$0xff]
  %v3860 = vld [vmem:[%s6 + $0x68] sm:$0xf]
  %v3861 = vld [vmem:[%s6 + $0x6c] sm:$0xff]
  %v3862 = vld [vmem:[%s6 + $0x74] sm:$0xf]
  %v3863 = vld [vmem:[%s6 + $0x78] sm:$0xff]
  %v3864 = vld [vmem:[%s6 + $0x80] sm:$0xf]
  %v3865 = vld [vmem:[%s6 + $0x84] sm:$0xff]
  %v3866 = vld [vmem:[%s6 + $0x8c] sm:$0xf]
  %v3867 = vld [vmem:[%s6 + $0x90] sm:$0xff]
  %v3868 = vld [vmem:[%s6 + $0x98] sm:$0xf]
  %v3869 = vld [vmem:[%s6 + $0x9c] sm:$0xff]
  %v3870 = vld [vmem:[%s6 + $0xa4] sm:$0xf]
  %v3871 = vld [vmem:[%s6 + $0xa8] sm:$0xff]
  %v3872 = vld [vmem:[%s6 + $0xb0] sm:$0xf]
  %v3873 = vld [vmem:[%s6 + $0xb4] sm:$0xff]
  %v3874 = vld [vmem:[%s6 + $0xbc] sm:$0xf]
  %v3907 = vunpack.c.l.b16 %v3843
  %v3908 = vunpack.c.h.b16 %v3843
  %v3909 = vunpack.c.l.b16 %v3844
  %v3910 = vunpack.c.l.b16 %v3845
  %v3911 = vunpack.c.h.b16 %v3845
  %v3912 = vunpack.c.l.b16 %v3846
  %v3913 = vunpack.c.l.b16 %v3847
  %v3914 = vunpack.c.h.b16 %v3847
  %v3915 = vunpack.c.l.b16 %v3848
  %v3916 = vunpack.c.l.b16 %v3849
  %v3917 = vunpack.c.h.b16 %v3849
  %v3918 = vunpack.c.l.b16 %v3850
  %v3919 = vunpack.c.l.b16 %v3851
  %v3920 = vunpack.c.h.b16 %v3851
  %v3921 = vunpack.c.l.b16 %v3852
  %v3922 = vunpack.c.l.b16 %v3853
  %v3923 = vunpack.c.h.b16 %v3853
  %v3924 = vunpack.c.l.b16 %v3854
  %v3925 = vunpack.c.l.b16 %v3855
  %v3926 = vunpack.c.h.b16 %v3855
  %v3927 = vunpack.c.l.b16 %v3856
  %v3928 = vunpack.c.l.b16 %v3857
  %v3929 = vunpack.c.h.b16 %v3857
  %v3930 = vunpack.c.l.b16 %v3858
  %v3931 = vunpack.c.l.b16 %v3859
  %v3932 = vunpack.c.h.b16 %v3859
  %v3933 = vunpack.c.l.b16 %v3860
  %v3934 = vunpack.c.l.b16 %v3861
  %v3935 = vunpack.c.h.b16 %v3861
  %v3936 = vunpack.c.l.b16 %v3862
  %v3937 = vunpack.c.l.b16 %v3863
  %v3938 = vunpack.c.h.b16 %v3863
  %v3939 = vunpack.c.l.b16 %v3864
  %v3940 = vunpack.c.l.b16 %v3865
  %v3941 = vunpack.c.h.b16 %v3865
  %v3942 = vunpack.c.l.b16 %v3866
  %v3943 = vunpack.c.l.b16 %v3867
  %v3944 = vunpack.c.h.b16 %v3867
  %v3945 = vunpack.c.l.b16 %v3868
  %v3946 = vunpack.c.l.b16 %v3869
  %v3947 = vunpack.c.h.b16 %v3869
  %v3948 = vunpack.c.l.b16 %v3870
  %v3949 = vunpack.c.l.b16 %v3871
  %v3950 = vunpack.c.h.b16 %v3871
  %v3951 = vunpack.c.l.b16 %v3872
  %v3952 = vunpack.c.l.b16 %v3873
  %v3953 = vunpack.c.h.b16 %v3873
  %v3954 = vunpack.c.l.b16 %v3874
  %v3955 = vpack.c.b16 %v3910, %v3907
  %v3956 = vpack.c.b16 %v3911, %v3908
  %v3957 = vpack.c.b16 %v3912, %v3909
  %v3958 = vpack.c.b16 %v3916, %v3913
  %v3959 = vpack.c.b16 %v3917, %v3914
  %v3960 = vpack.c.b16 %v3918, %v3915
  %v3961 = vpack.c.b16 %v3922, %v3919
  %v3962 = vpack.c.b16 %v3923, %v3920
  %v3963 = vpack.c.b16 %v3924, %v3921
  %v3964 = vpack.c.b16 %v3928, %v3925
  %v3965 = vpack.c.b16 %v3929, %v3926
  %v3966 = vpack.c.b16 %v3930, %v3927
  %v3967 = vpack.c.b16 %v3934, %v3931
  %v3968 = vpack.c.b16 %v3935, %v3932
  %v3969 = vpack.c.b16 %v3936, %v3933
  %v3970 = vpack.c.b16 %v3940, %v3937
  %v3971 = vpack.c.b16 %v3941, %v3938
  %v3972 = vpack.c.b16 %v3942, %v3939
  %v3973 = vpack.c.b16 %v3946, %v3943
  %v3974 = vpack.c.b16 %v3947, %v3944
  %v3975 = vpack.c.b16 %v3948, %v3945
  %v3976 = vpack.c.b16 %v3952, %v3949
  %v3977 = vpack.c.b16 %v3953, %v3950
  %v3978 = vpack.c.b16 %v3954, %v3951
  %4003 = vmatprep.subr.bf16.mxu0 %v3977
  %4004 = vmatpush1.bf16.msra.mxu0 %v3976
  %4005 = vmatprep.subr.bf16.mxu0 %v3974
  %4006 = vmatpush1.bf16.msra.mxu0 %v3973
  %4007 = vmatprep.subr.bf16.mxu0 %v3971
  %4008 = vmatpush1.bf16.msra.mxu0 %v3970
  %4009 = vmatprep.subr.bf16.mxu0 %v3968
  %4010 = vmatpush1.bf16.msra.mxu0 %v3967
  %4011 = vmatprep.subr.bf16.mxu0 %v3965
  %4012 = vmatpush1.bf16.msra.mxu0 %v3964
  %4013 = vmatprep.subr.bf16.mxu0 %v3962
  %4014 = vmatpush1.bf16.msra.mxu0 %v3961
  %4015 = vmatprep.subr.bf16.mxu0 %v3959
  %4016 = vmatpush1.bf16.msra.mxu0 %v3958
  %4017 = vmatprep.subr.bf16.mxu0 %v3956
  %4018 = vmatpush1.bf16.msra.mxu0 %v3955
  %4019 = vmatprep.subr.bf16.mxu0 0
  %4020 = vmatpush2.bf16.msra.mxu0 0
  %4021 = vmatprep.subr.bf16.mxu0 0
  %4022 = vmatpush2.bf16.msra.mxu0 0
  %4023 = vmatprep.subr.bf16.mxu0 0
  %4024 = vmatpush2.bf16.msra.mxu0 0
  %4025 = vmatprep.subr.bf16.mxu0 0
  %4026 = vmatpush2.bf16.msra.mxu0 0
  %4027 = vmatprep.subr.bf16.mxu0 0
  %4028 = vmatpush2.bf16.msra.mxu0 0
  %4029 = vmatprep.subr.bf16.mxu0 0
  %4030 = vmatpush2.bf16.msra.mxu0 0
  %4031 = vmatprep.subr.bf16.mxu0 0
  %4032 = vmatpush2.bf16.msra.mxu0 0
  %4033 = vmatprep.subr.bf16.mxu0 0
  %4034 = vmatpush2.bf16.msra.mxu0 0
  %4035 = vmatprep.mubr.bf16.mxu0 0
  %4036 = vmatmul.mubr.bf16.gmra.mxu0 %v3842
  %v4037 = vpop.f32.mrf.mxu0
  %v4038 = vadd.f32 0.0, %v4037
  %v4039 = vpop.f32.mrf.mxu0
  %v4040 = vadd.f32 0.0, %v4039
  %v4041 = vpop.f32.mrf.mxu0
  %v4042 = vpop.f32.mrf.mxu0
  %4043 = vdwg.mxu0
  %4044 = vmatprep.subr.bf16.mxu0 0
  %4045 = vmatpush1.bf16.msra.mxu0 %v3978
  %4046 = vmatprep.subr.bf16.mxu0 0
  %4047 = vmatpush1.bf16.msra.mxu0 %v3975
  %4048 = vmatprep.subr.bf16.mxu0 0
  %4049 = vmatpush1.bf16.msra.mxu0 %v3972
  %4050 = vmatprep.subr.bf16.mxu0 0
  %4051 = vmatpush1.bf16.msra.mxu0 %v3969
  %4052 = vmatprep.subr.bf16.mxu0 0
  %4053 = vmatpush1.bf16.msra.mxu0 %v3966
  %4054 = vmatprep.subr.bf16.mxu0 0
  %4055 = vmatpush1.bf16.msra.mxu0 %v3963
  %4056 = vmatprep.subr.bf16.mxu0 0
  %4057 = vmatpush1.bf16.msra.mxu0 %v3960
  %4058 = vmatprep.subr.bf16.mxu0 0
  %4059 = vmatpush1.bf16.msra.mxu0 %v3957
  %4060 = vmatprep.subr.bf16.mxu0 0
  %4061 = vmatpush2.bf16.msra.mxu0 0
  %4062 = vmatprep.subr.bf16.mxu0 0
  %4063 = vmatpush2.bf16.msra.mxu0 0
  %4064 = vmatprep.subr.bf16.mxu0 0
  %4065 = vmatpush2.bf16.msra.mxu0 0
  %4066 = vmatprep.subr.bf16.mxu0 0
  %4067 = vmatpush2.bf16.msra.mxu0 0
  %4068 = vmatprep.subr.bf16.mxu0 0
  %4069 = vmatpush2.bf16.msra.mxu0 0
  %4070 = vmatprep.subr.bf16.mxu0 0
  %4071 = vmatpush2.bf16.msra.mxu0 0
  %4072 = vmatprep.subr.bf16.mxu0 0
  %4073 = vmatpush2.bf16.msra.mxu0 0
  %4074 = vmatprep.subr.bf16.mxu0 0
  %4075 = vmatpush2.bf16.msra.mxu0 0
  %4076 = vmatprep.mubr.bf16.mxu0 0
  %4077 = vmatmul.mubr.bf16.gmra.mxu0 %v3842
  %v4078 = vpop.f32.mrf.mxu0
  %v4079 = vadd.f32 0.0, %v4078
  %v4080 = vpop.f32.mrf.mxu0
  %v4081 = vpop.f32.mrf.mxu0
  %v4082 = vpop.f32.mrf.mxu0
  %4083 = vdwg.mxu0
  %v4084 = vadd.f32 %v3839, %v4038
  %v4085 = vxor.u32 %v4084, 2147483648
  %v4086 = vmul.f32 %v4085, 1.442695
  %v4087 = vpow.pop %v4086
  %v4088 = vadd.f32 %v4087, 1.0
  %v4089 = vrcp.pop %v4088
  %v4090 = vmul.f32 1.0, %v4089
  %v4091 = vadd.f32 %v3840, %v4040
  %v4092 = vxor.u32 %v4091, 2147483648
  %v4093 = vmul.f32 %v4092, 1.442695
  %v4094 = vpow.pop %v4093
  %v4095 = vadd.f32 %v4094, 1.0
  %v4096 = vrcp.pop %v4095
  %v4097 = vmul.f32 1.0, %v4096
  %v4098 = vld [vmem:[%s8] sm:$0x1]
  %v4100 = vlaneseq
  %v4101 = vshrl.u32 %v4100, 7
  %v4102 = vsub.s32 0, %v4101
  %v4103 = vrot.slane %v4098, %v4102
  %v4105 = vadd.f32 %v4079, %v4103
  %v4106 = vmul.f32 %v4090, %v4105
  %v4107 = vadd.f32 %v3841, %v4106
  %v4108 = vtanh.pop %v4107
  %v4109 = vsub.f32 1.0, %v4097
  %v4110 = vmul.f32 %v4109, %v4108
  %v4111 = vmul.f32 %v4097, %v3838
  %v4112 = vadd.f32 %v4110, %v4111
  %4113 = vst [vmem:[#allocation4] sm:$0xff] %v4112
  %v4114 = vld [vmem:[#allocation4] sm:$0xff]
  %v4115 = vld [vmem:[%s1537] sm:$0xff]
  %v4116 = vld [vmem:[%s1537 + $0x8] sm:$0xff]
  %v4117 = vld [vmem:[%s1537 + $0x10] sm:$0xff]
  %v4118 = vpack.c.bf16 %v4114, %v4114
  %v4119 = vld [vmem:[%s6] sm:$0xff]
  %v4120 = vld [vmem:[%s6 + $0x8] sm:$0xf]
  %v4121 = vld [vmem:[%s6 + $0xc] sm:$0xff]
  %v4122 = vld [vmem:[%s6 + $0x14] sm:$0xf]
  %v4123 = vld [vmem:[%s6 + $0x18] sm:$0xff]
  %v4124 = vld [vmem:[%s6 + $0x20] sm:$0xf]
  %v4125 = vld [vmem:[%s6 + $0x24] sm:$0xff]
  %v4126 = vld [vmem:[%s6 + $0x2c] sm:$0xf]
  %v4127 = vld [vmem:[%s6 + $0x30] sm:$0xff]
  %v4128 = vld [vmem:[%s6 + $0x38] sm:$0xf]
  %v4129 = vld [vmem:[%s6 + $0x3c] sm:$0xff]
  %v4130 = vld [vmem:[%s6 + $0x44] sm:$0xf]
  %v4131 = vld [vmem:[%s6 + $0x48] sm:$0xff]
  %v4132 = vld [vmem:[%s6 + $0x50] sm:$0xf]
  %v4133 = vld [vmem:[%s6 + $0x54] sm:$0xff]
  %v4134 = vld [vmem:[%s6 + $0x5c] sm:$0xf]
  %v4135 = vld [vmem:[%s6 + $0x60] sm:$0xff]
  %v4136 = vld [vmem:[%s6 + $0x68] sm:$0xf]
  %v4137 = vld [vmem:[%s6 + $0x6c] sm:$0xff]
  %v4138 = vld [vmem:[%s6 + $0x74] sm:$0xf]
  %v4139 = vld [vmem:[%s6 + $0x78] sm:$0xff]
  %v4140 = vld [vmem:[%s6 + $0x80] sm:$0xf]
  %v4141 = vld [vmem:[%s6 + $0x84] sm:$0xff]
  %v4142 = vld [vmem:[%s6 + $0x8c] sm:$0xf]
  %v4143 = vld [vmem:[%s6 + $0x90] sm:$0xff]
  %v4144 = vld [vmem:[%s6 + $0x98] sm:$0xf]
  %v4145 = vld [vmem:[%s6 + $0x9c] sm:$0xff]
  %v4146 = vld [vmem:[%s6 + $0xa4] sm:$0xf]
  %v4147 = vld [vmem:[%s6 + $0xa8] sm:$0xff]
  %v4148 = vld [vmem:[%s6 + $0xb0] sm:$0xf]
  %v4149 = vld [vmem:[%s6 + $0xb4] sm:$0xff]
  %v4150 = vld [vmem:[%s6 + $0xbc] sm:$0xf]
  %v4183 = vunpack.c.l.b16 %v4119
  %v4184 = vunpack.c.h.b16 %v4119
  %v4185 = vunpack.c.l.b16 %v4120
  %v4186 = vunpack.c.l.b16 %v4121
  %v4187 = vunpack.c.h.b16 %v4121
  %v4188 = vunpack.c.l.b16 %v4122
  %v4189 = vunpack.c.l.b16 %v4123
  %v4190 = vunpack.c.h.b16 %v4123
  %v4191 = vunpack.c.l.b16 %v4124
  %v4192 = vunpack.c.l.b16 %v4125
  %v4193 = vunpack.c.h.b16 %v4125
  %v4194 = vunpack.c.l.b16 %v4126
  %v4195 = vunpack.c.l.b16 %v4127
  %v4196 = vunpack.c.h.b16 %v4127
  %v4197 = vunpack.c.l.b16 %v4128
  %v4198 = vunpack.c.l.b16 %v4129
  %v4199 = vunpack.c.h.b16 %v4129
  %v4200 = vunpack.c.l.b16 %v4130
  %v4201 = vunpack.c.l.b16 %v4131
  %v4202 = vunpack.c.h.b16 %v4131
  %v4203 = vunpack.c.l.b16 %v4132
  %v4204 = vunpack.c.l.b16 %v4133
  %v4205 = vunpack.c.h.b16 %v4133
  %v4206 = vunpack.c.l.b16 %v4134
  %v4207 = vunpack.c.l.b16 %v4135
  %v4208 = vunpack.c.h.b16 %v4135
  %v4209 = vunpack.c.l.b16 %v4136
  %v4210 = vunpack.c.l.b16 %v4137
  %v4211 = vunpack.c.h.b16 %v4137
  %v4212 = vunpack.c.l.b16 %v4138
  %v4213 = vunpack.c.l.b16 %v4139
  %v4214 = vunpack.c.h.b16 %v4139
  %v4215 = vunpack.c.l.b16 %v4140
  %v4216 = vunpack.c.l.b16 %v4141
  %v4217 = vunpack.c.h.b16 %v4141
  %v4218 = vunpack.c.l.b16 %v4142
  %v4219 = vunpack.c.l.b16 %v4143
  %v4220 = vunpack.c.h.b16 %v4143
  %v4221 = vunpack.c.l.b16 %v4144
  %v4222 = vunpack.c.l.b16 %v4145
  %v4223 = vunpack.c.h.b16 %v4145
  %v4224 = vunpack.c.l.b16 %v4146
  %v4225 = vunpack.c.l.b16 %v4147
  %v4226 = vunpack.c.h.b16 %v4147
  %v4227 = vunpack.c.l.b16 %v4148
  %v4228 = vunpack.c.l.b16 %v4149
  %v4229 = vunpack.c.h.b16 %v4149
  %v4230 = vunpack.c.l.b16 %v4150
  %v4231 = vpack.c.b16 %v4186, %v4183
  %v4232 = vpack.c.b16 %v4187, %v4184
  %v4233 = vpack.c.b16 %v4188, %v4185
  %v4234 = vpack.c.b16 %v4192, %v4189
  %v4235 = vpack.c.b16 %v4193, %v4190
  %v4236 = vpack.c.b16 %v4194, %v4191
  %v4237 = vpack.c.b16 %v4198, %v4195
  %v4238 = vpack.c.b16 %v4199, %v4196
  %v4239 = vpack.c.b16 %v4200, %v4197
  %v4240 = vpack.c.b16 %v4204, %v4201
  %v4241 = vpack.c.b16 %v4205, %v4202
  %v4242 = vpack.c.b16 %v4206, %v4203
  %v4243 = vpack.c.b16 %v4210, %v4207
  %v4244 = vpack.c.b16 %v4211, %v4208
  %v4245 = vpack.c.b16 %v4212, %v4209
  %v4246 = vpack.c.b16 %v4216, %v4213
  %v4247 = vpack.c.b16 %v4217, %v4214
  %v4248 = vpack.c.b16 %v4218, %v4215
  %v4249 = vpack.c.b16 %v4222, %v4219
  %v4250 = vpack.c.b16 %v4223, %v4220
  %v4251 = vpack.c.b16 %v4224, %v4221
  %v4252 = vpack.c.b16 %v4228, %v4225
  %v4253 = vpack.c.b16 %v4229, %v4226
  %v4254 = vpack.c.b16 %v4230, %v4227
  %4279 = vmatprep.subr.bf16.mxu0 %v4253
  %4280 = vmatpush1.bf16.msra.mxu0 %v4252
  %4281 = vmatprep.subr.bf16.mxu0 %v4250
  %4282 = vmatpush1.bf16.msra.mxu0 %v4249
  %4283 = vmatprep.subr.bf16.mxu0 %v4247
  %4284 = vmatpush1.bf16.msra.mxu0 %v4246
  %4285 = vmatprep.subr.bf16.mxu0 %v4244
  %4286 = vmatpush1.bf16.msra.mxu0 %v4243
  %4287 = vmatprep.subr.bf16.mxu0 %v4241
  %4288 = vmatpush1.bf16.msra.mxu0 %v4240
  %4289 = vmatprep.subr.bf16.mxu0 %v4238
  %4290 = vmatpush1.bf16.msra.mxu0 %v4237
  %4291 = vmatprep.subr.bf16.mxu0 %v4235
  %4292 = vmatpush1.bf16.msra.mxu0 %v4234
  %4293 = vmatprep.subr.bf16.mxu0 %v4232
  %4294 = vmatpush1.bf16.msra.mxu0 %v4231
  %4295 = vmatprep.subr.bf16.mxu0 0
  %4296 = vmatpush2.bf16.msra.mxu0 0
  %4297 = vmatprep.subr.bf16.mxu0 0
  %4298 = vmatpush2.bf16.msra.mxu0 0
  %4299 = vmatprep.subr.bf16.mxu0 0
  %4300 = vmatpush2.bf16.msra.mxu0 0
  %4301 = vmatprep.subr.bf16.mxu0 0
  %4302 = vmatpush2.bf16.msra.mxu0 0
  %4303 = vmatprep.subr.bf16.mxu0 0
  %4304 = vmatpush2.bf16.msra.mxu0 0
  %4305 = vmatprep.subr.bf16.mxu0 0
  %4306 = vmatpush2.bf16.msra.mxu0 0
  %4307 = vmatprep.subr.bf16.mxu0 0
  %4308 = vmatpush2.bf16.msra.mxu0 0
  %4309 = vmatprep.subr.bf16.mxu0 0
  %4310 = vmatpush2.bf16.msra.mxu0 0
  %4311 = vmatprep.mubr.bf16.mxu0 0
  %4312 = vmatmul.mubr.bf16.gmra.mxu0 %v4118
  %v4313 = vpop.f32.mrf.mxu0
  %v4314 = vadd.f32 0.0, %v4313
  %v4315 = vpop.f32.mrf.mxu0
  %v4316 = vadd.f32 0.0, %v4315
  %v4317 = vpop.f32.mrf.mxu0
  %v4318 = vpop.f32.mrf.mxu0
  %4319 = vdwg.mxu0
  %4320 = vmatprep.subr.bf16.mxu0 0
  %4321 = vmatpush1.bf16.msra.mxu0 %v4254
  %4322 = vmatprep.subr.bf16.mxu0 0
  %4323 = vmatpush1.bf16.msra.mxu0 %v4251
  %4324 = vmatprep.subr.bf16.mxu0 0
  %4325 = vmatpush1.bf16.msra.mxu0 %v4248
  %4326 = vmatprep.subr.bf16.mxu0 0
  %4327 = vmatpush1.bf16.msra.mxu0 %v4245
  %4328 = vmatprep.subr.bf16.mxu0 0
  %4329 = vmatpush1.bf16.msra.mxu0 %v4242
  %4330 = vmatprep.subr.bf16.mxu0 0
  %4331 = vmatpush1.bf16.msra.mxu0 %v4239
  %4332 = vmatprep.subr.bf16.mxu0 0
  %4333 = vmatpush1.bf16.msra.mxu0 %v4236
  %4334 = vmatprep.subr.bf16.mxu0 0
  %4335 = vmatpush1.bf16.msra.mxu0 %v4233
  %4336 = vmatprep.subr.bf16.mxu0 0
  %4337 = vmatpush2.bf16.msra.mxu0 0
  %4338 = vmatprep.subr.bf16.mxu0 0
  %4339 = vmatpush2.bf16.msra.mxu0 0
  %4340 = vmatprep.subr.bf16.mxu0 0
  %4341 = vmatpush2.bf16.msra.mxu0 0
  %4342 = vmatprep.subr.bf16.mxu0 0
  %4343 = vmatpush2.bf16.msra.mxu0 0
  %4344 = vmatprep.subr.bf16.mxu0 0
  %4345 = vmatpush2.bf16.msra.mxu0 0
  %4346 = vmatprep.subr.bf16.mxu0 0
  %4347 = vmatpush2.bf16.msra.mxu0 0
  %4348 = vmatprep.subr.bf16.mxu0 0
  %4349 = vmatpush2.bf16.msra.mxu0 0
  %4350 = vmatprep.subr.bf16.mxu0 0
  %4351 = vmatpush2.bf16.msra.mxu0 0
  %4352 = vmatprep.mubr.bf16.mxu0 0
  %4353 = vmatmul.mubr.bf16.gmra.mxu0 %v4118
  %v4354 = vpop.f32.mrf.mxu0
  %v4355 = vadd.f32 0.0, %v4354
  %v4356 = vpop.f32.mrf.mxu0
  %v4357 = vpop.f32.mrf.mxu0
  %v4358 = vpop.f32.mrf.mxu0
  %4359 = vdwg.mxu0
  %v4360 = vadd.f32 %v4115, %v4314
  %v4361 = vxor.u32 %v4360, 2147483648
  %v4362 = vmul.f32 %v4361, 1.442695
  %v4363 = vpow.pop %v4362
  %v4364 = vadd.f32 %v4363, 1.0
  %v4365 = vrcp.pop %v4364
  %v4366 = vmul.f32 1.0, %v4365
  %v4367 = vadd.f32 %v4116, %v4316
  %v4368 = vxor.u32 %v4367, 2147483648
  %v4369 = vmul.f32 %v4368, 1.442695
  %v4370 = vpow.pop %v4369
  %v4371 = vadd.f32 %v4370, 1.0
  %v4372 = vrcp.pop %v4371
  %v4373 = vmul.f32 1.0, %v4372
  %v4374 = vld [vmem:[%s8] sm:$0x1]
  %v4376 = vlaneseq
  %v4377 = vshrl.u32 %v4376, 7
  %v4378 = vsub.s32 0, %v4377
  %v4379 = vrot.slane %v4374, %v4378
  %v4381 = vadd.f32 %v4355, %v4379
  %v4382 = vmul.f32 %v4366, %v4381
  %v4383 = vadd.f32 %v4117, %v4382
  %v4384 = vtanh.pop %v4383
  %v4385 = vsub.f32 1.0, %v4373
  %v4386 = vmul.f32 %v4385, %v4384
  %v4387 = vmul.f32 %v4373, %v4114
  %v4388 = vadd.f32 %v4386, %v4387
  %4389 = vst [vmem:[#allocation4] sm:$0xff] %v4388
  %v4390 = vld [vmem:[#allocation4] sm:$0xff]
  %v4391 = vld [vmem:[%s1818] sm:$0xff]
  %v4392 = vld [vmem:[%s1818 + $0x8] sm:$0xff]
  %v4393 = vld [vmem:[%s1818 + $0x10] sm:$0xff]
  %v4394 = vpack.c.bf16 %v4390, %v4390
  %v4395 = vld [vmem:[%s6] sm:$0xff]
  %v4396 = vld [vmem:[%s6 + $0x8] sm:$0xf]
  %v4397 = vld [vmem:[%s6 + $0xc] sm:$0xff]
  %v4398 = vld [vmem:[%s6 + $0x14] sm:$0xf]
  %v4399 = vld [vmem:[%s6 + $0x18] sm:$0xff]
  %v4400 = vld [vmem:[%s6 + $0x20] sm:$0xf]
  %v4401 = vld [vmem:[%s6 + $0x24] sm:$0xff]
  %v4402 = vld [vmem:[%s6 + $0x2c] sm:$0xf]
  %v4403 = vld [vmem:[%s6 + $0x30] sm:$0xff]
  %v4404 = vld [vmem:[%s6 + $0x38] sm:$0xf]
  %v4405 = vld [vmem:[%s6 + $0x3c] sm:$0xff]
  %v4406 = vld [vmem:[%s6 + $0x44] sm:$0xf]
  %v4407 = vld [vmem:[%s6 + $0x48] sm:$0xff]
  %v4408 = vld [vmem:[%s6 + $0x50] sm:$0xf]
  %v4409 = vld [vmem:[%s6 + $0x54] sm:$0xff]
  %v4410 = vld [vmem:[%s6 + $0x5c] sm:$0xf]
  %v4411 = vld [vmem:[%s6 + $0x60] sm:$0xff]
  %v4412 = vld [vmem:[%s6 + $0x68] sm:$0xf]
  %v4413 = vld [vmem:[%s6 + $0x6c] sm:$0xff]
  %v4414 = vld [vmem:[%s6 + $0x74] sm:$0xf]
  %v4415 = vld [vmem:[%s6 + $0x78] sm:$0xff]
  %v4416 = vld [vmem:[%s6 + $0x80] sm:$0xf]
  %v4417 = vld [vmem:[%s6 + $0x84] sm:$0xff]
  %v4418 = vld [vmem:[%s6 + $0x8c] sm:$0xf]
  %v4419 = vld [vmem:[%s6 + $0x90] sm:$0xff]
  %v4420 = vld [vmem:[%s6 + $0x98] sm:$0xf]
  %v4421 = vld [vmem:[%s6 + $0x9c] sm:$0xff]
  %v4422 = vld [vmem:[%s6 + $0xa4] sm:$0xf]
  %v4423 = vld [vmem:[%s6 + $0xa8] sm:$0xff]
  %v4424 = vld [vmem:[%s6 + $0xb0] sm:$0xf]
  %v4425 = vld [vmem:[%s6 + $0xb4] sm:$0xff]
  %v4426 = vld [vmem:[%s6 + $0xbc] sm:$0xf]
  %v4459 = vunpack.c.l.b16 %v4395
  %v4460 = vunpack.c.h.b16 %v4395
  %v4461 = vunpack.c.l.b16 %v4396
  %v4462 = vunpack.c.l.b16 %v4397
  %v4463 = vunpack.c.h.b16 %v4397
  %v4464 = vunpack.c.l.b16 %v4398
  %v4465 = vunpack.c.l.b16 %v4399
  %v4466 = vunpack.c.h.b16 %v4399
  %v4467 = vunpack.c.l.b16 %v4400
  %v4468 = vunpack.c.l.b16 %v4401
  %v4469 = vunpack.c.h.b16 %v4401
  %v4470 = vunpack.c.l.b16 %v4402
  %v4471 = vunpack.c.l.b16 %v4403
  %v4472 = vunpack.c.h.b16 %v4403
  %v4473 = vunpack.c.l.b16 %v4404
  %v4474 = vunpack.c.l.b16 %v4405
  %v4475 = vunpack.c.h.b16 %v4405
  %v4476 = vunpack.c.l.b16 %v4406
  %v4477 = vunpack.c.l.b16 %v4407
  %v4478 = vunpack.c.h.b16 %v4407
  %v4479 = vunpack.c.l.b16 %v4408
  %v4480 = vunpack.c.l.b16 %v4409
  %v4481 = vunpack.c.h.b16 %v4409
  %v4482 = vunpack.c.l.b16 %v4410
  %v4483 = vunpack.c.l.b16 %v4411
  %v4484 = vunpack.c.h.b16 %v4411
  %v4485 = vunpack.c.l.b16 %v4412
  %v4486 = vunpack.c.l.b16 %v4413
  %v4487 = vunpack.c.h.b16 %v4413
  %v4488 = vunpack.c.l.b16 %v4414
  %v4489 = vunpack.c.l.b16 %v4415
  %v4490 = vunpack.c.h.b16 %v4415
  %v4491 = vunpack.c.l.b16 %v4416
  %v4492 = vunpack.c.l.b16 %v4417
  %v4493 = vunpack.c.h.b16 %v4417
  %v4494 = vunpack.c.l.b16 %v4418
  %v4495 = vunpack.c.l.b16 %v4419
  %v4496 = vunpack.c.h.b16 %v4419
  %v4497 = vunpack.c.l.b16 %v4420
  %v4498 = vunpack.c.l.b16 %v4421
  %v4499 = vunpack.c.h.b16 %v4421
  %v4500 = vunpack.c.l.b16 %v4422
  %v4501 = vunpack.c.l.b16 %v4423
  %v4502 = vunpack.c.h.b16 %v4423
  %v4503 = vunpack.c.l.b16 %v4424
  %v4504 = vunpack.c.l.b16 %v4425
  %v4505 = vunpack.c.h.b16 %v4425
  %v4506 = vunpack.c.l.b16 %v4426
  %v4507 = vpack.c.b16 %v4462, %v4459
  %v4508 = vpack.c.b16 %v4463, %v4460
  %v4509 = vpack.c.b16 %v4464, %v4461
  %v4510 = vpack.c.b16 %v4468, %v4465
  %v4511 = vpack.c.b16 %v4469, %v4466
  %v4512 = vpack.c.b16 %v4470, %v4467
  %v4513 = vpack.c.b16 %v4474, %v4471
  %v4514 = vpack.c.b16 %v4475, %v4472
  %v4515 = vpack.c.b16 %v4476, %v4473
  %v4516 = vpack.c.b16 %v4480, %v4477
  %v4517 = vpack.c.b16 %v4481, %v4478
  %v4518 = vpack.c.b16 %v4482, %v4479
  %v4519 = vpack.c.b16 %v4486, %v4483
  %v4520 = vpack.c.b16 %v4487, %v4484
  %v4521 = vpack.c.b16 %v4488, %v4485
  %v4522 = vpack.c.b16 %v4492, %v4489
  %v4523 = vpack.c.b16 %v4493, %v4490
  %v4524 = vpack.c.b16 %v4494, %v4491
  %v4525 = vpack.c.b16 %v4498, %v4495
  %v4526 = vpack.c.b16 %v4499, %v4496
  %v4527 = vpack.c.b16 %v4500, %v4497
  %v4528 = vpack.c.b16 %v4504, %v4501
  %v4529 = vpack.c.b16 %v4505, %v4502
  %v4530 = vpack.c.b16 %v4506, %v4503
  %4555 = vmatprep.subr.bf16.mxu0 %v4529
  %4556 = vmatpush1.bf16.msra.mxu0 %v4528
  %4557 = vmatprep.subr.bf16.mxu0 %v4526
  %4558 = vmatpush1.bf16.msra.mxu0 %v4525
  %4559 = vmatprep.subr.bf16.mxu0 %v4523
  %4560 = vmatpush1.bf16.msra.mxu0 %v4522
  %4561 = vmatprep.subr.bf16.mxu0 %v4520
  %4562 = vmatpush1.bf16.msra.mxu0 %v4519
  %4563 = vmatprep.subr.bf16.mxu0 %v4517
  %4564 = vmatpush1.bf16.msra.mxu0 %v4516
  %4565 = vmatprep.subr.bf16.mxu0 %v4514
  %4566 = vmatpush1.bf16.msra.mxu0 %v4513
  %4567 = vmatprep.subr.bf16.mxu0 %v4511
  %4568 = vmatpush1.bf16.msra.mxu0 %v4510
  %4569 = vmatprep.subr.bf16.mxu0 %v4508
  %4570 = vmatpush1.bf16.msra.mxu0 %v4507
  %4571 = vmatprep.subr.bf16.mxu0 0
  %4572 = vmatpush2.bf16.msra.mxu0 0
  %4573 = vmatprep.subr.bf16.mxu0 0
  %4574 = vmatpush2.bf16.msra.mxu0 0
  %4575 = vmatprep.subr.bf16.mxu0 0
  %4576 = vmatpush2.bf16.msra.mxu0 0
  %4577 = vmatprep.subr.bf16.mxu0 0
  %4578 = vmatpush2.bf16.msra.mxu0 0
  %4579 = vmatprep.subr.bf16.mxu0 0
  %4580 = vmatpush2.bf16.msra.mxu0 0
  %4581 = vmatprep.subr.bf16.mxu0 0
  %4582 = vmatpush2.bf16.msra.mxu0 0
  %4583 = vmatprep.subr.bf16.mxu0 0
  %4584 = vmatpush2.bf16.msra.mxu0 0
  %4585 = vmatprep.subr.bf16.mxu0 0
  %4586 = vmatpush2.bf16.msra.mxu0 0
  %4587 = vmatprep.mubr.bf16.mxu0 0
  %4588 = vmatmul.mubr.bf16.gmra.mxu0 %v4394
  %v4589 = vpop.f32.mrf.mxu0
  %v4590 = vadd.f32 0.0, %v4589
  %v4591 = vpop.f32.mrf.mxu0
  %v4592 = vadd.f32 0.0, %v4591
  %v4593 = vpop.f32.mrf.mxu0
  %v4594 = vpop.f32.mrf.mxu0
  %4595 = vdwg.mxu0
  %4596 = vmatprep.subr.bf16.mxu0 0
  %4597 = vmatpush1.bf16.msra.mxu0 %v4530
  %4598 = vmatprep.subr.bf16.mxu0 0
  %4599 = vmatpush1.bf16.msra.mxu0 %v4527
  %4600 = vmatprep.subr.bf16.mxu0 0
  %4601 = vmatpush1.bf16.msra.mxu0 %v4524
  %4602 = vmatprep.subr.bf16.mxu0 0
  %4603 = vmatpush1.bf16.msra.mxu0 %v4521
  %4604 = vmatprep.subr.bf16.mxu0 0
  %4605 = vmatpush1.bf16.msra.mxu0 %v4518
  %4606 = vmatprep.subr.bf16.mxu0 0
  %4607 = vmatpush1.bf16.msra.mxu0 %v4515
  %4608 = vmatprep.subr.bf16.mxu0 0
  %4609 = vmatpush1.bf16.msra.mxu0 %v4512
  %4610 = vmatprep.subr.bf16.mxu0 0
  %4611 = vmatpush1.bf16.msra.mxu0 %v4509
  %4612 = vmatprep.subr.bf16.mxu0 0
  %4613 = vmatpush2.bf16.msra.mxu0 0
  %4614 = vmatprep.subr.bf16.mxu0 0
  %4615 = vmatpush2.bf16.msra.mxu0 0
  %4616 = vmatprep.subr.bf16.mxu0 0
  %4617 = vmatpush2.bf16.msra.mxu0 0
  %4618 = vmatprep.subr.bf16.mxu0 0
  %4619 = vmatpush2.bf16.msra.mxu0 0
  %4620 = vmatprep.subr.bf16.mxu0 0
  %4621 = vmatpush2.bf16.msra.mxu0 0
  %4622 = vmatprep.subr.bf16.mxu0 0
  %4623 = vmatpush2.bf16.msra.mxu0 0
  %4624 = vmatprep.subr.bf16.mxu0 0
  %4625 = vmatpush2.bf16.msra.mxu0 0
  %4626 = vmatprep.subr.bf16.mxu0 0
  %4627 = vmatpush2.bf16.msra.mxu0 0
  %4628 = vmatprep.mubr.bf16.mxu0 0
  %4629 = vmatmul.mubr.bf16.gmra.mxu0 %v4394
  %v4630 = vpop.f32.mrf.mxu0
  %v4631 = vadd.f32 0.0, %v4630
  %v4632 = vpop.f32.mrf.mxu0
  %v4633 = vpop.f32.mrf.mxu0
  %v4634 = vpop.f32.mrf.mxu0
  %4635 = vdwg.mxu0
  %v4636 = vadd.f32 %v4391, %v4590
  %v4637 = vxor.u32 %v4636, 2147483648
  %v4638 = vmul.f32 %v4637, 1.442695
  %v4639 = vpow.pop %v4638
  %v4640 = vadd.f32 %v4639, 1.0
  %v4641 = vrcp.pop %v4640
  %v4642 = vmul.f32 1.0, %v4641
  %v4643 = vadd.f32 %v4392, %v4592
  %v4644 = vxor.u32 %v4643, 2147483648
  %v4645 = vmul.f32 %v4644, 1.442695
  %v4646 = vpow.pop %v4645
  %v4647 = vadd.f32 %v4646, 1.0
  %v4648 = vrcp.pop %v4647
  %v4649 = vmul.f32 1.0, %v4648
  %v4650 = vld [vmem:[%s8] sm:$0x1]
  %v4652 = vlaneseq
  %v4653 = vshrl.u32 %v4652, 7
  %v4654 = vsub.s32 0, %v4653
  %v4655 = vrot.slane %v4650, %v4654
  %v4657 = vadd.f32 %v4631, %v4655
  %v4658 = vmul.f32 %v4642, %v4657
  %v4659 = vadd.f32 %v4393, %v4658
  %v4660 = vtanh.pop %v4659
  %v4661 = vsub.f32 1.0, %v4649
  %v4662 = vmul.f32 %v4661, %v4660
  %v4663 = vmul.f32 %v4649, %v4390
  %v4664 = vadd.f32 %v4662, %v4663
  %4665 = vst [vmem:[#allocation4] sm:$0xff] %v4664
  %v4666 = vld [vmem:[#allocation4] sm:$0xff]
  %v4667 = vld [vmem:[%s2099] sm:$0xff]
  %v4668 = vld [vmem:[%s2099 + $0x8] sm:$0xff]
  %v4669 = vld [vmem:[%s2099 + $0x10] sm:$0xff]
  %v4670 = vpack.c.bf16 %v4666, %v4666
  %v4671 = vld [vmem:[%s6] sm:$0xff]
  %v4672 = vld [vmem:[%s6 + $0x8] sm:$0xf]
  %v4673 = vld [vmem:[%s6 + $0xc] sm:$0xff]
  %v4674 = vld [vmem:[%s6 + $0x14] sm:$0xf]
  %v4675 = vld [vmem:[%s6 + $0x18] sm:$0xff]
  %v4676 = vld [vmem:[%s6 + $0x20] sm:$0xf]
  %v4677 = vld [vmem:[%s6 + $0x24] sm:$0xff]
  %v4678 = vld [vmem:[%s6 + $0x2c] sm:$0xf]
  %v4679 = vld [vmem:[%s6 + $0x30] sm:$0xff]
  %v4680 = vld [vmem:[%s6 + $0x38] sm:$0xf]
  %v4681 = vld [vmem:[%s6 + $0x3c] sm:$0xff]
  %v4682 = vld [vmem:[%s6 + $0x44] sm:$0xf]
  %v4683 = vld [vmem:[%s6 + $0x48] sm:$0xff]
  %v4684 = vld [vmem:[%s6 + $0x50] sm:$0xf]
  %v4685 = vld [vmem:[%s6 + $0x54] sm:$0xff]
  %v4686 = vld [vmem:[%s6 + $0x5c] sm:$0xf]
  %v4687 = vld [vmem:[%s6 + $0x60] sm:$0xff]
  %v4688 = vld [vmem:[%s6 + $0x68] sm:$0xf]
  %v4689 = vld [vmem:[%s6 + $0x6c] sm:$0xff]
  %v4690 = vld [vmem:[%s6 + $0x74] sm:$0xf]
  %v4691 = vld [vmem:[%s6 + $0x78] sm:$0xff]
  %v4692 = vld [vmem:[%s6 + $0x80] sm:$0xf]
  %v4693 = vld [vmem:[%s6 + $0x84] sm:$0xff]
  %v4694 = vld [vmem:[%s6 + $0x8c] sm:$0xf]
  %v4695 = vld [vmem:[%s6 + $0x90] sm:$0xff]
  %v4696 = vld [vmem:[%s6 + $0x98] sm:$0xf]
  %v4697 = vld [vmem:[%s6 + $0x9c] sm:$0xff]
  %v4698 = vld [vmem:[%s6 + $0xa4] sm:$0xf]
  %v4699 = vld [vmem:[%s6 + $0xa8] sm:$0xff]
  %v4700 = vld [vmem:[%s6 + $0xb0] sm:$0xf]
  %v4701 = vld [vmem:[%s6 + $0xb4] sm:$0xff]
  %v4702 = vld [vmem:[%s6 + $0xbc] sm:$0xf]
  %v4735 = vunpack.c.l.b16 %v4671
  %v4736 = vunpack.c.h.b16 %v4671
  %v4737 = vunpack.c.l.b16 %v4672
  %v4738 = vunpack.c.l.b16 %v4673
  %v4739 = vunpack.c.h.b16 %v4673
  %v4740 = vunpack.c.l.b16 %v4674
  %v4741 = vunpack.c.l.b16 %v4675
  %v4742 = vunpack.c.h.b16 %v4675
  %v4743 = vunpack.c.l.b16 %v4676
  %v4744 = vunpack.c.l.b16 %v4677
  %v4745 = vunpack.c.h.b16 %v4677
  %v4746 = vunpack.c.l.b16 %v4678
  %v4747 = vunpack.c.l.b16 %v4679
  %v4748 = vunpack.c.h.b16 %v4679
  %v4749 = vunpack.c.l.b16 %v4680
  %v4750 = vunpack.c.l.b16 %v4681
  %v4751 = vunpack.c.h.b16 %v4681
  %v4752 = vunpack.c.l.b16 %v4682
  %v4753 = vunpack.c.l.b16 %v4683
  %v4754 = vunpack.c.h.b16 %v4683
  %v4755 = vunpack.c.l.b16 %v4684
  %v4756 = vunpack.c.l.b16 %v4685
  %v4757 = vunpack.c.h.b16 %v4685
  %v4758 = vunpack.c.l.b16 %v4686
  %v4759 = vunpack.c.l.b16 %v4687
  %v4760 = vunpack.c.h.b16 %v4687
  %v4761 = vunpack.c.l.b16 %v4688
  %v4762 = vunpack.c.l.b16 %v4689
  %v4763 = vunpack.c.h.b16 %v4689
  %v4764 = vunpack.c.l.b16 %v4690
  %v4765 = vunpack.c.l.b16 %v4691
  %v4766 = vunpack.c.h.b16 %v4691
  %v4767 = vunpack.c.l.b16 %v4692
  %v4768 = vunpack.c.l.b16 %v4693
  %v4769 = vunpack.c.h.b16 %v4693
  %v4770 = vunpack.c.l.b16 %v4694
  %v4771 = vunpack.c.l.b16 %v4695
  %v4772 = vunpack.c.h.b16 %v4695
  %v4773 = vunpack.c.l.b16 %v4696
  %v4774 = vunpack.c.l.b16 %v4697
  %v4775 = vunpack.c.h.b16 %v4697
  %v4776 = vunpack.c.l.b16 %v4698
  %v4777 = vunpack.c.l.b16 %v4699
  %v4778 = vunpack.c.h.b16 %v4699
  %v4779 = vunpack.c.l.b16 %v4700
  %v4780 = vunpack.c.l.b16 %v4701
  %v4781 = vunpack.c.h.b16 %v4701
  %v4782 = vunpack.c.l.b16 %v4702
  %v4783 = vpack.c.b16 %v4738, %v4735
  %v4784 = vpack.c.b16 %v4739, %v4736
  %v4785 = vpack.c.b16 %v4740, %v4737
  %v4786 = vpack.c.b16 %v4744, %v4741
  %v4787 = vpack.c.b16 %v4745, %v4742
  %v4788 = vpack.c.b16 %v4746, %v4743
  %v4789 = vpack.c.b16 %v4750, %v4747
  %v4790 = vpack.c.b16 %v4751, %v4748
  %v4791 = vpack.c.b16 %v4752, %v4749
  %v4792 = vpack.c.b16 %v4756, %v4753
  %v4793 = vpack.c.b16 %v4757, %v4754
  %v4794 = vpack.c.b16 %v4758, %v4755
  %v4795 = vpack.c.b16 %v4762, %v4759
  %v4796 = vpack.c.b16 %v4763, %v4760
  %v4797 = vpack.c.b16 %v4764, %v4761
  %v4798 = vpack.c.b16 %v4768, %v4765
  %v4799 = vpack.c.b16 %v4769, %v4766
  %v4800 = vpack.c.b16 %v4770, %v4767
  %v4801 = vpack.c.b16 %v4774, %v4771
  %v4802 = vpack.c.b16 %v4775, %v4772
  %v4803 = vpack.c.b16 %v4776, %v4773
  %v4804 = vpack.c.b16 %v4780, %v4777
  %v4805 = vpack.c.b16 %v4781, %v4778
  %v4806 = vpack.c.b16 %v4782, %v4779
  %4831 = vmatprep.subr.bf16.mxu0 %v4805
  %4832 = vmatpush1.bf16.msra.mxu0 %v4804
  %4833 = vmatprep.subr.bf16.mxu0 %v4802
  %4834 = vmatpush1.bf16.msra.mxu0 %v4801
  %4835 = vmatprep.subr.bf16.mxu0 %v4799
  %4836 = vmatpush1.bf16.msra.mxu0 %v4798
  %4837 = vmatprep.subr.bf16.mxu0 %v4796
  %4838 = vmatpush1.bf16.msra.mxu0 %v4795
  %4839 = vmatprep.subr.bf16.mxu0 %v4793
  %4840 = vmatpush1.bf16.msra.mxu0 %v4792
  %4841 = vmatprep.subr.bf16.mxu0 %v4790
  %4842 = vmatpush1.bf16.msra.mxu0 %v4789
  %4843 = vmatprep.subr.bf16.mxu0 %v4787
  %4844 = vmatpush1.bf16.msra.mxu0 %v4786
  %4845 = vmatprep.subr.bf16.mxu0 %v4784
  %4846 = vmatpush1.bf16.msra.mxu0 %v4783
  %4847 = vmatprep.subr.bf16.mxu0 0
  %4848 = vmatpush2.bf16.msra.mxu0 0
  %4849 = vmatprep.subr.bf16.mxu0 0
  %4850 = vmatpush2.bf16.msra.mxu0 0
  %4851 = vmatprep.subr.bf16.mxu0 0
  %4852 = vmatpush2.bf16.msra.mxu0 0
  %4853 = vmatprep.subr.bf16.mxu0 0
  %4854 = vmatpush2.bf16.msra.mxu0 0
  %4855 = vmatprep.subr.bf16.mxu0 0
  %4856 = vmatpush2.bf16.msra.mxu0 0
  %4857 = vmatprep.subr.bf16.mxu0 0
  %4858 = vmatpush2.bf16.msra.mxu0 0
  %4859 = vmatprep.subr.bf16.mxu0 0
  %4860 = vmatpush2.bf16.msra.mxu0 0
  %4861 = vmatprep.subr.bf16.mxu0 0
  %4862 = vmatpush2.bf16.msra.mxu0 0
  %4863 = vmatprep.mubr.bf16.mxu0 0
  %4864 = vmatmul.mubr.bf16.gmra.mxu0 %v4670
  %v4865 = vpop.f32.mrf.mxu0
  %v4866 = vadd.f32 0.0, %v4865
  %v4867 = vpop.f32.mrf.mxu0
  %v4868 = vadd.f32 0.0, %v4867
  %v4869 = vpop.f32.mrf.mxu0
  %v4870 = vpop.f32.mrf.mxu0
  %4871 = vdwg.mxu0
  %4872 = vmatprep.subr.bf16.mxu0 0
  %4873 = vmatpush1.bf16.msra.mxu0 %v4806
  %4874 = vmatprep.subr.bf16.mxu0 0
  %4875 = vmatpush1.bf16.msra.mxu0 %v4803
  %4876 = vmatprep.subr.bf16.mxu0 0
  %4877 = vmatpush1.bf16.msra.mxu0 %v4800
  %4878 = vmatprep.subr.bf16.mxu0 0
  %4879 = vmatpush1.bf16.msra.mxu0 %v4797
  %4880 = vmatprep.subr.bf16.mxu0 0
  %4881 = vmatpush1.bf16.msra.mxu0 %v4794
  %4882 = vmatprep.subr.bf16.mxu0 0
  %4883 = vmatpush1.bf16.msra.mxu0 %v4791
  %4884 = vmatprep.subr.bf16.mxu0 0
  %4885 = vmatpush1.bf16.msra.mxu0 %v4788
  %4886 = vmatprep.subr.bf16.mxu0 0
  %4887 = vmatpush1.bf16.msra.mxu0 %v4785
  %4888 = vmatprep.subr.bf16.mxu0 0
  %4889 = vmatpush2.bf16.msra.mxu0 0
  %4890 = vmatprep.subr.bf16.mxu0 0
  %4891 = vmatpush2.bf16.msra.mxu0 0
  %4892 = vmatprep.subr.bf16.mxu0 0
  %4893 = vmatpush2.bf16.msra.mxu0 0
  %4894 = vmatprep.subr.bf16.mxu0 0
  %4895 = vmatpush2.bf16.msra.mxu0 0
  %4896 = vmatprep.subr.bf16.mxu0 0
  %4897 = vmatpush2.bf16.msra.mxu0 0
  %4898 = vmatprep.subr.bf16.mxu0 0
  %4899 = vmatpush2.bf16.msra.mxu0 0
  %4900 = vmatprep.subr.bf16.mxu0 0
  %4901 = vmatpush2.bf16.msra.mxu0 0
  %4902 = vmatprep.subr.bf16.mxu0 0
  %4903 = vmatpush2.bf16.msra.mxu0 0
  %4904 = vmatprep.mubr.bf16.mxu0 0
  %4905 = vmatmul.mubr.bf16.gmra.mxu0 %v4670
  %v4906 = vpop.f32.mrf.mxu0
  %v4907 = vadd.f32 0.0, %v4906
  %v4908 = vpop.f32.mrf.mxu0
  %v4909 = vpop.f32.mrf.mxu0
  %v4910 = vpop.f32.mrf.mxu0
  %4911 = vdwg.mxu0
  %v4912 = vadd.f32 %v4667, %v4866
  %v4913 = vxor.u32 %v4912, 2147483648
  %v4914 = vmul.f32 %v4913, 1.442695
  %v4915 = vpow.pop %v4914
  %v4916 = vadd.f32 %v4915, 1.0
  %v4917 = vrcp.pop %v4916
  %v4918 = vmul.f32 1.0, %v4917
  %v4919 = vadd.f32 %v4668, %v4868
  %v4920 = vxor.u32 %v4919, 2147483648
  %v4921 = vmul.f32 %v4920, 1.442695
  %v4922 = vpow.pop %v4921
  %v4923 = vadd.f32 %v4922, 1.0
  %v4924 = vrcp.pop %v4923
  %v4925 = vmul.f32 1.0, %v4924
  %v4926 = vld [vmem:[%s8] sm:$0x1]
  %v4928 = vlaneseq
  %v4929 = vshrl.u32 %v4928, 7
  %v4930 = vsub.s32 0, %v4929
  %v4931 = vrot.slane %v4926, %v4930
  %v4933 = vadd.f32 %v4907, %v4931
  %v4934 = vmul.f32 %v4918, %v4933
  %v4935 = vadd.f32 %v4669, %v4934
  %v4936 = vtanh.pop %v4935
  %v4937 = vsub.f32 1.0, %v4925
  %v4938 = vmul.f32 %v4937, %v4936
  %v4939 = vmul.f32 %v4925, %v4666
  %v4940 = vadd.f32 %v4938, %v4939
  %4941 = vst [vmem:[#allocation4] sm:$0xff] %v4940
  %v4942 = vld [vmem:[#allocation4] sm:$0xff]
  %v4943 = vld [vmem:[%s2380] sm:$0xff]
  %v4944 = vld [vmem:[%s2380 + $0x8] sm:$0xff]
  %v4945 = vld [vmem:[%s2380 + $0x10] sm:$0xff]
  %v4946 = vpack.c.bf16 %v4942, %v4942
  %v4947 = vld [vmem:[%s6] sm:$0xff]
  %v4948 = vld [vmem:[%s6 + $0x8] sm:$0xf]
  %v4949 = vld [vmem:[%s6 + $0xc] sm:$0xff]
  %v4950 = vld [vmem:[%s6 + $0x14] sm:$0xf]
  %v4951 = vld [vmem:[%s6 + $0x18] sm:$0xff]
  %v4952 = vld [vmem:[%s6 + $0x20] sm:$0xf]
  %v4953 = vld [vmem:[%s6 + $0x24] sm:$0xff]
  %v4954 = vld [vmem:[%s6 + $0x2c] sm:$0xf]
  %v4955 = vld [vmem:[%s6 + $0x30] sm:$0xff]
  %v4956 = vld [vmem:[%s6 + $0x38] sm:$0xf]
  %v4957 = vld [vmem:[%s6 + $0x3c] sm:$0xff]
  %v4958 = vld [vmem:[%s6 + $0x44] sm:$0xf]
  %v4959 = vld [vmem:[%s6 + $0x48] sm:$0xff]
  %v4960 = vld [vmem:[%s6 + $0x50] sm:$0xf]
  %v4961 = vld [vmem:[%s6 + $0x54] sm:$0xff]
  %v4962 = vld [vmem:[%s6 + $0x5c] sm:$0xf]
  %v4963 = vld [vmem:[%s6 + $0x60] sm:$0xff]
  %v4964 = vld [vmem:[%s6 + $0x68] sm:$0xf]
  %v4965 = vld [vmem:[%s6 + $0x6c] sm:$0xff]
  %v4966 = vld [vmem:[%s6 + $0x74] sm:$0xf]
  %v4967 = vld [vmem:[%s6 + $0x78] sm:$0xff]
  %v4968 = vld [vmem:[%s6 + $0x80] sm:$0xf]
  %v4969 = vld [vmem:[%s6 + $0x84] sm:$0xff]
  %v4970 = vld [vmem:[%s6 + $0x8c] sm:$0xf]
  %v4971 = vld [vmem:[%s6 + $0x90] sm:$0xff]
  %v4972 = vld [vmem:[%s6 + $0x98] sm:$0xf]
  %v4973 = vld [vmem:[%s6 + $0x9c] sm:$0xff]
  %v4974 = vld [vmem:[%s6 + $0xa4] sm:$0xf]
  %v4975 = vld [vmem:[%s6 + $0xa8] sm:$0xff]
  %v4976 = vld [vmem:[%s6 + $0xb0] sm:$0xf]
  %v4977 = vld [vmem:[%s6 + $0xb4] sm:$0xff]
  %v4978 = vld [vmem:[%s6 + $0xbc] sm:$0xf]
  %v5011 = vunpack.c.l.b16 %v4947
  %v5012 = vunpack.c.h.b16 %v4947
  %v5013 = vunpack.c.l.b16 %v4948
  %v5014 = vunpack.c.l.b16 %v4949
  %v5015 = vunpack.c.h.b16 %v4949
  %v5016 = vunpack.c.l.b16 %v4950
  %v5017 = vunpack.c.l.b16 %v4951
  %v5018 = vunpack.c.h.b16 %v4951
  %v5019 = vunpack.c.l.b16 %v4952
  %v5020 = vunpack.c.l.b16 %v4953
  %v5021 = vunpack.c.h.b16 %v4953
  %v5022 = vunpack.c.l.b16 %v4954
  %v5023 = vunpack.c.l.b16 %v4955
  %v5024 = vunpack.c.h.b16 %v4955
  %v5025 = vunpack.c.l.b16 %v4956
  %v5026 = vunpack.c.l.b16 %v4957
  %v5027 = vunpack.c.h.b16 %v4957
  %v5028 = vunpack.c.l.b16 %v4958
  %v5029 = vunpack.c.l.b16 %v4959
  %v5030 = vunpack.c.h.b16 %v4959
  %v5031 = vunpack.c.l.b16 %v4960
  %v5032 = vunpack.c.l.b16 %v4961
  %v5033 = vunpack.c.h.b16 %v4961
  %v5034 = vunpack.c.l.b16 %v4962
  %v5035 = vunpack.c.l.b16 %v4963
  %v5036 = vunpack.c.h.b16 %v4963
  %v5037 = vunpack.c.l.b16 %v4964
  %v5038 = vunpack.c.l.b16 %v4965
  %v5039 = vunpack.c.h.b16 %v4965
  %v5040 = vunpack.c.l.b16 %v4966
  %v5041 = vunpack.c.l.b16 %v4967
  %v5042 = vunpack.c.h.b16 %v4967
  %v5043 = vunpack.c.l.b16 %v4968
  %v5044 = vunpack.c.l.b16 %v4969
  %v5045 = vunpack.c.h.b16 %v4969
  %v5046 = vunpack.c.l.b16 %v4970
  %v5047 = vunpack.c.l.b16 %v4971
  %v5048 = vunpack.c.h.b16 %v4971
  %v5049 = vunpack.c.l.b16 %v4972
  %v5050 = vunpack.c.l.b16 %v4973
  %v5051 = vunpack.c.h.b16 %v4973
  %v5052 = vunpack.c.l.b16 %v4974
  %v5053 = vunpack.c.l.b16 %v4975
  %v5054 = vunpack.c.h.b16 %v4975
  %v5055 = vunpack.c.l.b16 %v4976
  %v5056 = vunpack.c.l.b16 %v4977
  %v5057 = vunpack.c.h.b16 %v4977
  %v5058 = vunpack.c.l.b16 %v4978
  %v5059 = vpack.c.b16 %v5014, %v5011
  %v5060 = vpack.c.b16 %v5015, %v5012
  %v5061 = vpack.c.b16 %v5016, %v5013
  %v5062 = vpack.c.b16 %v5020, %v5017
  %v5063 = vpack.c.b16 %v5021, %v5018
  %v5064 = vpack.c.b16 %v5022, %v5019
  %v5065 = vpack.c.b16 %v5026, %v5023
  %v5066 = vpack.c.b16 %v5027, %v5024
  %v5067 = vpack.c.b16 %v5028, %v5025
  %v5068 = vpack.c.b16 %v5032, %v5029
  %v5069 = vpack.c.b16 %v5033, %v5030
  %v5070 = vpack.c.b16 %v5034, %v5031
  %v5071 = vpack.c.b16 %v5038, %v5035
  %v5072 = vpack.c.b16 %v5039, %v5036
  %v5073 = vpack.c.b16 %v5040, %v5037
  %v5074 = vpack.c.b16 %v5044, %v5041
  %v5075 = vpack.c.b16 %v5045, %v5042
  %v5076 = vpack.c.b16 %v5046, %v5043
  %v5077 = vpack.c.b16 %v5050, %v5047
  %v5078 = vpack.c.b16 %v5051, %v5048
  %v5079 = vpack.c.b16 %v5052, %v5049
  %v5080 = vpack.c.b16 %v5056, %v5053
  %v5081 = vpack.c.b16 %v5057, %v5054
  %v5082 = vpack.c.b16 %v5058, %v5055
  %5107 = vmatprep.subr.bf16.mxu0 %v5081
  %5108 = vmatpush1.bf16.msra.mxu0 %v5080
  %5109 = vmatprep.subr.bf16.mxu0 %v5078
  %5110 = vmatpush1.bf16.msra.mxu0 %v5077
  %5111 = vmatprep.subr.bf16.mxu0 %v5075
  %5112 = vmatpush1.bf16.msra.mxu0 %v5074
  %5113 = vmatprep.subr.bf16.mxu0 %v5072
  %5114 = vmatpush1.bf16.msra.mxu0 %v5071
  %5115 = vmatprep.subr.bf16.mxu0 %v5069
  %5116 = vmatpush1.bf16.msra.mxu0 %v5068
  %5117 = vmatprep.subr.bf16.mxu0 %v5066
  %5118 = vmatpush1.bf16.msra.mxu0 %v5065
  %5119 = vmatprep.subr.bf16.mxu0 %v5063
  %5120 = vmatpush1.bf16.msra.mxu0 %v5062
  %5121 = vmatprep.subr.bf16.mxu0 %v5060
  %5122 = vmatpush1.bf16.msra.mxu0 %v5059
  %5123 = vmatprep.subr.bf16.mxu0 0
  %5124 = vmatpush2.bf16.msra.mxu0 0
  %5125 = vmatprep.subr.bf16.mxu0 0
  %5126 = vmatpush2.bf16.msra.mxu0 0
  %5127 = vmatprep.subr.bf16.mxu0 0
  %5128 = vmatpush2.bf16.msra.mxu0 0
  %5129 = vmatprep.subr.bf16.mxu0 0
  %5130 = vmatpush2.bf16.msra.mxu0 0
  %5131 = vmatprep.subr.bf16.mxu0 0
  %5132 = vmatpush2.bf16.msra.mxu0 0
  %5133 = vmatprep.subr.bf16.mxu0 0
  %5134 = vmatpush2.bf16.msra.mxu0 0
  %5135 = vmatprep.subr.bf16.mxu0 0
  %5136 = vmatpush2.bf16.msra.mxu0 0
  %5137 = vmatprep.subr.bf16.mxu0 0
  %5138 = vmatpush2.bf16.msra.mxu0 0
  %5139 = vmatprep.mubr.bf16.mxu0 0
  %5140 = vmatmul.mubr.bf16.gmra.mxu0 %v4946
  %v5141 = vpop.f32.mrf.mxu0
  %v5142 = vadd.f32 0.0, %v5141
  %v5143 = vpop.f32.mrf.mxu0
  %v5144 = vadd.f32 0.0, %v5143
  %v5145 = vpop.f32.mrf.mxu0
  %v5146 = vpop.f32.mrf.mxu0
  %5147 = vdwg.mxu0
  %5148 = vmatprep.subr.bf16.mxu0 0
  %5149 = vmatpush1.bf16.msra.mxu0 %v5082
  %5150 = vmatprep.subr.bf16.mxu0 0
  %5151 = vmatpush1.bf16.msra.mxu0 %v5079
  %5152 = vmatprep.subr.bf16.mxu0 0
  %5153 = vmatpush1.bf16.msra.mxu0 %v5076
  %5154 = vmatprep.subr.bf16.mxu0 0
  %5155 = vmatpush1.bf16.msra.mxu0 %v5073
  %5156 = vmatprep.subr.bf16.mxu0 0
  %5157 = vmatpush1.bf16.msra.mxu0 %v5070
  %5158 = vmatprep.subr.bf16.mxu0 0
  %5159 = vmatpush1.bf16.msra.mxu0 %v5067
  %5160 = vmatprep.subr.bf16.mxu0 0
  %5161 = vmatpush1.bf16.msra.mxu0 %v5064
  %5162 = vmatprep.subr.bf16.mxu0 0
  %5163 = vmatpush1.bf16.msra.mxu0 %v5061
  %5164 = vmatprep.subr.bf16.mxu0 0
  %5165 = vmatpush2.bf16.msra.mxu0 0
  %5166 = vmatprep.subr.bf16.mxu0 0
  %5167 = vmatpush2.bf16.msra.mxu0 0
  %5168 = vmatprep.subr.bf16.mxu0 0
  %5169 = vmatpush2.bf16.msra.mxu0 0
  %5170 = vmatprep.subr.bf16.mxu0 0
  %5171 = vmatpush2.bf16.msra.mxu0 0
  %5172 = vmatprep.subr.bf16.mxu0 0
  %5173 = vmatpush2.bf16.msra.mxu0 0
  %5174 = vmatprep.subr.bf16.mxu0 0
  %5175 = vmatpush2.bf16.msra.mxu0 0
  %5176 = vmatprep.subr.bf16.mxu0 0
  %5177 = vmatpush2.bf16.msra.mxu0 0
  %5178 = vmatprep.subr.bf16.mxu0 0
  %5179 = vmatpush2.bf16.msra.mxu0 0
  %5180 = vmatprep.mubr.bf16.mxu0 0
  %5181 = vmatmul.mubr.bf16.gmra.mxu0 %v4946
  %v5182 = vpop.f32.mrf.mxu0
  %v5183 = vadd.f32 0.0, %v5182
  %v5184 = vpop.f32.mrf.mxu0
  %v5185 = vpop.f32.mrf.mxu0
  %v5186 = vpop.f32.mrf.mxu0
  %5187 = vdwg.mxu0
  %v5188 = vadd.f32 %v4943, %v5142
  %v5189 = vxor.u32 %v5188, 2147483648
  %v5190 = vmul.f32 %v5189, 1.442695
  %v5191 = vpow.pop %v5190
  %v5192 = vadd.f32 %v5191, 1.0
  %v5193 = vrcp.pop %v5192
  %v5194 = vmul.f32 1.0, %v5193
  %v5195 = vadd.f32 %v4944, %v5144
  %v5196 = vxor.u32 %v5195, 2147483648
  %v5197 = vmul.f32 %v5196, 1.442695
  %v5198 = vpow.pop %v5197
  %v5199 = vadd.f32 %v5198, 1.0
  %v5200 = vrcp.pop %v5199
  %v5201 = vmul.f32 1.0, %v5200
  %v5202 = vld [vmem:[%s8] sm:$0x1]
  %v5204 = vlaneseq
  %v5205 = vshrl.u32 %v5204, 7
  %v5206 = vsub.s32 0, %v5205
  %v5207 = vrot.slane %v5202, %v5206
  %v5209 = vadd.f32 %v5183, %v5207
  %v5210 = vmul.f32 %v5194, %v5209
  %v5211 = vadd.f32 %v4945, %v5210
  %v5212 = vtanh.pop %v5211
  %v5213 = vsub.f32 1.0, %v5201
  %v5214 = vmul.f32 %v5213, %v5212
  %v5215 = vmul.f32 %v5201, %v4942
  %v5216 = vadd.f32 %v5214, %v5215
  %5217 = vst [vmem:[#allocation4] sm:$0xff] %v5216
  %v5218 = vld [vmem:[#allocation4] sm:$0xff]
  %v5219 = vpack.c.bf16 %v5218, %v5218
  %v5220 = vld [vmem:[%s9] sm:$0xf]
  %v5221 = vld [vmem:[%s9 + $0x4] sm:$0xf]
  %v5222 = vld [vmem:[%s9 + $0x8] sm:$0xf]
  %v5223 = vld [vmem:[%s9 + $0xc] sm:$0xf]
  %v5224 = vld [vmem:[%s9 + $0x10] sm:$0xf]
  %v5225 = vld [vmem:[%s9 + $0x14] sm:$0xf]
  %v5226 = vld [vmem:[%s9 + $0x18] sm:$0xf]
  %v5227 = vld [vmem:[%s9 + $0x1c] sm:$0xf]
  %v5228 = vld [vmem:[%s9 + $0x20] sm:$0xf]
  %v5229 = vld [vmem:[%s9 + $0x24] sm:$0xf]
  %v5230 = vld [vmem:[%s9 + $0x28] sm:$0xf]
  %v5231 = vld [vmem:[%s9 + $0x2c] sm:$0xf]
  %v5232 = vld [vmem:[%s9 + $0x30] sm:$0xf]
  %v5233 = vld [vmem:[%s9 + $0x34] sm:$0xf]
  %v5234 = vld [vmem:[%s9 + $0x38] sm:$0xf]
  %v5235 = vld [vmem:[%s9 + $0x3c] sm:$0xf]
  %v5236 = vld [vmem:[%s10] sm:$0x1]
  %v5238 = vlaneseq
  %v5239 = vshrl.u32 %v5238, 7
  %v5240 = vsub.s32 0, %v5239
  %v5241 = vrot.slane %v5236, %v5240
  %v5259 = vunpack.c.l.b16 %v5220
  %v5260 = vunpack.c.l.b16 %v5221
  %v5261 = vunpack.c.l.b16 %v5222
  %v5262 = vunpack.c.l.b16 %v5223
  %v5263 = vunpack.c.l.b16 %v5224
  %v5264 = vunpack.c.l.b16 %v5225
  %v5265 = vunpack.c.l.b16 %v5226
  %v5266 = vunpack.c.l.b16 %v5227
  %v5267 = vunpack.c.l.b16 %v5228
  %v5268 = vunpack.c.l.b16 %v5229
  %v5269 = vunpack.c.l.b16 %v5230
  %v5270 = vunpack.c.l.b16 %v5231
  %v5271 = vunpack.c.l.b16 %v5232
  %v5272 = vunpack.c.l.b16 %v5233
  %v5273 = vunpack.c.l.b16 %v5234
  %v5274 = vunpack.c.l.b16 %v5235
  %v5275 = vpack.c.b16 %v5260, %v5259
  %v5276 = vpack.c.b16 %v5262, %v5261
  %v5277 = vpack.c.b16 %v5264, %v5263
  %v5278 = vpack.c.b16 %v5266, %v5265
  %v5279 = vpack.c.b16 %v5268, %v5267
  %v5280 = vpack.c.b16 %v5270, %v5269
  %v5281 = vpack.c.b16 %v5272, %v5271
  %v5282 = vpack.c.b16 %v5274, %v5273
  %5291 = vmatprep.subr.bf16.mxu0 0
  %5292 = vmatpush1.bf16.msra.mxu0 %v5282
  %5293 = vmatprep.subr.bf16.mxu0 0
  %5294 = vmatpush1.bf16.msra.mxu0 %v5281
  %5295 = vmatprep.subr.bf16.mxu0 0
  %5296 = vmatpush1.bf16.msra.mxu0 %v5280
  %5297 = vmatprep.subr.bf16.mxu0 0
  %5298 = vmatpush1.bf16.msra.mxu0 %v5279
  %5299 = vmatprep.subr.bf16.mxu0 0
  %5300 = vmatpush1.bf16.msra.mxu0 %v5278
  %5301 = vmatprep.subr.bf16.mxu0 0
  %5302 = vmatpush1.bf16.msra.mxu0 %v5277
  %5303 = vmatprep.subr.bf16.mxu0 0
  %5304 = vmatpush1.bf16.msra.mxu0 %v5276
  %5305 = vmatprep.subr.bf16.mxu0 0
  %5306 = vmatpush1.bf16.msra.mxu0 %v5275
  %5307 = vmatprep.subr.bf16.mxu0 0
  %5308 = vmatpush2.bf16.msra.mxu0 0
  %5309 = vmatprep.subr.bf16.mxu0 0
  %5310 = vmatpush2.bf16.msra.mxu0 0
  %5311 = vmatprep.subr.bf16.mxu0 0
  %5312 = vmatpush2.bf16.msra.mxu0 0
  %5313 = vmatprep.subr.bf16.mxu0 0
  %5314 = vmatpush2.bf16.msra.mxu0 0
  %5315 = vmatprep.subr.bf16.mxu0 0
  %5316 = vmatpush2.bf16.msra.mxu0 0
  %5317 = vmatprep.subr.bf16.mxu0 0
  %5318 = vmatpush2.bf16.msra.mxu0 0
  %5319 = vmatprep.subr.bf16.mxu0 0
  %5320 = vmatpush2.bf16.msra.mxu0 0
  %5321 = vmatprep.subr.bf16.mxu0 0
  %5322 = vmatpush2.bf16.msra.mxu0 0
  %5323 = vmatprep.mubr.bf16.mxu0 0
  %5324 = vmatmul.mubr.bf16.gmra.mxu0 %v5219
  %v5325 = vpop.f32.mrf.mxu0
  %v5326 = vadd.f32 %v5241, %v5325
  %v5327 = vpop.f32.mrf.mxu0
  %v5328 = vpop.f32.mrf.mxu0
  %v5329 = vpop.f32.mrf.mxu0
  %5330 = vdwg.mxu0
  %v5331 = vxor.u32 %v5326, 2147483648
  %v5332 = vmul.f32 %v5331, 1.442695
  %v5333 = vpow.pop %v5332
  %v5334 = vadd.f32 %v5333, 1.0
  %v5335 = vrcp.pop %v5334
  %v5336 = vmul.f32 1.0, %v5335
  %5337 = vst [vmem:[%s11] sm:$0xff] %v5336
  // Predicated region
  $region46: #{gru_model_forward.1} parent=0 // pred_check
    _
  $region47: #{gru_model_forward.1} parent=0 // pred_check_branch
    %5339 = sbr.rel (0) target = $region49
  $region48: #{gru_model_forward.1} parent=0 // pred_region
    _
  $region49: #{gru_model_forward.1} parent=0 // pred_fallthru
    _
  // Predicated region
  $region50: #{gru_model_forward.1} parent=0 // pred_check
    _
  $region51: #{gru_model_forward.1} parent=0 // pred_check_branch
    %5341 = sbr.rel (0) target = $region53
  $region52: #{gru_model_forward.1} parent=0 // pred_region
    _
  $region53: #{gru_model_forward.1} parent=0 // pred_fallthru
    _

</llo_original>
